<compile_context>
chip_gen: v5e
topology: v5e:2x2
jax: 0.10.0
libtpu: 0.0.40
codegen_flags: <defaults>
</compile_context>

<pallas_src>
import jax
import jax.numpy as jnp
import numpy as np
from jax.experimental import pallas as pl
from jax.experimental.pallas import tpu as pltpu


# ----------------------------------------------------------------------------
# Trace-time constant builders (numpy spatial gathers + jnp weight folding)
# ----------------------------------------------------------------------------
def _spatial_taps(ih, iw, kh, kw, stride, pad):
    """0/1 tap-selection tensor S of shape (kh*kw, OH*OW, IH*IW).
    S[t, m, r] == 1 iff spatial input position r is tap t of output position m
    (all-zero entries implement zero padding)."""
    oh = (ih + 2 * pad - kh) // stride + 1
    ow = (iw + 2 * pad - kw) // stride + 1
    s = np.zeros((kh * kw, oh * ow, ih * iw), np.float32)
    for ky in range(kh):
        for kx in range(kw):
            t = ky * kw + kx
            for oy in range(oh):
                iy = stride * oy + ky - pad
                if iy < 0 or iy >= ih:
                    continue
                for ox in range(ow):
                    ix = stride * ox + kx - pad
                    if ix < 0 or ix >= iw:
                        continue
                    s[t, oy * ow + ox, iy * iw + ix] = 1.0
    return s, oh, ow


def _fold_conv(w, taps, ih, iw, oh, ow):
    """Fold a Conv2d weight (Cout, Cin, kh, kw) with its constant spatial gather
    into ONE dense matrix mapping the NCHW-flattened input (Cin*IH*IW) to the
    NCHW-flattened output (Cout*OH*OW).  Row = c*IH*IW + r, col = o*OH*OW + m."""
    cout, cin, kh, kw = w.shape
    wt = w.reshape(cout, cin, kh * kw)
    folded = jnp.einsum("tmr,oct->crom", taps, wt)
    return folded.reshape(cin * ih * iw, cout * oh * ow)


# ----------------------------------------------------------------------------
# Fused Pallas kernel: whole Discriminator forward, 5 dense matmuls in VMEM
# ----------------------------------------------------------------------------
def _disc_kernel(x_ref, w1_ref, b1_ref, w2_ref, b2_ref, w3_ref, b3_ref,
                 wsrc_ref, wup_ref, src_ref, up_ref):
    def dot(a, b):
        return jnp.dot(a, b, preferred_element_type=jnp.float32)

    def leaky(a):
        return jnp.where(a > 0, a, 0.01 * a)

    a1 = leaky(dot(x_ref[...], w1_ref[...]) + b1_ref[...])   # (N, c1*H1*W1)
    a2 = leaky(dot(a1, w2_ref[...]) + b2_ref[...])           # (N, c2*H2*W2)
    a3 = leaky(dot(a2, w3_ref[...]) + b3_ref[...])           # (N, c3*H3*W3)
    src_ref[...] = dot(a3, wsrc_ref[...])                    # (N, 128)  lane-dense
    up_ref[...] = dot(a3, wup_ref[...])                      # (N, Mh*c_dim*k*k)


def discriminator_forward(x, p):
    """x: (N, 3, H, W) NCHW float32.  PyTorch Discriminator forward semantics."""
    N, cin, H, W = x.shape
    c1 = p["w1"].shape[0]
    c2 = p["w2"].shape[0]
    c3 = p["w3"].shape[0]
    c_dim, _, kup, _ = p["w_up"].shape
    sup, pup = kup // 2, kup // 4                       # stride=8, padding=4

    # ---------------- trace-time constant spatial gathers --------------------
    t1, H1, W1 = _spatial_taps(H, W, 4, 4, 2, 1)
    t2, H2, W2 = _spatial_taps(H1, W1, 4, 4, 2, 1)
    t3, H3, W3 = _spatial_taps(H2, W2, 4, 4, 2, 1)
    th, _, _ = _spatial_taps(H3, W3, 3, 3, 1, 1)
    Mh = H3 * W3

    # ---------------- fold gather + weights into dense matmuls ---------------
    w1f = _fold_conv(p["w1"], t1, H, W, H1, W1)         # (3*H*W,    c1*H1*W1)
    w2f = _fold_conv(p["w2"], t2, H1, W1, H2, W2)       # (c1*H1W1,  c2*H2W2)
    w3f = _fold_conv(p["w3"], t3, H2, W2, H3, W3)       # (c2*H2W2,  c3*Mh)
    b1f = jnp.repeat(p["b1"], H1 * W1)[None, :]
    b2f = jnp.repeat(p["b2"], H2 * W2)[None, :]
    b3f = jnp.repeat(p["b3"], H3 * W3)[None, :]

    # src head folded; pad columns to 128 so the store is lane-dense.
    wsrcf = _fold_conv(p["w_src"], th, H3, W3, H3, W3)  # (c3*Mh, Mh)
    src_cols = max(128, Mh)
    wsrcf = jnp.pad(wsrcf, ((0, 0), (0, src_cols - Mh)))

    # cls head + ConvTranspose2d dense kernel folded into one (c3*Mh, Mh*c_dim*k*k)
    # matrix: out column = m*(c_dim*k*k) + (o_out*k*k + ky*k + kx).
    fcls = jnp.einsum("tmr,oct->crmo", th,
                      p["w_cls"].reshape(c_dim, c3, 9)).reshape(c3 * Mh, Mh, c_dim)
    wupf = jnp.einsum("xmo,oj->xmj", fcls,
                      p["w_up"].reshape(c_dim, c_dim * kup * kup))
    up_cols = Mh * c_dim * kup * kup
    wupf = wupf.reshape(c3 * Mh, up_cols)

    x_flat = x.reshape(N, cin * H * W)
    inputs = (x_flat, w1f, b1f, w2f, b2f, w3f, b3f, wsrcf, wupf)

    def full_spec(a):
        nd = a.ndim
        return pl.BlockSpec(a.shape, lambda i, _nd=nd: (0,) * _nd)

    flops = 2 * N * (w1f.shape[0] * w1f.shape[1] + w2f.shape[0] * w2f.shape[1]
                     + w3f.shape[0] * w3f.shape[1]
                     + wsrcf.shape[0] * src_cols + wupf.shape[0] * up_cols)
    bytes_accessed = 4 * (sum(int(np.prod(a.shape)) for a in inputs)
                          + N * (src_cols + up_cols))

    src_pad, up_rows = pl.pallas_call(
        _disc_kernel,
        out_shape=(jax.ShapeDtypeStruct((N, src_cols), jnp.float32),
                   jax.ShapeDtypeStruct((N, up_cols), jnp.float32)),
        grid=(1,),
        in_specs=[full_spec(a) for a in inputs],
        out_specs=(pl.BlockSpec((N, src_cols), lambda i: (0, 0)),
                   pl.BlockSpec((N, up_cols), lambda i: (0, 0))),
        compiler_params=pltpu.CompilerParams(
            dimension_semantics=("arbitrary",),
            vmem_limit_bytes=48 * 1024 * 1024),
        cost_estimate=pl.CostEstimate(flops=int(flops), transcendentals=0,
                                      bytes_accessed=int(bytes_accessed)),
    )(*inputs)

    # ---------------- post-kernel glue (output re-layout only) ---------------
    out_src = src_pad[:, :Mh].reshape(N, 1, H3, W3)

    # ConvTranspose2d overlap-add: each (i, j) input position contributes a full
    # (c_dim, kup, kup) patch at offset (sup*i - pup, sup*j - pup).
    # TODO(synk): scatter-add overlap of ConvTranspose2d has no clean in-kernel
    # equivalent at this scale; at real StarGAN sizes restructure as an
    # lhs-dilated conv instead of this Python loop.
    contrib = up_rows.reshape(N, H3, W3, c_dim, kup, kup)
    OH = (H3 - 1) * sup - 2 * pup + kup
    OW = (W3 - 1) * sup - 2 * pup + kup
    canvas = jnp.zeros((N, c_dim, OH + 2 * pup, OW + 2 * pup), jnp.float32)
    for i in range(H3):
        for j in range(W3):
            canvas = canvas.at[:, :, sup * i:sup * i + kup,
                               sup * j:sup * j + kup].add(contrib[:, i, j])
    out_cls = canvas[:, :, pup:pup + OH, pup:pup + OW]
    return out_src, out_cls


# ----------------------------------------------------------------------------
# Pure-JAX (XLA conv) reference for a correctness check
# ----------------------------------------------------------------------------
def _ref_conv(x, W, b, stride, pad, slope=None):
    out = jax.lax.conv_general_dilated(
        x, W, (stride, stride), [(pad, pad), (pad, pad)],
        dimension_numbers=("NCHW", "OIHW", "NCHW"))
    if b is not None:
        out = out + b[None, :, None, None]
    if slope is not None:
        out = jnp.where(out > 0, out, slope * out)
    return out


def _ref_conv_transpose(x, W, stride, pad):
    Cin, Cout, kh, kw = W.shape
    W_eff = jnp.flip(W, axis=(2, 3)).transpose(1, 0, 2, 3)
    return jax.lax.conv_general_dilated(
        x, W_eff, (1, 1), [(kh - 1 - pad, kh - 1 - pad)] * 2,
        lhs_dilation=(stride, stride),
        dimension_numbers=("NCHW", "OIHW", "NCHW"))


def _ref_forward(x, p):
    h = _ref_conv(x, p["w1"], p["b1"], 2, 1, 0.01)
    h = _ref_conv(h, p["w2"], p["b2"], 2, 1, 0.01)
    h = _ref_conv(h, p["w3"], p["b3"], 2, 1, 0.01)
    out_src = _ref_conv(h, p["w_src"], None, 1, 1)
    out_cls = _ref_conv(h, p["w_cls"], None, 1, 1)
    out_cls = _ref_conv_transpose(out_cls, p["w_up"], 8, 4)
    return out_src, out_cls


# ----------------------------------------------------------------------------
# Deterministic parameter init (shapes follow Discriminator.__init__)
# ----------------------------------------------------------------------------
def init_params(key, conv_dim=8, c_dim=5):
    def conv_init(k, cout, cin, ksz, bias=True):
        kw_, kb_ = jax.random.split(k)
        fan_in = cin * ksz * ksz
        w = jax.random.normal(kw_, (cout, cin, ksz, ksz), jnp.float32) / np.sqrt(fan_in)
        b = 0.01 * jax.random.normal(kb_, (cout,), jnp.float32) if bias else None
        return w, b

    keys = jax.random.split(key, 6)
    d = conv_dim
    p = {}
    p["w1"], p["b1"] = conv_init(keys[0], d, 3, 4)
    p["w2"], p["b2"] = conv_init(keys[1], 2 * d, d, 4)
    p["w3"], p["b3"] = conv_init(keys[2], 4 * d, 2 * d, 4)
    p["w_src"], _ = conv_init(keys[3], 1, 4 * d, 3, bias=False)
    p["w_cls"], _ = conv_init(keys[4], c_dim, 4 * d, 3, bias=False)
    # ConvTranspose2d weight layout: (in_channels, out_channels, kH, kW)
    p["w_up"] = jax.random.normal(keys[5], (c_dim, c_dim, 16, 16), jnp.float32) / np.sqrt(c_dim * 16 * 16)
    return p


if __name__ == "__main__":
    key = jax.random.PRNGKey(0)
    k_param, k_x = jax.random.split(key)
    params = init_params(k_param, conv_dim=8, c_dim=5)

    # image_size=16 -> h is (N, 32, 2, 2); the upsample brings cls back to 16x16.
    x = jax.random.normal(k_x, (2, 3, 16, 16), jnp.float32)

    fwd = jax.jit(discriminator_forward)
    out_src, out_cls = fwd(x, params)
    jax.block_until_ready((out_src, out_cls))

    assert out_src.shape == (2, 1, 2, 2), out_src.shape
    assert out_cls.shape == (2, 5, 16, 16), out_cls.shape

    ref_src, ref_cls = _ref_forward(x, params)
    np.testing.assert_allclose(np.asarray(out_src), np.asarray(ref_src), rtol=1e-4, atol=1e-4)
    np.testing.assert_allclose(np.asarray(out_cls), np.asarray(ref_cls), rtol=1e-4, atol=1e-4)

    print("KERNEL_OK")
</pallas_src>

<mosaic_0001>
module attributes {stable_mosaic.version = 11 : i64} {
  func.func @_disc_kernel(%arg0: i32, %arg1: memref<2x768xf32, #tpu.memory_space<vmem>>, %arg2: memref<768x512xf32, #tpu.memory_space<vmem>>, %arg3: memref<1x512xf32, #tpu.memory_space<vmem>>, %arg4: memref<512x256xf32, #tpu.memory_space<vmem>>, %arg5: memref<1x256xf32, #tpu.memory_space<vmem>>, %arg6: memref<256x128xf32, #tpu.memory_space<vmem>>, %arg7: memref<1x128xf32, #tpu.memory_space<vmem>>, %arg8: memref<128x128xf32, #tpu.memory_space<vmem>>, %arg9: memref<128x5120xf32, #tpu.memory_space<vmem>>, %arg10: memref<2x128xf32, #tpu.memory_space<vmem>>, %arg11: memref<2x5120xf32, #tpu.memory_space<vmem>>) attributes {dimension_semantics = [#tpu.dimension_semantics<arbitrary>], iteration_bounds = array<i64: 1>, scalar_prefetch = 0 : i64, scratch_operands = 0 : i64, tpu.core_type = #tpu.core_type<tc>, window_params = [{pipeline_mode = #tpu.pipeline_mode<synchronous>, transform_indices = @transform_0, window_bounds = array<i64: 2, 768>}, {pipeline_mode = #tpu.pipeline_mode<synchronous>, transform_indices = @transform_1, window_bounds = array<i64: 768, 512>}, {pipeline_mode = #tpu.pipeline_mode<synchronous>, transform_indices = @transform_2, window_bounds = array<i64: 1, 512>}, {pipeline_mode = #tpu.pipeline_mode<synchronous>, transform_indices = @transform_3, window_bounds = array<i64: 512, 256>}, {pipeline_mode = #tpu.pipeline_mode<synchronous>, transform_indices = @transform_4, window_bounds = array<i64: 1, 256>}, {pipeline_mode = #tpu.pipeline_mode<synchronous>, transform_indices = @transform_5, window_bounds = array<i64: 256, 128>}, {pipeline_mode = #tpu.pipeline_mode<synchronous>, transform_indices = @transform_6, window_bounds = array<i64: 1, 128>}, {pipeline_mode = #tpu.pipeline_mode<synchronous>, transform_indices = @transform_7, window_bounds = array<i64: 128, 128>}, {pipeline_mode = #tpu.pipeline_mode<synchronous>, transform_indices = @transform_8, window_bounds = array<i64: 128, 5120>}, {pipeline_mode = #tpu.pipeline_mode<synchronous>, transform_indices = @transform_9, window_bounds = array<i64: 2, 128>}, {pipeline_mode = #tpu.pipeline_mode<synchronous>, transform_indices = @transform_10, window_bounds = array<i64: 2, 5120>}]} {
    %c0 = arith.constant 0 : index
    %c0_0 = arith.constant 0 : index
    %0 = vector.load %arg1[%c0, %c0_0] : memref<2x768xf32, #tpu.memory_space<vmem>>, vector<2x768xf32>
    %c0_1 = arith.constant 0 : index
    %c0_2 = arith.constant 0 : index
    %1 = vector.load %arg2[%c0_1, %c0_2] : memref<768x512xf32, #tpu.memory_space<vmem>>, vector<768x512xf32>
    %cst = arith.constant dense<0.000000e+00> : vector<2x512xf32>
    %2 = tpu.matmul %0, %1, %cst {dimension_numbers = #tpu.dot_dimension_numbers<[1], [0], [0], [1], [0, 0, 1, 1], [], []>} : vector<2x768xf32>, vector<768x512xf32>, vector<2x512xf32> -> vector<2x512xf32>
    %c0_3 = arith.constant 0 : index
    %c0_4 = arith.constant 0 : index
    %3 = vector.load %arg3[%c0_3, %c0_4] : memref<1x512xf32, #tpu.memory_space<vmem>>, vector<1x512xf32>
    %4 = vector.broadcast %3 : vector<1x512xf32> to vector<2x512xf32>
    %5 = arith.addf %2, %4 : vector<2x512xf32>
    %cst_5 = arith.constant 0.000000e+00 : f32
    %6 = vector.broadcast %cst_5 : f32 to vector<2x512xf32>
    %7 = arith.cmpf ogt, %5, %6 : vector<2x512xf32>
    %cst_6 = arith.constant 0.00999999977 : f32
    %8 = vector.broadcast %cst_6 : f32 to vector<2x512xf32>
    %9 = arith.mulf %8, %5 : vector<2x512xf32>
    %10 = arith.select %7, %5, %9 : vector<2x512xi1>, vector<2x512xf32>
    %c0_7 = arith.constant 0 : index
    %c0_8 = arith.constant 0 : index
    %11 = vector.load %arg4[%c0_7, %c0_8] : memref<512x256xf32, #tpu.memory_space<vmem>>, vector<512x256xf32>
    %cst_9 = arith.constant dense<0.000000e+00> : vector<2x256xf32>
    %12 = tpu.matmul %10, %11, %cst_9 {dimension_numbers = #tpu.dot_dimension_numbers<[1], [0], [0], [1], [0, 0, 1, 1], [], []>} : vector<2x512xf32>, vector<512x256xf32>, vector<2x256xf32> -> vector<2x256xf32>
    %c0_10 = arith.constant 0 : index
    %c0_11 = arith.constant 0 : index
    %13 = vector.load %arg5[%c0_10, %c0_11] : memref<1x256xf32, #tpu.memory_space<vmem>>, vector<1x256xf32>
    %14 = vector.broadcast %13 : vector<1x256xf32> to vector<2x256xf32>
    %15 = arith.addf %12, %14 : vector<2x256xf32>
    %cst_12 = arith.constant 0.000000e+00 : f32
    %16 = vector.broadcast %cst_12 : f32 to vector<2x256xf32>
    %17 = arith.cmpf ogt, %15, %16 : vector<2x256xf32>
    %cst_13 = arith.constant 0.00999999977 : f32
    %18 = vector.broadcast %cst_13 : f32 to vector<2x256xf32>
    %19 = arith.mulf %18, %15 : vector<2x256xf32>
    %20 = arith.select %17, %15, %19 : vector<2x256xi1>, vector<2x256xf32>
    %c0_14 = arith.constant 0 : index
    %c0_15 = arith.constant 0 : index
    %21 = vector.load %arg6[%c0_14, %c0_15] : memref<256x128xf32, #tpu.memory_space<vmem>>, vector<256x128xf32>
    %cst_16 = arith.constant dense<0.000000e+00> : vector<2x128xf32>
    %22 = tpu.matmul %20, %21, %cst_16 {dimension_numbers = #tpu.dot_dimension_numbers<[1], [0], [0], [1], [0, 0, 1, 1], [], []>} : vector<2x256xf32>, vector<256x128xf32>, vector<2x128xf32> -> vector<2x128xf32>
    %c0_17 = arith.constant 0 : index
    %c0_18 = arith.constant 0 : index
    %23 = vector.load %arg7[%c0_17, %c0_18] : memref<1x128xf32, #tpu.memory_space<vmem>>, vector<1x128xf32>
    %24 = vector.broadcast %23 : vector<1x128xf32> to vector<2x128xf32>
    %25 = arith.addf %22, %24 : vector<2x128xf32>
    %cst_19 = arith.constant 0.000000e+00 : f32
    %26 = vector.broadcast %cst_19 : f32 to vector<2x128xf32>
    %27 = arith.cmpf ogt, %25, %26 : vector<2x128xf32>
    %cst_20 = arith.constant 0.00999999977 : f32
    %28 = vector.broadcast %cst_20 : f32 to vector<2x128xf32>
    %29 = arith.mulf %28, %25 : vector<2x128xf32>
    %30 = arith.select %27, %25, %29 : vector<2x128xi1>, vector<2x128xf32>
    %c0_21 = arith.constant 0 : index
    %c0_22 = arith.constant 0 : index
    %31 = vector.load %arg8[%c0_21, %c0_22] : memref<128x128xf32, #tpu.memory_space<vmem>>, vector<128x128xf32>
    %cst_23 = arith.constant dense<0.000000e+00> : vector<2x128xf32>
    %32 = tpu.matmul %30, %31, %cst_23 {dimension_numbers = #tpu.dot_dimension_numbers<[1], [0], [0], [1], [0, 0, 1, 1], [], []>} : vector<2x128xf32>, vector<128x128xf32>, vector<2x128xf32> -> vector<2x128xf32>
    %c0_24 = arith.constant 0 : index
    %c0_25 = arith.constant 0 : index
    %33 = vector.load %arg10[%c0_24, %c0_25] : memref<2x128xf32, #tpu.memory_space<vmem>>, vector<2x128xf32>
    tpu.vector_store %arg10[%c0_24, %c0_25], %32 {strides = array<i32>} : memref<2x128xf32, #tpu.memory_space<vmem>>, vector<2x128xf32>,
    %c0_26 = arith.constant 0 : index
    %c0_27 = arith.constant 0 : index
    %34 = vector.load %arg9[%c0_26, %c0_27] : memref<128x5120xf32, #tpu.memory_space<vmem>>, vector<128x5120xf32>
    %cst_28 = arith.constant dense<0.000000e+00> : vector<2x5120xf32>
    %35 = tpu.matmul %30, %34, %cst_28 {dimension_numbers = #tpu.dot_dimension_numbers<[1], [0], [0], [1], [0, 0, 1, 1], [], []>} : vector<2x128xf32>, vector<128x5120xf32>, vector<2x5120xf32> -> vector<2x5120xf32>
    %c0_29 = arith.constant 0 : index
    %c0_30 = arith.constant 0 : index
    %36 = vector.load %arg11[%c0_29, %c0_30] : memref<2x5120xf32, #tpu.memory_space<vmem>>, vector<2x5120xf32>
    tpu.vector_store %arg11[%c0_29, %c0_30], %35 {strides = array<i32>} : memref<2x5120xf32, #tpu.memory_space<vmem>>, vector<2x5120xf32>,
    return
  }
  func.func @transform_0(%arg0: i32) -> (i32, i32) {
    %c0_i32 = arith.constant 0 : i32
    %c0_i32_0 = arith.constant 0 : i32
    %c0_i32_1 = arith.constant 0 : i32
    return %c0_i32, %c0_i32_0 : i32, i32
  }
  func.func @transform_1(%arg0: i32) -> (i32, i32) {
    %c0_i32 = arith.constant 0 : i32
    %c0_i32_0 = arith.constant 0 : i32
    %c0_i32_1 = arith.constant 0 : i32
    return %c0_i32, %c0_i32_0 : i32, i32
  }
  func.func @transform_2(%arg0: i32) -> (i32, i32) {
    %c0_i32 = arith.constant 0 : i32
    %c0_i32_0 = arith.constant 0 : i32
    %c0_i32_1 = arith.constant 0 : i32
    return %c0_i32, %c0_i32_0 : i32, i32
  }
  func.func @transform_3(%arg0: i32) -> (i32, i32) {
    %c0_i32 = arith.constant 0 : i32
    %c0_i32_0 = arith.constant 0 : i32
    %c0_i32_1 = arith.constant 0 : i32
    return %c0_i32, %c0_i32_0 : i32, i32
  }
  func.func @transform_4(%arg0: i32) -> (i32, i32) {
    %c0_i32 = arith.constant 0 : i32
    %c0_i32_0 = arith.constant 0 : i32
    %c0_i32_1 = arith.constant 0 : i32
    return %c0_i32, %c0_i32_0 : i32, i32
  }
  func.func @transform_5(%arg0: i32) -> (i32, i32) {
    %c0_i32 = arith.constant 0 : i32
    %c0_i32_0 = arith.constant 0 : i32
    %c0_i32_1 = arith.constant 0 : i32
    return %c0_i32, %c0_i32_0 : i32, i32
  }
  func.func @transform_6(%arg0: i32) -> (i32, i32) {
    %c0_i32 = arith.constant 0 : i32
    %c0_i32_0 = arith.constant 0 : i32
    %c0_i32_1 = arith.constant 0 : i32
    return %c0_i32, %c0_i32_0 : i32, i32
  }
  func.func @transform_7(%arg0: i32) -> (i32, i32) {
    %c0_i32 = arith.constant 0 : i32
    %c0_i32_0 = arith.constant 0 : i32
    %c0_i32_1 = arith.constant 0 : i32
    return %c0_i32, %c0_i32_0 : i32, i32
  }
  func.func @transform_8(%arg0: i32) -> (i32, i32) {
    %c0_i32 = arith.constant 0 : i32
    %c0_i32_0 = arith.constant 0 : i32
    %c0_i32_1 = arith.constant 0 : i32
    return %c0_i32, %c0_i32_0 : i32, i32
  }
  func.func @transform_9(%arg0: i32) -> (i32, i32) {
    %c0_i32 = arith.constant 0 : i32
    %c0_i32_0 = arith.constant 0 : i32
    %c0_i32_1 = arith.constant 0 : i32
    return %c0_i32, %c0_i32_0 : i32, i32
  }
  func.func @transform_10(%arg0: i32) -> (i32, i32) {
    %c0_i32 = arith.constant 0 : i32
    %c0_i32_0 = arith.constant 0 : i32
    %c0_i32_1 = arith.constant 0 : i32
    return %c0_i32, %c0_i32_0 : i32, i32
  }
}

</mosaic_0001>

<llo_original>
// kernel: discriminator_forward.1
$region0: #{discriminator_forward.1}
  #allocation0 [shape = 'u32[]', space=smem, size = 0x4, offset = 0x4, fixed_abs, tag = 'smem constant byte address 0x4 - core index']
  #allocation1 [shape = 'u32[72,128]{1,0:T(1,128)}', space=vmem, size = 0x9000, scoped, tag = 'internal scratch']
  %s0 = inlined_call_operand.vmem [shape: f32[2,768], index: 0, kind: input, shape index: {}]
  %s1 = inlined_call_operand.vmem [shape: f32[768,512], index: 1, kind: input, shape index: {}]
  %s2 = inlined_call_operand.vmem [shape: f32[1,512], index: 2, kind: input, shape index: {}]
  %s3 = inlined_call_operand.vmem [shape: f32[512,256], index: 3, kind: input, shape index: {}]
  %s4 = inlined_call_operand.vmem [shape: f32[1,256], index: 4, kind: input, shape index: {}]
  %s5 = inlined_call_operand.vmem [shape: f32[256,128], index: 5, kind: input, shape index: {}]
  %s6 = inlined_call_operand.vmem [shape: f32[1,128], index: 6, kind: input, shape index: {}]
  %s7 = inlined_call_operand.vmem [shape: f32[128,128], index: 7, kind: input, shape index: {}]
  %s8 = inlined_call_operand.vmem [shape: f32[128,5120], index: 8, kind: input, shape index: {}]
  %s9 = inlined_call_operand.vmem [shape: f32[2,128], index: 9, kind: output, shape index: {0}]
  %s10 = inlined_call_operand.vmem [shape: f32[2,5120], index: 10, kind: output, shape index: {1}]
  %11 = xla_tuple %s9, %s10
  %s12 = sld [smem:[#allocation0]]
  $region54: #{discriminator_forward.1} parent=0
    _
  %s14 = ssub.s32 1, %s12
  %s15 = scalar_select 0, %s14, %s12
  // Predicated region
  $region2: #{discriminator_forward.1} parent=0 // pred_check
    _
  $region3: #{discriminator_forward.1} parent=0 // pred_check_branch
    %17 = sbr.rel (0) target = $region5
  $region4: #{discriminator_forward.1} parent=0 // pred_region
    _
  $region5: #{discriminator_forward.1} parent=0 // pred_fallthru
    _
  // Predicated region
  $region6: #{discriminator_forward.1} parent=0 // pred_check
    _
  $region7: #{discriminator_forward.1} parent=0 // pred_check_branch
    %19 = sbr.rel (0) target = $region9
  $region8: #{discriminator_forward.1} parent=0 // pred_region
    _
  $region9: #{discriminator_forward.1} parent=0 // pred_fallthru
    _
  // Predicated region
  $region10: #{discriminator_forward.1} parent=0 // pred_check
    _
  $region11: #{discriminator_forward.1} parent=0 // pred_check_branch
    %21 = sbr.rel (0) target = $region13
  $region12: #{discriminator_forward.1} parent=0 // pred_region
    _
  $region13: #{discriminator_forward.1} parent=0 // pred_fallthru
    _
  // Predicated region
  $region14: #{discriminator_forward.1} parent=0 // pred_check
    _
  $region15: #{discriminator_forward.1} parent=0 // pred_check_branch
    %23 = sbr.rel (0) target = $region17
  $region16: #{discriminator_forward.1} parent=0 // pred_region
    _
  $region17: #{discriminator_forward.1} parent=0 // pred_fallthru
    _
  // Predicated region
  $region18: #{discriminator_forward.1} parent=0 // pred_check
    _
  $region19: #{discriminator_forward.1} parent=0 // pred_check_branch
    %25 = sbr.rel (0) target = $region21
  $region20: #{discriminator_forward.1} parent=0 // pred_region
    _
  $region21: #{discriminator_forward.1} parent=0 // pred_fallthru
    _
  // Predicated region
  $region22: #{discriminator_forward.1} parent=0 // pred_check
    _
  $region23: #{discriminator_forward.1} parent=0 // pred_check_branch
    %27 = sbr.rel (0) target = $region25
  $region24: #{discriminator_forward.1} parent=0 // pred_region
    _
  $region25: #{discriminator_forward.1} parent=0 // pred_fallthru
    _
  // Predicated region
  $region26: #{discriminator_forward.1} parent=0 // pred_check
    _
  $region27: #{discriminator_forward.1} parent=0 // pred_check_branch
    %29 = sbr.rel (0) target = $region29
  $region28: #{discriminator_forward.1} parent=0 // pred_region
    _
  $region29: #{discriminator_forward.1} parent=0 // pred_fallthru
    _
  // Predicated region
  $region30: #{discriminator_forward.1} parent=0 // pred_check
    _
  $region31: #{discriminator_forward.1} parent=0 // pred_check_branch
    %31 = sbr.rel (0) target = $region33
  $region32: #{discriminator_forward.1} parent=0 // pred_region
    _
  $region33: #{discriminator_forward.1} parent=0 // pred_fallthru
    _
  // Predicated region
  $region34: #{discriminator_forward.1} parent=0 // pred_check
    _
  $region35: #{discriminator_forward.1} parent=0 // pred_check_branch
    %33 = sbr.rel (0) target = $region37
  $region36: #{discriminator_forward.1} parent=0 // pred_region
    _
  $region37: #{discriminator_forward.1} parent=0 // pred_fallthru
    _
  %v34 = vld [vmem:[%s0] sm:$0xff]
  %v35 = vld [vmem:[%s0 + $0x8] sm:$0xf]
  %v36 = vld [vmem:[%s1] sm:$0xff]
  %v37 = vld [vmem:[%s1 + $0x8] sm:$0xff]
  %v38 = vld [vmem:[%s1 + $0x10] sm:$0xff]
  %v39 = vld [vmem:[%s1 + $0x18] sm:$0xff]
  %v40 = vld [vmem:[%s1 + $0x20] sm:$0xff]
  %v41 = vld [vmem:[%s1 + $0x28] sm:$0xff]
  %v42 = vld [vmem:[%s1 + $0x30] sm:$0xff]
  %v43 = vld [vmem:[%s1 + $0x38] sm:$0xff]
  %v44 = vld [vmem:[%s1 + $0x40] sm:$0xff]
  %v45 = vld [vmem:[%s1 + $0x48] sm:$0xff]
  %v46 = vld [vmem:[%s1 + $0x50] sm:$0xff]
  %v47 = vld [vmem:[%s1 + $0x58] sm:$0xff]
  %v48 = vld [vmem:[%s1 + $0x60] sm:$0xff]
  %v49 = vld [vmem:[%s1 + $0x68] sm:$0xff]
  %v50 = vld [vmem:[%s1 + $0x70] sm:$0xff]
  %v51 = vld [vmem:[%s1 + $0x78] sm:$0xff]
  %v52 = vld [vmem:[%s1 + $0x80] sm:$0xff]
  %v53 = vld [vmem:[%s1 + $0x88] sm:$0xff]
  %v54 = vld [vmem:[%s1 + $0x90] sm:$0xff]
  %v55 = vld [vmem:[%s1 + $0x98] sm:$0xff]
  %v56 = vld [vmem:[%s1 + $0xa0] sm:$0xff]
  %v57 = vld [vmem:[%s1 + $0xa8] sm:$0xff]
  %v58 = vld [vmem:[%s1 + $0xb0] sm:$0xff]
  %v59 = vld [vmem:[%s1 + $0xb8] sm:$0xff]
  %v60 = vld [vmem:[%s1 + $0xc0] sm:$0xff]
  %v61 = vld [vmem:[%s1 + $0xc8] sm:$0xff]
  %v62 = vld [vmem:[%s1 + $0xd0] sm:$0xff]
  %v63 = vld [vmem:[%s1 + $0xd8] sm:$0xff]
  %v64 = vld [vmem:[%s1 + $0xe0] sm:$0xff]
  %v65 = vld [vmem:[%s1 + $0xe8] sm:$0xff]
  %v66 = vld [vmem:[%s1 + $0xf0] sm:$0xff]
  %v67 = vld [vmem:[%s1 + $0xf8] sm:$0xff]
  %v68 = vld [vmem:[%s1 + $0x100] sm:$0xff]
  %v69 = vld [vmem:[%s1 + $0x108] sm:$0xff]
  %v70 = vld [vmem:[%s1 + $0x110] sm:$0xff]
  %v71 = vld [vmem:[%s1 + $0x118] sm:$0xff]
  %v72 = vld [vmem:[%s1 + $0x120] sm:$0xff]
  %v73 = vld [vmem:[%s1 + $0x128] sm:$0xff]
  %v74 = vld [vmem:[%s1 + $0x130] sm:$0xff]
  %v75 = vld [vmem:[%s1 + $0x138] sm:$0xff]
  %v76 = vld [vmem:[%s1 + $0x140] sm:$0xff]
  %v77 = vld [vmem:[%s1 + $0x148] sm:$0xff]
  %v78 = vld [vmem:[%s1 + $0x150] sm:$0xff]
  %v79 = vld [vmem:[%s1 + $0x158] sm:$0xff]
  %v80 = vld [vmem:[%s1 + $0x160] sm:$0xff]
  %v81 = vld [vmem:[%s1 + $0x168] sm:$0xff]
  %v82 = vld [vmem:[%s1 + $0x170] sm:$0xff]
  %v83 = vld [vmem:[%s1 + $0x178] sm:$0xff]
  %v84 = vld [vmem:[%s1 + $0x180] sm:$0xff]
  %v85 = vld [vmem:[%s1 + $0x188] sm:$0xff]
  %v86 = vld [vmem:[%s1 + $0x190] sm:$0xff]
  %v87 = vld [vmem:[%s1 + $0x198] sm:$0xff]
  %v88 = vld [vmem:[%s1 + $0x1a0] sm:$0xff]
  %v89 = vld [vmem:[%s1 + $0x1a8] sm:$0xff]
  %v90 = vld [vmem:[%s1 + $0x1b0] sm:$0xff]
  %v91 = vld [vmem:[%s1 + $0x1b8] sm:$0xff]
  %v92 = vld [vmem:[%s1 + $0x1c0] sm:$0xff]
  %v93 = vld [vmem:[%s1 + $0x1c8] sm:$0xff]
  %v94 = vld [vmem:[%s1 + $0x1d0] sm:$0xff]
  %v95 = vld [vmem:[%s1 + $0x1d8] sm:$0xff]
  %v96 = vld [vmem:[%s1 + $0x1e0] sm:$0xff]
  %v97 = vld [vmem:[%s1 + $0x1e8] sm:$0xff]
  %v98 = vld [vmem:[%s1 + $0x1f0] sm:$0xff]
  %v99 = vld [vmem:[%s1 + $0x1f8] sm:$0xff]
  %v100 = vld [vmem:[%s1 + $0x200] sm:$0xff]
  %v101 = vld [vmem:[%s1 + $0x208] sm:$0xff]
  %v102 = vld [vmem:[%s1 + $0x210] sm:$0xff]
  %v103 = vld [vmem:[%s1 + $0x218] sm:$0xff]
  %v104 = vld [vmem:[%s1 + $0x220] sm:$0xff]
  %v105 = vld [vmem:[%s1 + $0x228] sm:$0xff]
  %v106 = vld [vmem:[%s1 + $0x230] sm:$0xff]
  %v107 = vld [vmem:[%s1 + $0x238] sm:$0xff]
  %v108 = vld [vmem:[%s1 + $0x240] sm:$0xff]
  %v109 = vld [vmem:[%s1 + $0x248] sm:$0xff]
  %v110 = vld [vmem:[%s1 + $0x250] sm:$0xff]
  %v111 = vld [vmem:[%s1 + $0x258] sm:$0xff]
  %v112 = vld [vmem:[%s1 + $0x260] sm:$0xff]
  %v113 = vld [vmem:[%s1 + $0x268] sm:$0xff]
  %v114 = vld [vmem:[%s1 + $0x270] sm:$0xff]
  %v115 = vld [vmem:[%s1 + $0x278] sm:$0xff]
  %v116 = vld [vmem:[%s1 + $0x280] sm:$0xff]
  %v117 = vld [vmem:[%s1 + $0x288] sm:$0xff]
  %v118 = vld [vmem:[%s1 + $0x290] sm:$0xff]
  %v119 = vld [vmem:[%s1 + $0x298] sm:$0xff]
  %v120 = vld [vmem:[%s1 + $0x2a0] sm:$0xff]
  %v121 = vld [vmem:[%s1 + $0x2a8] sm:$0xff]
  %v122 = vld [vmem:[%s1 + $0x2b0] sm:$0xff]
  %v123 = vld [vmem:[%s1 + $0x2b8] sm:$0xff]
  %v124 = vld [vmem:[%s1 + $0x2c0] sm:$0xff]
  %v125 = vld [vmem:[%s1 + $0x2c8] sm:$0xff]
  %v126 = vld [vmem:[%s1 + $0x2d0] sm:$0xff]
  %v127 = vld [vmem:[%s1 + $0x2d8] sm:$0xff]
  %v128 = vld [vmem:[%s1 + $0x2e0] sm:$0xff]
  %v129 = vld [vmem:[%s1 + $0x2e8] sm:$0xff]
  %v130 = vld [vmem:[%s1 + $0x2f0] sm:$0xff]
  %v131 = vld [vmem:[%s1 + $0x2f8] sm:$0xff]
  %v132 = vld [vmem:[%s1 + $0x300] sm:$0xff]
  %v133 = vld [vmem:[%s1 + $0x308] sm:$0xff]
  %v134 = vld [vmem:[%s1 + $0x310] sm:$0xff]
  %v135 = vld [vmem:[%s1 + $0x318] sm:$0xff]
  %v136 = vld [vmem:[%s1 + $0x320] sm:$0xff]
  %v137 = vld [vmem:[%s1 + $0x328] sm:$0xff]
  %v138 = vld [vmem:[%s1 + $0x330] sm:$0xff]
  %v139 = vld [vmem:[%s1 + $0x338] sm:$0xff]
  %v140 = vld [vmem:[%s1 + $0x340] sm:$0xff]
  %v141 = vld [vmem:[%s1 + $0x348] sm:$0xff]
  %v142 = vld [vmem:[%s1 + $0x350] sm:$0xff]
  %v143 = vld [vmem:[%s1 + $0x358] sm:$0xff]
  %v144 = vld [vmem:[%s1 + $0x360] sm:$0xff]
  %v145 = vld [vmem:[%s1 + $0x368] sm:$0xff]
  %v146 = vld [vmem:[%s1 + $0x370] sm:$0xff]
  %v147 = vld [vmem:[%s1 + $0x378] sm:$0xff]
  %v148 = vld [vmem:[%s1 + $0x380] sm:$0xff]
  %v149 = vld [vmem:[%s1 + $0x388] sm:$0xff]
  %v150 = vld [vmem:[%s1 + $0x390] sm:$0xff]
  %v151 = vld [vmem:[%s1 + $0x398] sm:$0xff]
  %v152 = vld [vmem:[%s1 + $0x3a0] sm:$0xff]
  %v153 = vld [vmem:[%s1 + $0x3a8] sm:$0xff]
  %v154 = vld [vmem:[%s1 + $0x3b0] sm:$0xff]
  %v155 = vld [vmem:[%s1 + $0x3b8] sm:$0xff]
  %v156 = vld [vmem:[%s1 + $0x3c0] sm:$0xff]
  %v157 = vld [vmem:[%s1 + $0x3c8] sm:$0xff]
  %v158 = vld [vmem:[%s1 + $0x3d0] sm:$0xff]
  %v159 = vld [vmem:[%s1 + $0x3d8] sm:$0xff]
  %v160 = vld [vmem:[%s1 + $0x3e0] sm:$0xff]
  %v161 = vld [vmem:[%s1 + $0x3e8] sm:$0xff]
  %v162 = vld [vmem:[%s1 + $0x3f0] sm:$0xff]
  %v163 = vld [vmem:[%s1 + $0x3f8] sm:$0xff]
  %v164 = vld [vmem:[%s1 + $0x400] sm:$0xff]
  %v165 = vld [vmem:[%s1 + $0x408] sm:$0xff]
  %v166 = vld [vmem:[%s1 + $0x410] sm:$0xff]
  %v167 = vld [vmem:[%s1 + $0x418] sm:$0xff]
  %v168 = vld [vmem:[%s1 + $0x420] sm:$0xff]
  %v169 = vld [vmem:[%s1 + $0x428] sm:$0xff]
  %v170 = vld [vmem:[%s1 + $0x430] sm:$0xff]
  %v171 = vld [vmem:[%s1 + $0x438] sm:$0xff]
  %v172 = vld [vmem:[%s1 + $0x440] sm:$0xff]
  %v173 = vld [vmem:[%s1 + $0x448] sm:$0xff]
  %v174 = vld [vmem:[%s1 + $0x450] sm:$0xff]
  %v175 = vld [vmem:[%s1 + $0x458] sm:$0xff]
  %v176 = vld [vmem:[%s1 + $0x460] sm:$0xff]
  %v177 = vld [vmem:[%s1 + $0x468] sm:$0xff]
  %v178 = vld [vmem:[%s1 + $0x470] sm:$0xff]
  %v179 = vld [vmem:[%s1 + $0x478] sm:$0xff]
  %v180 = vld [vmem:[%s1 + $0x480] sm:$0xff]
  %v181 = vld [vmem:[%s1 + $0x488] sm:$0xff]
  %v182 = vld [vmem:[%s1 + $0x490] sm:$0xff]
  %v183 = vld [vmem:[%s1 + $0x498] sm:$0xff]
  %v184 = vld [vmem:[%s1 + $0x4a0] sm:$0xff]
  %v185 = vld [vmem:[%s1 + $0x4a8] sm:$0xff]
  %v186 = vld [vmem:[%s1 + $0x4b0] sm:$0xff]
  %v187 = vld [vmem:[%s1 + $0x4b8] sm:$0xff]
  %v188 = vld [vmem:[%s1 + $0x4c0] sm:$0xff]
  %v189 = vld [vmem:[%s1 + $0x4c8] sm:$0xff]
  %v190 = vld [vmem:[%s1 + $0x4d0] sm:$0xff]
  %v191 = vld [vmem:[%s1 + $0x4d8] sm:$0xff]
  %v192 = vld [vmem:[%s1 + $0x4e0] sm:$0xff]
  %v193 = vld [vmem:[%s1 + $0x4e8] sm:$0xff]
  %v194 = vld [vmem:[%s1 + $0x4f0] sm:$0xff]
  %v195 = vld [vmem:[%s1 + $0x4f8] sm:$0xff]
  %v196 = vld [vmem:[%s1 + $0x500] sm:$0xff]
  %v197 = vld [vmem:[%s1 + $0x508] sm:$0xff]
  %v198 = vld [vmem:[%s1 + $0x510] sm:$0xff]
  %v199 = vld [vmem:[%s1 + $0x518] sm:$0xff]
  %v200 = vld [vmem:[%s1 + $0x520] sm:$0xff]
  %v201 = vld [vmem:[%s1 + $0x528] sm:$0xff]
  %v202 = vld [vmem:[%s1 + $0x530] sm:$0xff]
  %v203 = vld [vmem:[%s1 + $0x538] sm:$0xff]
  %v204 = vld [vmem:[%s1 + $0x540] sm:$0xff]
  %v205 = vld [vmem:[%s1 + $0x548] sm:$0xff]
  %v206 = vld [vmem:[%s1 + $0x550] sm:$0xff]
  %v207 = vld [vmem:[%s1 + $0x558] sm:$0xff]
  %v208 = vld [vmem:[%s1 + $0x560] sm:$0xff]
  %v209 = vld [vmem:[%s1 + $0x568] sm:$0xff]
  %v210 = vld [vmem:[%s1 + $0x570] sm:$0xff]
  %v211 = vld [vmem:[%s1 + $0x578] sm:$0xff]
  %v212 = vld [vmem:[%s1 + $0x580] sm:$0xff]
  %v213 = vld [vmem:[%s1 + $0x588] sm:$0xff]
  %v214 = vld [vmem:[%s1 + $0x590] sm:$0xff]
  %v215 = vld [vmem:[%s1 + $0x598] sm:$0xff]
  %v216 = vld [vmem:[%s1 + $0x5a0] sm:$0xff]
  %v217 = vld [vmem:[%s1 + $0x5a8] sm:$0xff]
  %v218 = vld [vmem:[%s1 + $0x5b0] sm:$0xff]
  %v219 = vld [vmem:[%s1 + $0x5b8] sm:$0xff]
  %v220 = vld [vmem:[%s1 + $0x5c0] sm:$0xff]
  %v221 = vld [vmem:[%s1 + $0x5c8] sm:$0xff]
  %v222 = vld [vmem:[%s1 + $0x5d0] sm:$0xff]
  %v223 = vld [vmem:[%s1 + $0x5d8] sm:$0xff]
  %v224 = vld [vmem:[%s1 + $0x5e0] sm:$0xff]
  %v225 = vld [vmem:[%s1 + $0x5e8] sm:$0xff]
  %v226 = vld [vmem:[%s1 + $0x5f0] sm:$0xff]
  %v227 = vld [vmem:[%s1 + $0x5f8] sm:$0xff]
  %v228 = vld [vmem:[%s1 + $0x600] sm:$0xff]
  %v229 = vld [vmem:[%s1 + $0x608] sm:$0xff]
  %v230 = vld [vmem:[%s1 + $0x610] sm:$0xff]
  %v231 = vld [vmem:[%s1 + $0x618] sm:$0xff]
  %v232 = vld [vmem:[%s1 + $0x620] sm:$0xff]
  %v233 = vld [vmem:[%s1 + $0x628] sm:$0xff]
  %v234 = vld [vmem:[%s1 + $0x630] sm:$0xff]
  %v235 = vld [vmem:[%s1 + $0x638] sm:$0xff]
  %v236 = vld [vmem:[%s1 + $0x640] sm:$0xff]
  %v237 = vld [vmem:[%s1 + $0x648] sm:$0xff]
  %v238 = vld [vmem:[%s1 + $0x650] sm:$0xff]
  %v239 = vld [vmem:[%s1 + $0x658] sm:$0xff]
  %v240 = vld [vmem:[%s1 + $0x660] sm:$0xff]
  %v241 = vld [vmem:[%s1 + $0x668] sm:$0xff]
  %v242 = vld [vmem:[%s1 + $0x670] sm:$0xff]
  %v243 = vld [vmem:[%s1 + $0x678] sm:$0xff]
  %v244 = vld [vmem:[%s1 + $0x680] sm:$0xff]
  %v245 = vld [vmem:[%s1 + $0x688] sm:$0xff]
  %v246 = vld [vmem:[%s1 + $0x690] sm:$0xff]
  %v247 = vld [vmem:[%s1 + $0x698] sm:$0xff]
  %v248 = vld [vmem:[%s1 + $0x6a0] sm:$0xff]
  %v249 = vld [vmem:[%s1 + $0x6a8] sm:$0xff]
  %v250 = vld [vmem:[%s1 + $0x6b0] sm:$0xff]
  %v251 = vld [vmem:[%s1 + $0x6b8] sm:$0xff]
  %v252 = vld [vmem:[%s1 + $0x6c0] sm:$0xff]
  %v253 = vld [vmem:[%s1 + $0x6c8] sm:$0xff]
  %v254 = vld [vmem:[%s1 + $0x6d0] sm:$0xff]
  %v255 = vld [vmem:[%s1 + $0x6d8] sm:$0xff]
  %v256 = vld [vmem:[%s1 + $0x6e0] sm:$0xff]
  %v257 = vld [vmem:[%s1 + $0x6e8] sm:$0xff]
  %v258 = vld [vmem:[%s1 + $0x6f0] sm:$0xff]
  %v259 = vld [vmem:[%s1 + $0x6f8] sm:$0xff]
  %v260 = vld [vmem:[%s1 + $0x700] sm:$0xff]
  %v261 = vld [vmem:[%s1 + $0x708] sm:$0xff]
  %v262 = vld [vmem:[%s1 + $0x710] sm:$0xff]
  %v263 = vld [vmem:[%s1 + $0x718] sm:$0xff]
  %v264 = vld [vmem:[%s1 + $0x720] sm:$0xff]
  %v265 = vld [vmem:[%s1 + $0x728] sm:$0xff]
  %v266 = vld [vmem:[%s1 + $0x730] sm:$0xff]
  %v267 = vld [vmem:[%s1 + $0x738] sm:$0xff]
  %v268 = vld [vmem:[%s1 + $0x740] sm:$0xff]
  %v269 = vld [vmem:[%s1 + $0x748] sm:$0xff]
  %v270 = vld [vmem:[%s1 + $0x750] sm:$0xff]
  %v271 = vld [vmem:[%s1 + $0x758] sm:$0xff]
  %v272 = vld [vmem:[%s1 + $0x760] sm:$0xff]
  %v273 = vld [vmem:[%s1 + $0x768] sm:$0xff]
  %v274 = vld [vmem:[%s1 + $0x770] sm:$0xff]
  %v275 = vld [vmem:[%s1 + $0x778] sm:$0xff]
  %v276 = vld [vmem:[%s1 + $0x780] sm:$0xff]
  %v277 = vld [vmem:[%s1 + $0x788] sm:$0xff]
  %v278 = vld [vmem:[%s1 + $0x790] sm:$0xff]
  %v279 = vld [vmem:[%s1 + $0x798] sm:$0xff]
  %v280 = vld [vmem:[%s1 + $0x7a0] sm:$0xff]
  %v281 = vld [vmem:[%s1 + $0x7a8] sm:$0xff]
  %v282 = vld [vmem:[%s1 + $0x7b0] sm:$0xff]
  %v283 = vld [vmem:[%s1 + $0x7b8] sm:$0xff]
  %v284 = vld [vmem:[%s1 + $0x7c0] sm:$0xff]
  %v285 = vld [vmem:[%s1 + $0x7c8] sm:$0xff]
  %v286 = vld [vmem:[%s1 + $0x7d0] sm:$0xff]
  %v287 = vld [vmem:[%s1 + $0x7d8] sm:$0xff]
  %v288 = vld [vmem:[%s1 + $0x7e0] sm:$0xff]
  %v289 = vld [vmem:[%s1 + $0x7e8] sm:$0xff]
  %v290 = vld [vmem:[%s1 + $0x7f0] sm:$0xff]
  %v291 = vld [vmem:[%s1 + $0x7f8] sm:$0xff]
  %v292 = vld [vmem:[%s1 + $0x800] sm:$0xff]
  %v293 = vld [vmem:[%s1 + $0x808] sm:$0xff]
  %v294 = vld [vmem:[%s1 + $0x810] sm:$0xff]
  %v295 = vld [vmem:[%s1 + $0x818] sm:$0xff]
  %v296 = vld [vmem:[%s1 + $0x820] sm:$0xff]
  %v297 = vld [vmem:[%s1 + $0x828] sm:$0xff]
  %v298 = vld [vmem:[%s1 + $0x830] sm:$0xff]
  %v299 = vld [vmem:[%s1 + $0x838] sm:$0xff]
  %v300 = vld [vmem:[%s1 + $0x840] sm:$0xff]
  %v301 = vld [vmem:[%s1 + $0x848] sm:$0xff]
  %v302 = vld [vmem:[%s1 + $0x850] sm:$0xff]
  %v303 = vld [vmem:[%s1 + $0x858] sm:$0xff]
  %v304 = vld [vmem:[%s1 + $0x860] sm:$0xff]
  %v305 = vld [vmem:[%s1 + $0x868] sm:$0xff]
  %v306 = vld [vmem:[%s1 + $0x870] sm:$0xff]
  %v307 = vld [vmem:[%s1 + $0x878] sm:$0xff]
  %v308 = vld [vmem:[%s1 + $0x880] sm:$0xff]
  %v309 = vld [vmem:[%s1 + $0x888] sm:$0xff]
  %v310 = vld [vmem:[%s1 + $0x890] sm:$0xff]
  %v311 = vld [vmem:[%s1 + $0x898] sm:$0xff]
  %v312 = vld [vmem:[%s1 + $0x8a0] sm:$0xff]
  %v313 = vld [vmem:[%s1 + $0x8a8] sm:$0xff]
  %v314 = vld [vmem:[%s1 + $0x8b0] sm:$0xff]
  %v315 = vld [vmem:[%s1 + $0x8b8] sm:$0xff]
  %v316 = vld [vmem:[%s1 + $0x8c0] sm:$0xff]
  %v317 = vld [vmem:[%s1 + $0x8c8] sm:$0xff]
  %v318 = vld [vmem:[%s1 + $0x8d0] sm:$0xff]
  %v319 = vld [vmem:[%s1 + $0x8d8] sm:$0xff]
  %v320 = vld [vmem:[%s1 + $0x8e0] sm:$0xff]
  %v321 = vld [vmem:[%s1 + $0x8e8] sm:$0xff]
  %v322 = vld [vmem:[%s1 + $0x8f0] sm:$0xff]
  %v323 = vld [vmem:[%s1 + $0x8f8] sm:$0xff]
  %v324 = vld [vmem:[%s1 + $0x900] sm:$0xff]
  %v325 = vld [vmem:[%s1 + $0x908] sm:$0xff]
  %v326 = vld [vmem:[%s1 + $0x910] sm:$0xff]
  %v327 = vld [vmem:[%s1 + $0x918] sm:$0xff]
  %v328 = vld [vmem:[%s1 + $0x920] sm:$0xff]
  %v329 = vld [vmem:[%s1 + $0x928] sm:$0xff]
  %v330 = vld [vmem:[%s1 + $0x930] sm:$0xff]
  %v331 = vld [vmem:[%s1 + $0x938] sm:$0xff]
  %v332 = vld [vmem:[%s1 + $0x940] sm:$0xff]
  %v333 = vld [vmem:[%s1 + $0x948] sm:$0xff]
  %v334 = vld [vmem:[%s1 + $0x950] sm:$0xff]
  %v335 = vld [vmem:[%s1 + $0x958] sm:$0xff]
  %v336 = vld [vmem:[%s1 + $0x960] sm:$0xff]
  %v337 = vld [vmem:[%s1 + $0x968] sm:$0xff]
  %v338 = vld [vmem:[%s1 + $0x970] sm:$0xff]
  %v339 = vld [vmem:[%s1 + $0x978] sm:$0xff]
  %v340 = vld [vmem:[%s1 + $0x980] sm:$0xff]
  %v341 = vld [vmem:[%s1 + $0x988] sm:$0xff]
  %v342 = vld [vmem:[%s1 + $0x990] sm:$0xff]
  %v343 = vld [vmem:[%s1 + $0x998] sm:$0xff]
  %v344 = vld [vmem:[%s1 + $0x9a0] sm:$0xff]
  %v345 = vld [vmem:[%s1 + $0x9a8] sm:$0xff]
  %v346 = vld [vmem:[%s1 + $0x9b0] sm:$0xff]
  %v347 = vld [vmem:[%s1 + $0x9b8] sm:$0xff]
  %v348 = vld [vmem:[%s1 + $0x9c0] sm:$0xff]
  %v349 = vld [vmem:[%s1 + $0x9c8] sm:$0xff]
  %v350 = vld [vmem:[%s1 + $0x9d0] sm:$0xff]
  %v351 = vld [vmem:[%s1 + $0x9d8] sm:$0xff]
  %v352 = vld [vmem:[%s1 + $0x9e0] sm:$0xff]
  %v353 = vld [vmem:[%s1 + $0x9e8] sm:$0xff]
  %v354 = vld [vmem:[%s1 + $0x9f0] sm:$0xff]
  %v355 = vld [vmem:[%s1 + $0x9f8] sm:$0xff]
  %v356 = vld [vmem:[%s1 + $0xa00] sm:$0xff]
  %v357 = vld [vmem:[%s1 + $0xa08] sm:$0xff]
  %v358 = vld [vmem:[%s1 + $0xa10] sm:$0xff]
  %v359 = vld [vmem:[%s1 + $0xa18] sm:$0xff]
  %v360 = vld [vmem:[%s1 + $0xa20] sm:$0xff]
  %v361 = vld [vmem:[%s1 + $0xa28] sm:$0xff]
  %v362 = vld [vmem:[%s1 + $0xa30] sm:$0xff]
  %v363 = vld [vmem:[%s1 + $0xa38] sm:$0xff]
  %v364 = vld [vmem:[%s1 + $0xa40] sm:$0xff]
  %v365 = vld [vmem:[%s1 + $0xa48] sm:$0xff]
  %v366 = vld [vmem:[%s1 + $0xa50] sm:$0xff]
  %v367 = vld [vmem:[%s1 + $0xa58] sm:$0xff]
  %v368 = vld [vmem:[%s1 + $0xa60] sm:$0xff]
  %v369 = vld [vmem:[%s1 + $0xa68] sm:$0xff]
  %v370 = vld [vmem:[%s1 + $0xa70] sm:$0xff]
  %v371 = vld [vmem:[%s1 + $0xa78] sm:$0xff]
  %v372 = vld [vmem:[%s1 + $0xa80] sm:$0xff]
  %v373 = vld [vmem:[%s1 + $0xa88] sm:$0xff]
  %v374 = vld [vmem:[%s1 + $0xa90] sm:$0xff]
  %v375 = vld [vmem:[%s1 + $0xa98] sm:$0xff]
  %v376 = vld [vmem:[%s1 + $0xaa0] sm:$0xff]
  %v377 = vld [vmem:[%s1 + $0xaa8] sm:$0xff]
  %v378 = vld [vmem:[%s1 + $0xab0] sm:$0xff]
  %v379 = vld [vmem:[%s1 + $0xab8] sm:$0xff]
  %v380 = vld [vmem:[%s1 + $0xac0] sm:$0xff]
  %v381 = vld [vmem:[%s1 + $0xac8] sm:$0xff]
  %v382 = vld [vmem:[%s1 + $0xad0] sm:$0xff]
  %v383 = vld [vmem:[%s1 + $0xad8] sm:$0xff]
  %v384 = vld [vmem:[%s1 + $0xae0] sm:$0xff]
  %v385 = vld [vmem:[%s1 + $0xae8] sm:$0xff]
  %v386 = vld [vmem:[%s1 + $0xaf0] sm:$0xff]
  %v387 = vld [vmem:[%s1 + $0xaf8] sm:$0xff]
  %v388 = vld [vmem:[%s1 + $0xb00] sm:$0xff]
  %v389 = vld [vmem:[%s1 + $0xb08] sm:$0xff]
  %v390 = vld [vmem:[%s1 + $0xb10] sm:$0xff]
  %v391 = vld [vmem:[%s1 + $0xb18] sm:$0xff]
  %v392 = vld [vmem:[%s1 + $0xb20] sm:$0xff]
  %v393 = vld [vmem:[%s1 + $0xb28] sm:$0xff]
  %v394 = vld [vmem:[%s1 + $0xb30] sm:$0xff]
  %v395 = vld [vmem:[%s1 + $0xb38] sm:$0xff]
  %v396 = vld [vmem:[%s1 + $0xb40] sm:$0xff]
  %v397 = vld [vmem:[%s1 + $0xb48] sm:$0xff]
  %v398 = vld [vmem:[%s1 + $0xb50] sm:$0xff]
  %v399 = vld [vmem:[%s1 + $0xb58] sm:$0xff]
  %v400 = vld [vmem:[%s1 + $0xb60] sm:$0xff]
  %v401 = vld [vmem:[%s1 + $0xb68] sm:$0xff]
  %v402 = vld [vmem:[%s1 + $0xb70] sm:$0xff]
  %v403 = vld [vmem:[%s1 + $0xb78] sm:$0xff]
  %v404 = vld [vmem:[%s1 + $0xb80] sm:$0xff]
  %v405 = vld [vmem:[%s1 + $0xb88] sm:$0xff]
  %v406 = vld [vmem:[%s1 + $0xb90] sm:$0xff]
  %v407 = vld [vmem:[%s1 + $0xb98] sm:$0xff]
  %v408 = vld [vmem:[%s1 + $0xba0] sm:$0xff]
  %v409 = vld [vmem:[%s1 + $0xba8] sm:$0xff]
  %v410 = vld [vmem:[%s1 + $0xbb0] sm:$0xff]
  %v411 = vld [vmem:[%s1 + $0xbb8] sm:$0xff]
  %v412 = vld [vmem:[%s1 + $0xbc0] sm:$0xff]
  %v413 = vld [vmem:[%s1 + $0xbc8] sm:$0xff]
  %v414 = vld [vmem:[%s1 + $0xbd0] sm:$0xff]
  %v415 = vld [vmem:[%s1 + $0xbd8] sm:$0xff]
  %v416 = vld [vmem:[%s1 + $0xbe0] sm:$0xff]
  %v417 = vld [vmem:[%s1 + $0xbe8] sm:$0xff]
  %v418 = vld [vmem:[%s1 + $0xbf0] sm:$0xff]
  %v419 = vld [vmem:[%s1 + $0xbf8] sm:$0xff]
  %v420 = vld [vmem:[%s2] sm:$0xf]
  %v422 = vperm.slane %v420, 0
  %v423 = vperm.slane %v420, 1
  %v424 = vperm.slane %v420, 2
  %v425 = vperm.slane %v420, 3
  %432 = vst [vmem:[#allocation1] ss:$4 sm:$0xff] %v34
  %s433 = scalar_lea.vmem [#allocation1], 32
  %434 = vst [vmem:[%s433] ss:$4 sm:$0xff] %v35
  %v435 = vld.sshfl [vmem:[#allocation1] sm:$0xff pattern:$0x73625140]
  %v436 = vld.sshfl [vmem:[#allocation1 + $0x8] sm:$0xff pattern:$0x73625140]
  %v437 = vld.sshfl [vmem:[#allocation1 + $0x10] sm:$0xff pattern:$0x73625140]
  %v438 = vld.sshfl [vmem:[#allocation1 + $0x18] sm:$0xff pattern:$0x73625140]
  %v439 = vld.sshfl [vmem:[#allocation1 + $0x20] sm:$0xff pattern:$0x73625140]
  %v440 = vld.sshfl [vmem:[#allocation1 + $0x28] sm:$0xff pattern:$0x73625140]
  %447 = vmatpush.msra.mxu0 %v96
  %448 = vmatpush.msra.mxu0 %v92
  %449 = vmatpush.msra.mxu0 %v88
  %450 = vmatpush.msra.mxu0 %v84
  %451 = vmatpush.msra.mxu0 %v80
  %452 = vmatpush.msra.mxu0 %v76
  %453 = vmatpush.msra.mxu0 %v72
  %454 = vmatpush.msra.mxu0 %v68
  %455 = vmatpush.msra.mxu0 %v64
  %456 = vmatpush.msra.mxu0 %v60
  %457 = vmatpush.msra.mxu0 %v56
  %458 = vmatpush.msra.mxu0 %v52
  %459 = vmatpush.msra.mxu0 %v48
  %460 = vmatpush.msra.mxu0 %v44
  %461 = vmatpush.msra.mxu0 %v40
  %462 = vmatpush.msra.mxu0 %v36
  %463 = vmatmul.f32.gmra.mxu0 %v435
  %v464 = vpop.f32.mrf.mxu0
  %v465 = vadd.f32 %v422, %v464
  %466 = vdwg.mxu0
  %467 = vmatpush.msra.mxu0 %v160
  %468 = vmatpush.msra.mxu0 %v156
  %469 = vmatpush.msra.mxu0 %v152
  %470 = vmatpush.msra.mxu0 %v148
  %471 = vmatpush.msra.mxu0 %v144
  %472 = vmatpush.msra.mxu0 %v140
  %473 = vmatpush.msra.mxu0 %v136
  %474 = vmatpush.msra.mxu0 %v132
  %475 = vmatpush.msra.mxu0 %v128
  %476 = vmatpush.msra.mxu0 %v124
  %477 = vmatpush.msra.mxu0 %v120
  %478 = vmatpush.msra.mxu0 %v116
  %479 = vmatpush.msra.mxu0 %v112
  %480 = vmatpush.msra.mxu0 %v108
  %481 = vmatpush.msra.mxu0 %v104
  %482 = vmatpush.msra.mxu0 %v100
  %483 = vmatmul.f32.gmra.mxu0 %v436
  %v484 = vpop.f32.mrf.mxu0
  %v485 = vadd.f32 %v465, %v484
  %486 = vdwg.mxu0
  %487 = vmatpush.msra.mxu0 %v224
  %488 = vmatpush.msra.mxu0 %v220
  %489 = vmatpush.msra.mxu0 %v216
  %490 = vmatpush.msra.mxu0 %v212
  %491 = vmatpush.msra.mxu0 %v208
  %492 = vmatpush.msra.mxu0 %v204
  %493 = vmatpush.msra.mxu0 %v200
  %494 = vmatpush.msra.mxu0 %v196
  %495 = vmatpush.msra.mxu0 %v192
  %496 = vmatpush.msra.mxu0 %v188
  %497 = vmatpush.msra.mxu0 %v184
  %498 = vmatpush.msra.mxu0 %v180
  %499 = vmatpush.msra.mxu0 %v176
  %500 = vmatpush.msra.mxu0 %v172
  %501 = vmatpush.msra.mxu0 %v168
  %502 = vmatpush.msra.mxu0 %v164
  %503 = vmatmul.f32.gmra.mxu0 %v437
  %v504 = vpop.f32.mrf.mxu0
  %v505 = vadd.f32 %v485, %v504
  %506 = vdwg.mxu0
  %507 = vmatpush.msra.mxu0 %v288
  %508 = vmatpush.msra.mxu0 %v284
  %509 = vmatpush.msra.mxu0 %v280
  %510 = vmatpush.msra.mxu0 %v276
  %511 = vmatpush.msra.mxu0 %v272
  %512 = vmatpush.msra.mxu0 %v268
  %513 = vmatpush.msra.mxu0 %v264
  %514 = vmatpush.msra.mxu0 %v260
  %515 = vmatpush.msra.mxu0 %v256
  %516 = vmatpush.msra.mxu0 %v252
  %517 = vmatpush.msra.mxu0 %v248
  %518 = vmatpush.msra.mxu0 %v244
  %519 = vmatpush.msra.mxu0 %v240
  %520 = vmatpush.msra.mxu0 %v236
  %521 = vmatpush.msra.mxu0 %v232
  %522 = vmatpush.msra.mxu0 %v228
  %523 = vmatmul.f32.gmra.mxu0 %v438
  %v524 = vpop.f32.mrf.mxu0
  %v525 = vadd.f32 %v505, %v524
  %526 = vdwg.mxu0
  %527 = vmatpush.msra.mxu0 %v352
  %528 = vmatpush.msra.mxu0 %v348
  %529 = vmatpush.msra.mxu0 %v344
  %530 = vmatpush.msra.mxu0 %v340
  %531 = vmatpush.msra.mxu0 %v336
  %532 = vmatpush.msra.mxu0 %v332
  %533 = vmatpush.msra.mxu0 %v328
  %534 = vmatpush.msra.mxu0 %v324
  %535 = vmatpush.msra.mxu0 %v320
  %536 = vmatpush.msra.mxu0 %v316
  %537 = vmatpush.msra.mxu0 %v312
  %538 = vmatpush.msra.mxu0 %v308
  %539 = vmatpush.msra.mxu0 %v304
  %540 = vmatpush.msra.mxu0 %v300
  %541 = vmatpush.msra.mxu0 %v296
  %542 = vmatpush.msra.mxu0 %v292
  %543 = vmatmul.f32.gmra.mxu0 %v439
  %v544 = vpop.f32.mrf.mxu0
  %v545 = vadd.f32 %v525, %v544
  %546 = vdwg.mxu0
  %547 = vmatpush.msra.mxu0 %v416
  %548 = vmatpush.msra.mxu0 %v412
  %549 = vmatpush.msra.mxu0 %v408
  %550 = vmatpush.msra.mxu0 %v404
  %551 = vmatpush.msra.mxu0 %v400
  %552 = vmatpush.msra.mxu0 %v396
  %553 = vmatpush.msra.mxu0 %v392
  %554 = vmatpush.msra.mxu0 %v388
  %555 = vmatpush.msra.mxu0 %v384
  %556 = vmatpush.msra.mxu0 %v380
  %557 = vmatpush.msra.mxu0 %v376
  %558 = vmatpush.msra.mxu0 %v372
  %559 = vmatpush.msra.mxu0 %v368
  %560 = vmatpush.msra.mxu0 %v364
  %561 = vmatpush.msra.mxu0 %v360
  %562 = vmatpush.msra.mxu0 %v356
  %563 = vmatmul.f32.gmra.mxu0 %v440
  %v564 = vpop.f32.mrf.mxu0
  %v565 = vadd.f32 %v545, %v564
  %566 = vdwg.mxu0
  %567 = vmatpush.msra.mxu0 %v97
  %568 = vmatpush.msra.mxu0 %v93
  %569 = vmatpush.msra.mxu0 %v89
  %570 = vmatpush.msra.mxu0 %v85
  %571 = vmatpush.msra.mxu0 %v81
  %572 = vmatpush.msra.mxu0 %v77
  %573 = vmatpush.msra.mxu0 %v73
  %574 = vmatpush.msra.mxu0 %v69
  %575 = vmatpush.msra.mxu0 %v65
  %576 = vmatpush.msra.mxu0 %v61
  %577 = vmatpush.msra.mxu0 %v57
  %578 = vmatpush.msra.mxu0 %v53
  %579 = vmatpush.msra.mxu0 %v49
  %580 = vmatpush.msra.mxu0 %v45
  %581 = vmatpush.msra.mxu0 %v41
  %582 = vmatpush.msra.mxu0 %v37
  %583 = vmatmul.f32.gmra.mxu0 %v435
  %v584 = vpop.f32.mrf.mxu0
  %v585 = vadd.f32 %v423, %v584
  %586 = vdwg.mxu0
  %587 = vmatpush.msra.mxu0 %v161
  %588 = vmatpush.msra.mxu0 %v157
  %589 = vmatpush.msra.mxu0 %v153
  %590 = vmatpush.msra.mxu0 %v149
  %591 = vmatpush.msra.mxu0 %v145
  %592 = vmatpush.msra.mxu0 %v141
  %593 = vmatpush.msra.mxu0 %v137
  %594 = vmatpush.msra.mxu0 %v133
  %595 = vmatpush.msra.mxu0 %v129
  %596 = vmatpush.msra.mxu0 %v125
  %597 = vmatpush.msra.mxu0 %v121
  %598 = vmatpush.msra.mxu0 %v117
  %599 = vmatpush.msra.mxu0 %v113
  %600 = vmatpush.msra.mxu0 %v109
  %601 = vmatpush.msra.mxu0 %v105
  %602 = vmatpush.msra.mxu0 %v101
  %603 = vmatmul.f32.gmra.mxu0 %v436
  %v604 = vpop.f32.mrf.mxu0
  %v605 = vadd.f32 %v585, %v604
  %606 = vdwg.mxu0
  %607 = vmatpush.msra.mxu0 %v225
  %608 = vmatpush.msra.mxu0 %v221
  %609 = vmatpush.msra.mxu0 %v217
  %610 = vmatpush.msra.mxu0 %v213
  %611 = vmatpush.msra.mxu0 %v209
  %612 = vmatpush.msra.mxu0 %v205
  %613 = vmatpush.msra.mxu0 %v201
  %614 = vmatpush.msra.mxu0 %v197
  %615 = vmatpush.msra.mxu0 %v193
  %616 = vmatpush.msra.mxu0 %v189
  %617 = vmatpush.msra.mxu0 %v185
  %618 = vmatpush.msra.mxu0 %v181
  %619 = vmatpush.msra.mxu0 %v177
  %620 = vmatpush.msra.mxu0 %v173
  %621 = vmatpush.msra.mxu0 %v169
  %622 = vmatpush.msra.mxu0 %v165
  %623 = vmatmul.f32.gmra.mxu0 %v437
  %v624 = vpop.f32.mrf.mxu0
  %v625 = vadd.f32 %v605, %v624
  %626 = vdwg.mxu0
  %627 = vmatpush.msra.mxu0 %v289
  %628 = vmatpush.msra.mxu0 %v285
  %629 = vmatpush.msra.mxu0 %v281
  %630 = vmatpush.msra.mxu0 %v277
  %631 = vmatpush.msra.mxu0 %v273
  %632 = vmatpush.msra.mxu0 %v269
  %633 = vmatpush.msra.mxu0 %v265
  %634 = vmatpush.msra.mxu0 %v261
  %635 = vmatpush.msra.mxu0 %v257
  %636 = vmatpush.msra.mxu0 %v253
  %637 = vmatpush.msra.mxu0 %v249
  %638 = vmatpush.msra.mxu0 %v245
  %639 = vmatpush.msra.mxu0 %v241
  %640 = vmatpush.msra.mxu0 %v237
  %641 = vmatpush.msra.mxu0 %v233
  %642 = vmatpush.msra.mxu0 %v229
  %643 = vmatmul.f32.gmra.mxu0 %v438
  %v644 = vpop.f32.mrf.mxu0
  %v645 = vadd.f32 %v625, %v644
  %646 = vdwg.mxu0
  %647 = vmatpush.msra.mxu0 %v353
  %648 = vmatpush.msra.mxu0 %v349
  %649 = vmatpush.msra.mxu0 %v345
  %650 = vmatpush.msra.mxu0 %v341
  %651 = vmatpush.msra.mxu0 %v337
  %652 = vmatpush.msra.mxu0 %v333
  %653 = vmatpush.msra.mxu0 %v329
  %654 = vmatpush.msra.mxu0 %v325
  %655 = vmatpush.msra.mxu0 %v321
  %656 = vmatpush.msra.mxu0 %v317
  %657 = vmatpush.msra.mxu0 %v313
  %658 = vmatpush.msra.mxu0 %v309
  %659 = vmatpush.msra.mxu0 %v305
  %660 = vmatpush.msra.mxu0 %v301
  %661 = vmatpush.msra.mxu0 %v297
  %662 = vmatpush.msra.mxu0 %v293
  %663 = vmatmul.f32.gmra.mxu0 %v439
  %v664 = vpop.f32.mrf.mxu0
  %v665 = vadd.f32 %v645, %v664
  %666 = vdwg.mxu0
  %667 = vmatpush.msra.mxu0 %v417
  %668 = vmatpush.msra.mxu0 %v413
  %669 = vmatpush.msra.mxu0 %v409
  %670 = vmatpush.msra.mxu0 %v405
  %671 = vmatpush.msra.mxu0 %v401
  %672 = vmatpush.msra.mxu0 %v397
  %673 = vmatpush.msra.mxu0 %v393
  %674 = vmatpush.msra.mxu0 %v389
  %675 = vmatpush.msra.mxu0 %v385
  %676 = vmatpush.msra.mxu0 %v381
  %677 = vmatpush.msra.mxu0 %v377
  %678 = vmatpush.msra.mxu0 %v373
  %679 = vmatpush.msra.mxu0 %v369
  %680 = vmatpush.msra.mxu0 %v365
  %681 = vmatpush.msra.mxu0 %v361
  %682 = vmatpush.msra.mxu0 %v357
  %683 = vmatmul.f32.gmra.mxu0 %v440
  %v684 = vpop.f32.mrf.mxu0
  %v685 = vadd.f32 %v665, %v684
  %686 = vdwg.mxu0
  %687 = vmatpush.msra.mxu0 %v98
  %688 = vmatpush.msra.mxu0 %v94
  %689 = vmatpush.msra.mxu0 %v90
  %690 = vmatpush.msra.mxu0 %v86
  %691 = vmatpush.msra.mxu0 %v82
  %692 = vmatpush.msra.mxu0 %v78
  %693 = vmatpush.msra.mxu0 %v74
  %694 = vmatpush.msra.mxu0 %v70
  %695 = vmatpush.msra.mxu0 %v66
  %696 = vmatpush.msra.mxu0 %v62
  %697 = vmatpush.msra.mxu0 %v58
  %698 = vmatpush.msra.mxu0 %v54
  %699 = vmatpush.msra.mxu0 %v50
  %700 = vmatpush.msra.mxu0 %v46
  %701 = vmatpush.msra.mxu0 %v42
  %702 = vmatpush.msra.mxu0 %v38
  %703 = vmatmul.f32.gmra.mxu0 %v435
  %v704 = vpop.f32.mrf.mxu0
  %v705 = vadd.f32 %v424, %v704
  %706 = vdwg.mxu0
  %707 = vmatpush.msra.mxu0 %v162
  %708 = vmatpush.msra.mxu0 %v158
  %709 = vmatpush.msra.mxu0 %v154
  %710 = vmatpush.msra.mxu0 %v150
  %711 = vmatpush.msra.mxu0 %v146
  %712 = vmatpush.msra.mxu0 %v142
  %713 = vmatpush.msra.mxu0 %v138
  %714 = vmatpush.msra.mxu0 %v134
  %715 = vmatpush.msra.mxu0 %v130
  %716 = vmatpush.msra.mxu0 %v126
  %717 = vmatpush.msra.mxu0 %v122
  %718 = vmatpush.msra.mxu0 %v118
  %719 = vmatpush.msra.mxu0 %v114
  %720 = vmatpush.msra.mxu0 %v110
  %721 = vmatpush.msra.mxu0 %v106
  %722 = vmatpush.msra.mxu0 %v102
  %723 = vmatmul.f32.gmra.mxu0 %v436
  %v724 = vpop.f32.mrf.mxu0
  %v725 = vadd.f32 %v705, %v724
  %726 = vdwg.mxu0
  %727 = vmatpush.msra.mxu0 %v226
  %728 = vmatpush.msra.mxu0 %v222
  %729 = vmatpush.msra.mxu0 %v218
  %730 = vmatpush.msra.mxu0 %v214
  %731 = vmatpush.msra.mxu0 %v210
  %732 = vmatpush.msra.mxu0 %v206
  %733 = vmatpush.msra.mxu0 %v202
  %734 = vmatpush.msra.mxu0 %v198
  %735 = vmatpush.msra.mxu0 %v194
  %736 = vmatpush.msra.mxu0 %v190
  %737 = vmatpush.msra.mxu0 %v186
  %738 = vmatpush.msra.mxu0 %v182
  %739 = vmatpush.msra.mxu0 %v178
  %740 = vmatpush.msra.mxu0 %v174
  %741 = vmatpush.msra.mxu0 %v170
  %742 = vmatpush.msra.mxu0 %v166
  %743 = vmatmul.f32.gmra.mxu0 %v437
  %v744 = vpop.f32.mrf.mxu0
  %v745 = vadd.f32 %v725, %v744
  %746 = vdwg.mxu0
  %747 = vmatpush.msra.mxu0 %v290
  %748 = vmatpush.msra.mxu0 %v286
  %749 = vmatpush.msra.mxu0 %v282
  %750 = vmatpush.msra.mxu0 %v278
  %751 = vmatpush.msra.mxu0 %v274
  %752 = vmatpush.msra.mxu0 %v270
  %753 = vmatpush.msra.mxu0 %v266
  %754 = vmatpush.msra.mxu0 %v262
  %755 = vmatpush.msra.mxu0 %v258
  %756 = vmatpush.msra.mxu0 %v254
  %757 = vmatpush.msra.mxu0 %v250
  %758 = vmatpush.msra.mxu0 %v246
  %759 = vmatpush.msra.mxu0 %v242
  %760 = vmatpush.msra.mxu0 %v238
  %761 = vmatpush.msra.mxu0 %v234
  %762 = vmatpush.msra.mxu0 %v230
  %763 = vmatmul.f32.gmra.mxu0 %v438
  %v764 = vpop.f32.mrf.mxu0
  %v765 = vadd.f32 %v745, %v764
  %766 = vdwg.mxu0
  %767 = vmatpush.msra.mxu0 %v354
  %768 = vmatpush.msra.mxu0 %v350
  %769 = vmatpush.msra.mxu0 %v346
  %770 = vmatpush.msra.mxu0 %v342
  %771 = vmatpush.msra.mxu0 %v338
  %772 = vmatpush.msra.mxu0 %v334
  %773 = vmatpush.msra.mxu0 %v330
  %774 = vmatpush.msra.mxu0 %v326
  %775 = vmatpush.msra.mxu0 %v322
  %776 = vmatpush.msra.mxu0 %v318
  %777 = vmatpush.msra.mxu0 %v314
  %778 = vmatpush.msra.mxu0 %v310
  %779 = vmatpush.msra.mxu0 %v306
  %780 = vmatpush.msra.mxu0 %v302
  %781 = vmatpush.msra.mxu0 %v298
  %782 = vmatpush.msra.mxu0 %v294
  %783 = vmatmul.f32.gmra.mxu0 %v439
  %v784 = vpop.f32.mrf.mxu0
  %v785 = vadd.f32 %v765, %v784
  %786 = vdwg.mxu0
  %787 = vmatpush.msra.mxu0 %v418
  %788 = vmatpush.msra.mxu0 %v414
  %789 = vmatpush.msra.mxu0 %v410
  %790 = vmatpush.msra.mxu0 %v406
  %791 = vmatpush.msra.mxu0 %v402
  %792 = vmatpush.msra.mxu0 %v398
  %793 = vmatpush.msra.mxu0 %v394
  %794 = vmatpush.msra.mxu0 %v390
  %795 = vmatpush.msra.mxu0 %v386
  %796 = vmatpush.msra.mxu0 %v382
  %797 = vmatpush.msra.mxu0 %v378
  %798 = vmatpush.msra.mxu0 %v374
  %799 = vmatpush.msra.mxu0 %v370
  %800 = vmatpush.msra.mxu0 %v366
  %801 = vmatpush.msra.mxu0 %v362
  %802 = vmatpush.msra.mxu0 %v358
  %803 = vmatmul.f32.gmra.mxu0 %v440
  %v804 = vpop.f32.mrf.mxu0
  %v805 = vadd.f32 %v785, %v804
  %806 = vdwg.mxu0
  %807 = vmatpush.msra.mxu0 %v99
  %808 = vmatpush.msra.mxu0 %v95
  %809 = vmatpush.msra.mxu0 %v91
  %810 = vmatpush.msra.mxu0 %v87
  %811 = vmatpush.msra.mxu0 %v83
  %812 = vmatpush.msra.mxu0 %v79
  %813 = vmatpush.msra.mxu0 %v75
  %814 = vmatpush.msra.mxu0 %v71
  %815 = vmatpush.msra.mxu0 %v67
  %816 = vmatpush.msra.mxu0 %v63
  %817 = vmatpush.msra.mxu0 %v59
  %818 = vmatpush.msra.mxu0 %v55
  %819 = vmatpush.msra.mxu0 %v51
  %820 = vmatpush.msra.mxu0 %v47
  %821 = vmatpush.msra.mxu0 %v43
  %822 = vmatpush.msra.mxu0 %v39
  %823 = vmatmul.f32.gmra.mxu0 %v435
  %v824 = vpop.f32.mrf.mxu0
  %v825 = vadd.f32 %v425, %v824
  %826 = vdwg.mxu0
  %827 = vmatpush.msra.mxu0 %v163
  %828 = vmatpush.msra.mxu0 %v159
  %829 = vmatpush.msra.mxu0 %v155
  %830 = vmatpush.msra.mxu0 %v151
  %831 = vmatpush.msra.mxu0 %v147
  %832 = vmatpush.msra.mxu0 %v143
  %833 = vmatpush.msra.mxu0 %v139
  %834 = vmatpush.msra.mxu0 %v135
  %835 = vmatpush.msra.mxu0 %v131
  %836 = vmatpush.msra.mxu0 %v127
  %837 = vmatpush.msra.mxu0 %v123
  %838 = vmatpush.msra.mxu0 %v119
  %839 = vmatpush.msra.mxu0 %v115
  %840 = vmatpush.msra.mxu0 %v111
  %841 = vmatpush.msra.mxu0 %v107
  %842 = vmatpush.msra.mxu0 %v103
  %843 = vmatmul.f32.gmra.mxu0 %v436
  %v844 = vpop.f32.mrf.mxu0
  %v845 = vadd.f32 %v825, %v844
  %846 = vdwg.mxu0
  %847 = vmatpush.msra.mxu0 %v227
  %848 = vmatpush.msra.mxu0 %v223
  %849 = vmatpush.msra.mxu0 %v219
  %850 = vmatpush.msra.mxu0 %v215
  %851 = vmatpush.msra.mxu0 %v211
  %852 = vmatpush.msra.mxu0 %v207
  %853 = vmatpush.msra.mxu0 %v203
  %854 = vmatpush.msra.mxu0 %v199
  %855 = vmatpush.msra.mxu0 %v195
  %856 = vmatpush.msra.mxu0 %v191
  %857 = vmatpush.msra.mxu0 %v187
  %858 = vmatpush.msra.mxu0 %v183
  %859 = vmatpush.msra.mxu0 %v179
  %860 = vmatpush.msra.mxu0 %v175
  %861 = vmatpush.msra.mxu0 %v171
  %862 = vmatpush.msra.mxu0 %v167
  %863 = vmatmul.f32.gmra.mxu0 %v437
  %v864 = vpop.f32.mrf.mxu0
  %v865 = vadd.f32 %v845, %v864
  %866 = vdwg.mxu0
  %867 = vmatpush.msra.mxu0 %v291
  %868 = vmatpush.msra.mxu0 %v287
  %869 = vmatpush.msra.mxu0 %v283
  %870 = vmatpush.msra.mxu0 %v279
  %871 = vmatpush.msra.mxu0 %v275
  %872 = vmatpush.msra.mxu0 %v271
  %873 = vmatpush.msra.mxu0 %v267
  %874 = vmatpush.msra.mxu0 %v263
  %875 = vmatpush.msra.mxu0 %v259
  %876 = vmatpush.msra.mxu0 %v255
  %877 = vmatpush.msra.mxu0 %v251
  %878 = vmatpush.msra.mxu0 %v247
  %879 = vmatpush.msra.mxu0 %v243
  %880 = vmatpush.msra.mxu0 %v239
  %881 = vmatpush.msra.mxu0 %v235
  %882 = vmatpush.msra.mxu0 %v231
  %883 = vmatmul.f32.gmra.mxu0 %v438
  %v884 = vpop.f32.mrf.mxu0
  %v885 = vadd.f32 %v865, %v884
  %886 = vdwg.mxu0
  %887 = vmatpush.msra.mxu0 %v355
  %888 = vmatpush.msra.mxu0 %v351
  %889 = vmatpush.msra.mxu0 %v347
  %890 = vmatpush.msra.mxu0 %v343
  %891 = vmatpush.msra.mxu0 %v339
  %892 = vmatpush.msra.mxu0 %v335
  %893 = vmatpush.msra.mxu0 %v331
  %894 = vmatpush.msra.mxu0 %v327
  %895 = vmatpush.msra.mxu0 %v323
  %896 = vmatpush.msra.mxu0 %v319
  %897 = vmatpush.msra.mxu0 %v315
  %898 = vmatpush.msra.mxu0 %v311
  %899 = vmatpush.msra.mxu0 %v307
  %900 = vmatpush.msra.mxu0 %v303
  %901 = vmatpush.msra.mxu0 %v299
  %902 = vmatpush.msra.mxu0 %v295
  %903 = vmatmul.f32.gmra.mxu0 %v439
  %v904 = vpop.f32.mrf.mxu0
  %v905 = vadd.f32 %v885, %v904
  %906 = vdwg.mxu0
  %907 = vmatpush.msra.mxu0 %v419
  %908 = vmatpush.msra.mxu0 %v415
  %909 = vmatpush.msra.mxu0 %v411
  %910 = vmatpush.msra.mxu0 %v407
  %911 = vmatpush.msra.mxu0 %v403
  %912 = vmatpush.msra.mxu0 %v399
  %913 = vmatpush.msra.mxu0 %v395
  %914 = vmatpush.msra.mxu0 %v391
  %915 = vmatpush.msra.mxu0 %v387
  %916 = vmatpush.msra.mxu0 %v383
  %917 = vmatpush.msra.mxu0 %v379
  %918 = vmatpush.msra.mxu0 %v375
  %919 = vmatpush.msra.mxu0 %v371
  %920 = vmatpush.msra.mxu0 %v367
  %921 = vmatpush.msra.mxu0 %v363
  %922 = vmatpush.msra.mxu0 %v359
  %923 = vmatmul.f32.gmra.mxu0 %v440
  %v924 = vpop.f32.mrf.mxu0
  %v925 = vadd.f32 %v905, %v924
  %926 = vdwg.mxu0
  %vm927 = vcmp.gt.f32.partialorder %v565, 0.0
  %vm928 = vcmp.gt.f32.partialorder %v685, 0.0
  %vm929 = vcmp.gt.f32.partialorder %v805, 0.0
  %vm930 = vcmp.gt.f32.partialorder %v925, 0.0
  %v931 = vmul.f32 %v565, 0.01
  %v932 = vmul.f32 %v685, 0.01
  %v933 = vmul.f32 %v805, 0.01
  %v934 = vmul.f32 %v925, 0.01
  %v935 = vsel %vm927, %v565, %v931
  %v936 = vsel %vm928, %v685, %v932
  %v937 = vsel %vm929, %v805, %v933
  %v938 = vsel %vm930, %v925, %v934
  %v939 = vld [vmem:[%s3] sm:$0xff]
  %v940 = vld [vmem:[%s3 + $0x8] sm:$0xff]
  %v941 = vld [vmem:[%s3 + $0x10] sm:$0xff]
  %v942 = vld [vmem:[%s3 + $0x18] sm:$0xff]
  %v943 = vld [vmem:[%s3 + $0x20] sm:$0xff]
  %v944 = vld [vmem:[%s3 + $0x28] sm:$0xff]
  %v945 = vld [vmem:[%s3 + $0x30] sm:$0xff]
  %v946 = vld [vmem:[%s3 + $0x38] sm:$0xff]
  %v947 = vld [vmem:[%s3 + $0x40] sm:$0xff]
  %v948 = vld [vmem:[%s3 + $0x48] sm:$0xff]
  %v949 = vld [vmem:[%s3 + $0x50] sm:$0xff]
  %v950 = vld [vmem:[%s3 + $0x58] sm:$0xff]
  %v951 = vld [vmem:[%s3 + $0x60] sm:$0xff]
  %v952 = vld [vmem:[%s3 + $0x68] sm:$0xff]
  %v953 = vld [vmem:[%s3 + $0x70] sm:$0xff]
  %v954 = vld [vmem:[%s3 + $0x78] sm:$0xff]
  %v955 = vld [vmem:[%s3 + $0x80] sm:$0xff]
  %v956 = vld [vmem:[%s3 + $0x88] sm:$0xff]
  %v957 = vld [vmem:[%s3 + $0x90] sm:$0xff]
  %v958 = vld [vmem:[%s3 + $0x98] sm:$0xff]
  %v959 = vld [vmem:[%s3 + $0xa0] sm:$0xff]
  %v960 = vld [vmem:[%s3 + $0xa8] sm:$0xff]
  %v961 = vld [vmem:[%s3 + $0xb0] sm:$0xff]
  %v962 = vld [vmem:[%s3 + $0xb8] sm:$0xff]
  %v963 = vld [vmem:[%s3 + $0xc0] sm:$0xff]
  %v964 = vld [vmem:[%s3 + $0xc8] sm:$0xff]
  %v965 = vld [vmem:[%s3 + $0xd0] sm:$0xff]
  %v966 = vld [vmem:[%s3 + $0xd8] sm:$0xff]
  %v967 = vld [vmem:[%s3 + $0xe0] sm:$0xff]
  %v968 = vld [vmem:[%s3 + $0xe8] sm:$0xff]
  %v969 = vld [vmem:[%s3 + $0xf0] sm:$0xff]
  %v970 = vld [vmem:[%s3 + $0xf8] sm:$0xff]
  %v971 = vld [vmem:[%s3 + $0x100] sm:$0xff]
  %v972 = vld [vmem:[%s3 + $0x108] sm:$0xff]
  %v973 = vld [vmem:[%s3 + $0x110] sm:$0xff]
  %v974 = vld [vmem:[%s3 + $0x118] sm:$0xff]
  %v975 = vld [vmem:[%s3 + $0x120] sm:$0xff]
  %v976 = vld [vmem:[%s3 + $0x128] sm:$0xff]
  %v977 = vld [vmem:[%s3 + $0x130] sm:$0xff]
  %v978 = vld [vmem:[%s3 + $0x138] sm:$0xff]
  %v979 = vld [vmem:[%s3 + $0x140] sm:$0xff]
  %v980 = vld [vmem:[%s3 + $0x148] sm:$0xff]
  %v981 = vld [vmem:[%s3 + $0x150] sm:$0xff]
  %v982 = vld [vmem:[%s3 + $0x158] sm:$0xff]
  %v983 = vld [vmem:[%s3 + $0x160] sm:$0xff]
  %v984 = vld [vmem:[%s3 + $0x168] sm:$0xff]
  %v985 = vld [vmem:[%s3 + $0x170] sm:$0xff]
  %v986 = vld [vmem:[%s3 + $0x178] sm:$0xff]
  %v987 = vld [vmem:[%s3 + $0x180] sm:$0xff]
  %v988 = vld [vmem:[%s3 + $0x188] sm:$0xff]
  %v989 = vld [vmem:[%s3 + $0x190] sm:$0xff]
  %v990 = vld [vmem:[%s3 + $0x198] sm:$0xff]
  %v991 = vld [vmem:[%s3 + $0x1a0] sm:$0xff]
  %v992 = vld [vmem:[%s3 + $0x1a8] sm:$0xff]
  %v993 = vld [vmem:[%s3 + $0x1b0] sm:$0xff]
  %v994 = vld [vmem:[%s3 + $0x1b8] sm:$0xff]
  %v995 = vld [vmem:[%s3 + $0x1c0] sm:$0xff]
  %v996 = vld [vmem:[%s3 + $0x1c8] sm:$0xff]
  %v997 = vld [vmem:[%s3 + $0x1d0] sm:$0xff]
  %v998 = vld [vmem:[%s3 + $0x1d8] sm:$0xff]
  %v999 = vld [vmem:[%s3 + $0x1e0] sm:$0xff]
  %v1000 = vld [vmem:[%s3 + $0x1e8] sm:$0xff]
  %v1001 = vld [vmem:[%s3 + $0x1f0] sm:$0xff]
  %v1002 = vld [vmem:[%s3 + $0x1f8] sm:$0xff]
  %v1003 = vld [vmem:[%s3 + $0x200] sm:$0xff]
  %v1004 = vld [vmem:[%s3 + $0x208] sm:$0xff]
  %v1005 = vld [vmem:[%s3 + $0x210] sm:$0xff]
  %v1006 = vld [vmem:[%s3 + $0x218] sm:$0xff]
  %v1007 = vld [vmem:[%s3 + $0x220] sm:$0xff]
  %v1008 = vld [vmem:[%s3 + $0x228] sm:$0xff]
  %v1009 = vld [vmem:[%s3 + $0x230] sm:$0xff]
  %v1010 = vld [vmem:[%s3 + $0x238] sm:$0xff]
  %v1011 = vld [vmem:[%s3 + $0x240] sm:$0xff]
  %v1012 = vld [vmem:[%s3 + $0x248] sm:$0xff]
  %v1013 = vld [vmem:[%s3 + $0x250] sm:$0xff]
  %v1014 = vld [vmem:[%s3 + $0x258] sm:$0xff]
  %v1015 = vld [vmem:[%s3 + $0x260] sm:$0xff]
  %v1016 = vld [vmem:[%s3 + $0x268] sm:$0xff]
  %v1017 = vld [vmem:[%s3 + $0x270] sm:$0xff]
  %v1018 = vld [vmem:[%s3 + $0x278] sm:$0xff]
  %v1019 = vld [vmem:[%s3 + $0x280] sm:$0xff]
  %v1020 = vld [vmem:[%s3 + $0x288] sm:$0xff]
  %v1021 = vld [vmem:[%s3 + $0x290] sm:$0xff]
  %v1022 = vld [vmem:[%s3 + $0x298] sm:$0xff]
  %v1023 = vld [vmem:[%s3 + $0x2a0] sm:$0xff]
  %v1024 = vld [vmem:[%s3 + $0x2a8] sm:$0xff]
  %v1025 = vld [vmem:[%s3 + $0x2b0] sm:$0xff]
  %v1026 = vld [vmem:[%s3 + $0x2b8] sm:$0xff]
  %v1027 = vld [vmem:[%s3 + $0x2c0] sm:$0xff]
  %v1028 = vld [vmem:[%s3 + $0x2c8] sm:$0xff]
  %v1029 = vld [vmem:[%s3 + $0x2d0] sm:$0xff]
  %v1030 = vld [vmem:[%s3 + $0x2d8] sm:$0xff]
  %v1031 = vld [vmem:[%s3 + $0x2e0] sm:$0xff]
  %v1032 = vld [vmem:[%s3 + $0x2e8] sm:$0xff]
  %v1033 = vld [vmem:[%s3 + $0x2f0] sm:$0xff]
  %v1034 = vld [vmem:[%s3 + $0x2f8] sm:$0xff]
  %v1035 = vld [vmem:[%s3 + $0x300] sm:$0xff]
  %v1036 = vld [vmem:[%s3 + $0x308] sm:$0xff]
  %v1037 = vld [vmem:[%s3 + $0x310] sm:$0xff]
  %v1038 = vld [vmem:[%s3 + $0x318] sm:$0xff]
  %v1039 = vld [vmem:[%s3 + $0x320] sm:$0xff]
  %v1040 = vld [vmem:[%s3 + $0x328] sm:$0xff]
  %v1041 = vld [vmem:[%s3 + $0x330] sm:$0xff]
  %v1042 = vld [vmem:[%s3 + $0x338] sm:$0xff]
  %v1043 = vld [vmem:[%s3 + $0x340] sm:$0xff]
  %v1044 = vld [vmem:[%s3 + $0x348] sm:$0xff]
  %v1045 = vld [vmem:[%s3 + $0x350] sm:$0xff]
  %v1046 = vld [vmem:[%s3 + $0x358] sm:$0xff]
  %v1047 = vld [vmem:[%s3 + $0x360] sm:$0xff]
  %v1048 = vld [vmem:[%s3 + $0x368] sm:$0xff]
  %v1049 = vld [vmem:[%s3 + $0x370] sm:$0xff]
  %v1050 = vld [vmem:[%s3 + $0x378] sm:$0xff]
  %v1051 = vld [vmem:[%s3 + $0x380] sm:$0xff]
  %v1052 = vld [vmem:[%s3 + $0x388] sm:$0xff]
  %v1053 = vld [vmem:[%s3 + $0x390] sm:$0xff]
  %v1054 = vld [vmem:[%s3 + $0x398] sm:$0xff]
  %v1055 = vld [vmem:[%s3 + $0x3a0] sm:$0xff]
  %v1056 = vld [vmem:[%s3 + $0x3a8] sm:$0xff]
  %v1057 = vld [vmem:[%s3 + $0x3b0] sm:$0xff]
  %v1058 = vld [vmem:[%s3 + $0x3b8] sm:$0xff]
  %v1059 = vld [vmem:[%s3 + $0x3c0] sm:$0xff]
  %v1060 = vld [vmem:[%s3 + $0x3c8] sm:$0xff]
  %v1061 = vld [vmem:[%s3 + $0x3d0] sm:$0xff]
  %v1062 = vld [vmem:[%s3 + $0x3d8] sm:$0xff]
  %v1063 = vld [vmem:[%s3 + $0x3e0] sm:$0xff]
  %v1064 = vld [vmem:[%s3 + $0x3e8] sm:$0xff]
  %v1065 = vld [vmem:[%s3 + $0x3f0] sm:$0xff]
  %v1066 = vld [vmem:[%s3 + $0x3f8] sm:$0xff]
  %v1067 = vld [vmem:[%s4] sm:$0x3]
  %v1069 = vperm.slane %v1067, 0
  %v1070 = vperm.slane %v1067, 1
  %1073 = vmatpush.msra.mxu0 %v969
  %1074 = vmatpush.msra.mxu0 %v967
  %1075 = vmatpush.msra.mxu0 %v965
  %1076 = vmatpush.msra.mxu0 %v963
  %1077 = vmatpush.msra.mxu0 %v961
  %1078 = vmatpush.msra.mxu0 %v959
  %1079 = vmatpush.msra.mxu0 %v957
  %1080 = vmatpush.msra.mxu0 %v955
  %1081 = vmatpush.msra.mxu0 %v953
  %1082 = vmatpush.msra.mxu0 %v951
  %1083 = vmatpush.msra.mxu0 %v949
  %1084 = vmatpush.msra.mxu0 %v947
  %1085 = vmatpush.msra.mxu0 %v945
  %1086 = vmatpush.msra.mxu0 %v943
  %1087 = vmatpush.msra.mxu0 %v941
  %1088 = vmatpush.msra.mxu0 %v939
  %1089 = vmatmul.f32.gmra.mxu0 %v935
  %v1090 = vpop.f32.mrf.mxu0
  %v1091 = vadd.f32 %v1069, %v1090
  %1092 = vdwg.mxu0
  %1093 = vmatpush.msra.mxu0 %v1001
  %1094 = vmatpush.msra.mxu0 %v999
  %1095 = vmatpush.msra.mxu0 %v997
  %1096 = vmatpush.msra.mxu0 %v995
  %1097 = vmatpush.msra.mxu0 %v993
  %1098 = vmatpush.msra.mxu0 %v991
  %1099 = vmatpush.msra.mxu0 %v989
  %1100 = vmatpush.msra.mxu0 %v987
  %1101 = vmatpush.msra.mxu0 %v985
  %1102 = vmatpush.msra.mxu0 %v983
  %1103 = vmatpush.msra.mxu0 %v981
  %1104 = vmatpush.msra.mxu0 %v979
  %1105 = vmatpush.msra.mxu0 %v977
  %1106 = vmatpush.msra.mxu0 %v975
  %1107 = vmatpush.msra.mxu0 %v973
  %1108 = vmatpush.msra.mxu0 %v971
  %1109 = vmatmul.f32.gmra.mxu0 %v936
  %v1110 = vpop.f32.mrf.mxu0
  %v1111 = vadd.f32 %v1091, %v1110
  %1112 = vdwg.mxu0
  %1113 = vmatpush.msra.mxu0 %v1033
  %1114 = vmatpush.msra.mxu0 %v1031
  %1115 = vmatpush.msra.mxu0 %v1029
  %1116 = vmatpush.msra.mxu0 %v1027
  %1117 = vmatpush.msra.mxu0 %v1025
  %1118 = vmatpush.msra.mxu0 %v1023
  %1119 = vmatpush.msra.mxu0 %v1021
  %1120 = vmatpush.msra.mxu0 %v1019
  %1121 = vmatpush.msra.mxu0 %v1017
  %1122 = vmatpush.msra.mxu0 %v1015
  %1123 = vmatpush.msra.mxu0 %v1013
  %1124 = vmatpush.msra.mxu0 %v1011
  %1125 = vmatpush.msra.mxu0 %v1009
  %1126 = vmatpush.msra.mxu0 %v1007
  %1127 = vmatpush.msra.mxu0 %v1005
  %1128 = vmatpush.msra.mxu0 %v1003
  %1129 = vmatmul.f32.gmra.mxu0 %v937
  %v1130 = vpop.f32.mrf.mxu0
  %v1131 = vadd.f32 %v1111, %v1130
  %1132 = vdwg.mxu0
  %1133 = vmatpush.msra.mxu0 %v1065
  %1134 = vmatpush.msra.mxu0 %v1063
  %1135 = vmatpush.msra.mxu0 %v1061
  %1136 = vmatpush.msra.mxu0 %v1059
  %1137 = vmatpush.msra.mxu0 %v1057
  %1138 = vmatpush.msra.mxu0 %v1055
  %1139 = vmatpush.msra.mxu0 %v1053
  %1140 = vmatpush.msra.mxu0 %v1051
  %1141 = vmatpush.msra.mxu0 %v1049
  %1142 = vmatpush.msra.mxu0 %v1047
  %1143 = vmatpush.msra.mxu0 %v1045
  %1144 = vmatpush.msra.mxu0 %v1043
  %1145 = vmatpush.msra.mxu0 %v1041
  %1146 = vmatpush.msra.mxu0 %v1039
  %1147 = vmatpush.msra.mxu0 %v1037
  %1148 = vmatpush.msra.mxu0 %v1035
  %1149 = vmatmul.f32.gmra.mxu0 %v938
  %v1150 = vpop.f32.mrf.mxu0
  %v1151 = vadd.f32 %v1131, %v1150
  %1152 = vdwg.mxu0
  %1153 = vmatpush.msra.mxu0 %v970
  %1154 = vmatpush.msra.mxu0 %v968
  %1155 = vmatpush.msra.mxu0 %v966
  %1156 = vmatpush.msra.mxu0 %v964
  %1157 = vmatpush.msra.mxu0 %v962
  %1158 = vmatpush.msra.mxu0 %v960
  %1159 = vmatpush.msra.mxu0 %v958
  %1160 = vmatpush.msra.mxu0 %v956
  %1161 = vmatpush.msra.mxu0 %v954
  %1162 = vmatpush.msra.mxu0 %v952
  %1163 = vmatpush.msra.mxu0 %v950
  %1164 = vmatpush.msra.mxu0 %v948
  %1165 = vmatpush.msra.mxu0 %v946
  %1166 = vmatpush.msra.mxu0 %v944
  %1167 = vmatpush.msra.mxu0 %v942
  %1168 = vmatpush.msra.mxu0 %v940
  %1169 = vmatmul.f32.gmra.mxu0 %v935
  %v1170 = vpop.f32.mrf.mxu0
  %v1171 = vadd.f32 %v1070, %v1170
  %1172 = vdwg.mxu0
  %1173 = vmatpush.msra.mxu0 %v1002
  %1174 = vmatpush.msra.mxu0 %v1000
  %1175 = vmatpush.msra.mxu0 %v998
  %1176 = vmatpush.msra.mxu0 %v996
  %1177 = vmatpush.msra.mxu0 %v994
  %1178 = vmatpush.msra.mxu0 %v992
  %1179 = vmatpush.msra.mxu0 %v990
  %1180 = vmatpush.msra.mxu0 %v988
  %1181 = vmatpush.msra.mxu0 %v986
  %1182 = vmatpush.msra.mxu0 %v984
  %1183 = vmatpush.msra.mxu0 %v982
  %1184 = vmatpush.msra.mxu0 %v980
  %1185 = vmatpush.msra.mxu0 %v978
  %1186 = vmatpush.msra.mxu0 %v976
  %1187 = vmatpush.msra.mxu0 %v974
  %1188 = vmatpush.msra.mxu0 %v972
  %1189 = vmatmul.f32.gmra.mxu0 %v936
  %v1190 = vpop.f32.mrf.mxu0
  %v1191 = vadd.f32 %v1171, %v1190
  %1192 = vdwg.mxu0
  %1193 = vmatpush.msra.mxu0 %v1034
  %1194 = vmatpush.msra.mxu0 %v1032
  %1195 = vmatpush.msra.mxu0 %v1030
  %1196 = vmatpush.msra.mxu0 %v1028
  %1197 = vmatpush.msra.mxu0 %v1026
  %1198 = vmatpush.msra.mxu0 %v1024
  %1199 = vmatpush.msra.mxu0 %v1022
  %1200 = vmatpush.msra.mxu0 %v1020
  %1201 = vmatpush.msra.mxu0 %v1018
  %1202 = vmatpush.msra.mxu0 %v1016
  %1203 = vmatpush.msra.mxu0 %v1014
  %1204 = vmatpush.msra.mxu0 %v1012
  %1205 = vmatpush.msra.mxu0 %v1010
  %1206 = vmatpush.msra.mxu0 %v1008
  %1207 = vmatpush.msra.mxu0 %v1006
  %1208 = vmatpush.msra.mxu0 %v1004
  %1209 = vmatmul.f32.gmra.mxu0 %v937
  %v1210 = vpop.f32.mrf.mxu0
  %v1211 = vadd.f32 %v1191, %v1210
  %1212 = vdwg.mxu0
  %1213 = vmatpush.msra.mxu0 %v1066
  %1214 = vmatpush.msra.mxu0 %v1064
  %1215 = vmatpush.msra.mxu0 %v1062
  %1216 = vmatpush.msra.mxu0 %v1060
  %1217 = vmatpush.msra.mxu0 %v1058
  %1218 = vmatpush.msra.mxu0 %v1056
  %1219 = vmatpush.msra.mxu0 %v1054
  %1220 = vmatpush.msra.mxu0 %v1052
  %1221 = vmatpush.msra.mxu0 %v1050
  %1222 = vmatpush.msra.mxu0 %v1048
  %1223 = vmatpush.msra.mxu0 %v1046
  %1224 = vmatpush.msra.mxu0 %v1044
  %1225 = vmatpush.msra.mxu0 %v1042
  %1226 = vmatpush.msra.mxu0 %v1040
  %1227 = vmatpush.msra.mxu0 %v1038
  %1228 = vmatpush.msra.mxu0 %v1036
  %1229 = vmatmul.f32.gmra.mxu0 %v938
  %v1230 = vpop.f32.mrf.mxu0
  %v1231 = vadd.f32 %v1211, %v1230
  %1232 = vdwg.mxu0
  %vm1233 = vcmp.gt.f32.partialorder %v1151, 0.0
  %vm1234 = vcmp.gt.f32.partialorder %v1231, 0.0
  %v1235 = vmul.f32 %v1151, 0.01
  %v1236 = vmul.f32 %v1231, 0.01
  %v1237 = vsel %vm1233, %v1151, %v1235
  %v1238 = vsel %vm1234, %v1231, %v1236
  %v1239 = vld [vmem:[%s5] sm:$0xff]
  %v1240 = vld [vmem:[%s5 + $0x8] sm:$0xff]
  %v1241 = vld [vmem:[%s5 + $0x10] sm:$0xff]
  %v1242 = vld [vmem:[%s5 + $0x18] sm:$0xff]
  %v1243 = vld [vmem:[%s5 + $0x20] sm:$0xff]
  %v1244 = vld [vmem:[%s5 + $0x28] sm:$0xff]
  %v1245 = vld [vmem:[%s5 + $0x30] sm:$0xff]
  %v1246 = vld [vmem:[%s5 + $0x38] sm:$0xff]
  %v1247 = vld [vmem:[%s5 + $0x40] sm:$0xff]
  %v1248 = vld [vmem:[%s5 + $0x48] sm:$0xff]
  %v1249 = vld [vmem:[%s5 + $0x50] sm:$0xff]
  %v1250 = vld [vmem:[%s5 + $0x58] sm:$0xff]
  %v1251 = vld [vmem:[%s5 + $0x60] sm:$0xff]
  %v1252 = vld [vmem:[%s5 + $0x68] sm:$0xff]
  %v1253 = vld [vmem:[%s5 + $0x70] sm:$0xff]
  %v1254 = vld [vmem:[%s5 + $0x78] sm:$0xff]
  %v1255 = vld [vmem:[%s5 + $0x80] sm:$0xff]
  %v1256 = vld [vmem:[%s5 + $0x88] sm:$0xff]
  %v1257 = vld [vmem:[%s5 + $0x90] sm:$0xff]
  %v1258 = vld [vmem:[%s5 + $0x98] sm:$0xff]
  %v1259 = vld [vmem:[%s5 + $0xa0] sm:$0xff]
  %v1260 = vld [vmem:[%s5 + $0xa8] sm:$0xff]
  %v1261 = vld [vmem:[%s5 + $0xb0] sm:$0xff]
  %v1262 = vld [vmem:[%s5 + $0xb8] sm:$0xff]
  %v1263 = vld [vmem:[%s5 + $0xc0] sm:$0xff]
  %v1264 = vld [vmem:[%s5 + $0xc8] sm:$0xff]
  %v1265 = vld [vmem:[%s5 + $0xd0] sm:$0xff]
  %v1266 = vld [vmem:[%s5 + $0xd8] sm:$0xff]
  %v1267 = vld [vmem:[%s5 + $0xe0] sm:$0xff]
  %v1268 = vld [vmem:[%s5 + $0xe8] sm:$0xff]
  %v1269 = vld [vmem:[%s5 + $0xf0] sm:$0xff]
  %v1270 = vld [vmem:[%s5 + $0xf8] sm:$0xff]
  %v1271 = vld [vmem:[%s6] sm:$0x1]
  %v1273 = vperm.slane %v1271, 0
  %1275 = vmatpush.msra.mxu0 %v1254
  %1276 = vmatpush.msra.mxu0 %v1253
  %1277 = vmatpush.msra.mxu0 %v1252
  %1278 = vmatpush.msra.mxu0 %v1251
  %1279 = vmatpush.msra.mxu0 %v1250
  %1280 = vmatpush.msra.mxu0 %v1249
  %1281 = vmatpush.msra.mxu0 %v1248
  %1282 = vmatpush.msra.mxu0 %v1247
  %1283 = vmatpush.msra.mxu0 %v1246
  %1284 = vmatpush.msra.mxu0 %v1245
  %1285 = vmatpush.msra.mxu0 %v1244
  %1286 = vmatpush.msra.mxu0 %v1243
  %1287 = vmatpush.msra.mxu0 %v1242
  %1288 = vmatpush.msra.mxu0 %v1241
  %1289 = vmatpush.msra.mxu0 %v1240
  %1290 = vmatpush.msra.mxu0 %v1239
  %1291 = vmatmul.f32.gmra.mxu0 %v1237
  %v1292 = vpop.f32.mrf.mxu0
  %v1293 = vadd.f32 %v1273, %v1292
  %1294 = vdwg.mxu0
  %1295 = vmatpush.msra.mxu0 %v1270
  %1296 = vmatpush.msra.mxu0 %v1269
  %1297 = vmatpush.msra.mxu0 %v1268
  %1298 = vmatpush.msra.mxu0 %v1267
  %1299 = vmatpush.msra.mxu0 %v1266
  %1300 = vmatpush.msra.mxu0 %v1265
  %1301 = vmatpush.msra.mxu0 %v1264
  %1302 = vmatpush.msra.mxu0 %v1263
  %1303 = vmatpush.msra.mxu0 %v1262
  %1304 = vmatpush.msra.mxu0 %v1261
  %1305 = vmatpush.msra.mxu0 %v1260
  %1306 = vmatpush.msra.mxu0 %v1259
  %1307 = vmatpush.msra.mxu0 %v1258
  %1308 = vmatpush.msra.mxu0 %v1257
  %1309 = vmatpush.msra.mxu0 %v1256
  %1310 = vmatpush.msra.mxu0 %v1255
  %1311 = vmatmul.f32.gmra.mxu0 %v1238
  %v1312 = vpop.f32.mrf.mxu0
  %v1313 = vadd.f32 %v1293, %v1312
  %1314 = vdwg.mxu0
  %vm1315 = vcmp.gt.f32.partialorder %v1313, 0.0
  %v1316 = vmul.f32 %v1313, 0.01
  %v1317 = vsel %vm1315, %v1313, %v1316
  %v1318 = vld [vmem:[%s7] sm:$0xff]
  %v1319 = vld [vmem:[%s7 + $0x8] sm:$0xff]
  %v1320 = vld [vmem:[%s7 + $0x10] sm:$0xff]
  %v1321 = vld [vmem:[%s7 + $0x18] sm:$0xff]
  %v1322 = vld [vmem:[%s7 + $0x20] sm:$0xff]
  %v1323 = vld [vmem:[%s7 + $0x28] sm:$0xff]
  %v1324 = vld [vmem:[%s7 + $0x30] sm:$0xff]
  %v1325 = vld [vmem:[%s7 + $0x38] sm:$0xff]
  %v1326 = vld [vmem:[%s7 + $0x40] sm:$0xff]
  %v1327 = vld [vmem:[%s7 + $0x48] sm:$0xff]
  %v1328 = vld [vmem:[%s7 + $0x50] sm:$0xff]
  %v1329 = vld [vmem:[%s7 + $0x58] sm:$0xff]
  %v1330 = vld [vmem:[%s7 + $0x60] sm:$0xff]
  %v1331 = vld [vmem:[%s7 + $0x68] sm:$0xff]
  %v1332 = vld [vmem:[%s7 + $0x70] sm:$0xff]
  %v1333 = vld [vmem:[%s7 + $0x78] sm:$0xff]
  %1334 = vmatpush.msra.mxu0 %v1333
  %1335 = vmatpush.msra.mxu0 %v1332
  %1336 = vmatpush.msra.mxu0 %v1331
  %1337 = vmatpush.msra.mxu0 %v1330
  %1338 = vmatpush.msra.mxu0 %v1329
  %1339 = vmatpush.msra.mxu0 %v1328
  %1340 = vmatpush.msra.mxu0 %v1327
  %1341 = vmatpush.msra.mxu0 %v1326
  %1342 = vmatpush.msra.mxu0 %v1325
  %1343 = vmatpush.msra.mxu0 %v1324
  %1344 = vmatpush.msra.mxu0 %v1323
  %1345 = vmatpush.msra.mxu0 %v1322
  %1346 = vmatpush.msra.mxu0 %v1321
  %1347 = vmatpush.msra.mxu0 %v1320
  %1348 = vmatpush.msra.mxu0 %v1319
  %1349 = vmatpush.msra.mxu0 %v1318
  %1350 = vmatmul.f32.gmra.mxu0 %v1317
  %v1351 = vpop.f32.mrf.mxu0
  %v1352 = vadd.f32 0.0, %v1351
  %1353 = vdwg.mxu0
  %1354 = vst [vmem:[%s9] sm:$0x3] %v1352
  %v1355 = vld [vmem:[%s8] sm:$0xff]
  %v1356 = vld [vmem:[%s8 + $0x8] sm:$0xff]
  %v1357 = vld [vmem:[%s8 + $0x10] sm:$0xff]
  %v1358 = vld [vmem:[%s8 + $0x18] sm:$0xff]
  %v1359 = vld [vmem:[%s8 + $0x20] sm:$0xff]
  %v1360 = vld [vmem:[%s8 + $0x28] sm:$0xff]
  %v1361 = vld [vmem:[%s8 + $0x30] sm:$0xff]
  %v1362 = vld [vmem:[%s8 + $0x38] sm:$0xff]
  %v1363 = vld [vmem:[%s8 + $0x40] sm:$0xff]
  %v1364 = vld [vmem:[%s8 + $0x48] sm:$0xff]
  %v1365 = vld [vmem:[%s8 + $0x50] sm:$0xff]
  %v1366 = vld [vmem:[%s8 + $0x58] sm:$0xff]
  %v1367 = vld [vmem:[%s8 + $0x60] sm:$0xff]
  %v1368 = vld [vmem:[%s8 + $0x68] sm:$0xff]
  %v1369 = vld [vmem:[%s8 + $0x70] sm:$0xff]
  %v1370 = vld [vmem:[%s8 + $0x78] sm:$0xff]
  %v1371 = vld [vmem:[%s8 + $0x80] sm:$0xff]
  %v1372 = vld [vmem:[%s8 + $0x88] sm:$0xff]
  %v1373 = vld [vmem:[%s8 + $0x90] sm:$0xff]
  %v1374 = vld [vmem:[%s8 + $0x98] sm:$0xff]
  %v1375 = vld [vmem:[%s8 + $0xa0] sm:$0xff]
  %v1376 = vld [vmem:[%s8 + $0xa8] sm:$0xff]
  %v1377 = vld [vmem:[%s8 + $0xb0] sm:$0xff]
  %v1378 = vld [vmem:[%s8 + $0xb8] sm:$0xff]
  %v1379 = vld [vmem:[%s8 + $0xc0] sm:$0xff]
  %v1380 = vld [vmem:[%s8 + $0xc8] sm:$0xff]
  %v1381 = vld [vmem:[%s8 + $0xd0] sm:$0xff]
  %v1382 = vld [vmem:[%s8 + $0xd8] sm:$0xff]
  %v1383 = vld [vmem:[%s8 + $0xe0] sm:$0xff]
  %v1384 = vld [vmem:[%s8 + $0xe8] sm:$0xff]
  %v1385 = vld [vmem:[%s8 + $0xf0] sm:$0xff]
  %v1386 = vld [vmem:[%s8 + $0xf8] sm:$0xff]
  %v1387 = vld [vmem:[%s8 + $0x100] sm:$0xff]
  %v1388 = vld [vmem:[%s8 + $0x108] sm:$0xff]
  %v1389 = vld [vmem:[%s8 + $0x110] sm:$0xff]
  %v1390 = vld [vmem:[%s8 + $0x118] sm:$0xff]
  %v1391 = vld [vmem:[%s8 + $0x120] sm:$0xff]
  %v1392 = vld [vmem:[%s8 + $0x128] sm:$0xff]
  %v1393 = vld [vmem:[%s8 + $0x130] sm:$0xff]
  %v1394 = vld [vmem:[%s8 + $0x138] sm:$0xff]
  %v1395 = vld [vmem:[%s8 + $0x140] sm:$0xff]
  %v1396 = vld [vmem:[%s8 + $0x148] sm:$0xff]
  %v1397 = vld [vmem:[%s8 + $0x150] sm:$0xff]
  %v1398 = vld [vmem:[%s8 + $0x158] sm:$0xff]
  %v1399 = vld [vmem:[%s8 + $0x160] sm:$0xff]
  %v1400 = vld [vmem:[%s8 + $0x168] sm:$0xff]
  %v1401 = vld [vmem:[%s8 + $0x170] sm:$0xff]
  %v1402 = vld [vmem:[%s8 + $0x178] sm:$0xff]
  %v1403 = vld [vmem:[%s8 + $0x180] sm:$0xff]
  %v1404 = vld [vmem:[%s8 + $0x188] sm:$0xff]
  %v1405 = vld [vmem:[%s8 + $0x190] sm:$0xff]
  %v1406 = vld [vmem:[%s8 + $0x198] sm:$0xff]
  %v1407 = vld [vmem:[%s8 + $0x1a0] sm:$0xff]
  %v1408 = vld [vmem:[%s8 + $0x1a8] sm:$0xff]
  %v1409 = vld [vmem:[%s8 + $0x1b0] sm:$0xff]
  %v1410 = vld [vmem:[%s8 + $0x1b8] sm:$0xff]
  %v1411 = vld [vmem:[%s8 + $0x1c0] sm:$0xff]
  %v1412 = vld [vmem:[%s8 + $0x1c8] sm:$0xff]
  %v1413 = vld [vmem:[%s8 + $0x1d0] sm:$0xff]
  %v1414 = vld [vmem:[%s8 + $0x1d8] sm:$0xff]
  %v1415 = vld [vmem:[%s8 + $0x1e0] sm:$0xff]
  %v1416 = vld [vmem:[%s8 + $0x1e8] sm:$0xff]
  %v1417 = vld [vmem:[%s8 + $0x1f0] sm:$0xff]
  %v1418 = vld [vmem:[%s8 + $0x1f8] sm:$0xff]
  %v1419 = vld [vmem:[%s8 + $0x200] sm:$0xff]
  %v1420 = vld [vmem:[%s8 + $0x208] sm:$0xff]
  %v1421 = vld [vmem:[%s8 + $0x210] sm:$0xff]
  %v1422 = vld [vmem:[%s8 + $0x218] sm:$0xff]
  %v1423 = vld [vmem:[%s8 + $0x220] sm:$0xff]
  %v1424 = vld [vmem:[%s8 + $0x228] sm:$0xff]
  %v1425 = vld [vmem:[%s8 + $0x230] sm:$0xff]
  %v1426 = vld [vmem:[%s8 + $0x238] sm:$0xff]
  %v1427 = vld [vmem:[%s8 + $0x240] sm:$0xff]
  %v1428 = vld [vmem:[%s8 + $0x248] sm:$0xff]
  %v1429 = vld [vmem:[%s8 + $0x250] sm:$0xff]
  %v1430 = vld [vmem:[%s8 + $0x258] sm:$0xff]
  %v1431 = vld [vmem:[%s8 + $0x260] sm:$0xff]
  %v1432 = vld [vmem:[%s8 + $0x268] sm:$0xff]
  %v1433 = vld [vmem:[%s8 + $0x270] sm:$0xff]
  %v1434 = vld [vmem:[%s8 + $0x278] sm:$0xff]
  %v1435 = vld [vmem:[%s8 + $0x280] sm:$0xff]
  %v1436 = vld [vmem:[%s8 + $0x288] sm:$0xff]
  %v1437 = vld [vmem:[%s8 + $0x290] sm:$0xff]
  %v1438 = vld [vmem:[%s8 + $0x298] sm:$0xff]
  %v1439 = vld [vmem:[%s8 + $0x2a0] sm:$0xff]
  %v1440 = vld [vmem:[%s8 + $0x2a8] sm:$0xff]
  %v1441 = vld [vmem:[%s8 + $0x2b0] sm:$0xff]
  %v1442 = vld [vmem:[%s8 + $0x2b8] sm:$0xff]
  %v1443 = vld [vmem:[%s8 + $0x2c0] sm:$0xff]
  %v1444 = vld [vmem:[%s8 + $0x2c8] sm:$0xff]
  %v1445 = vld [vmem:[%s8 + $0x2d0] sm:$0xff]
  %v1446 = vld [vmem:[%s8 + $0x2d8] sm:$0xff]
  %v1447 = vld [vmem:[%s8 + $0x2e0] sm:$0xff]
  %v1448 = vld [vmem:[%s8 + $0x2e8] sm:$0xff]
  %v1449 = vld [vmem:[%s8 + $0x2f0] sm:$0xff]
  %v1450 = vld [vmem:[%s8 + $0x2f8] sm:$0xff]
  %v1451 = vld [vmem:[%s8 + $0x300] sm:$0xff]
  %v1452 = vld [vmem:[%s8 + $0x308] sm:$0xff]
  %v1453 = vld [vmem:[%s8 + $0x310] sm:$0xff]
  %v1454 = vld [vmem:[%s8 + $0x318] sm:$0xff]
  %v1455 = vld [vmem:[%s8 + $0x320] sm:$0xff]
  %v1456 = vld [vmem:[%s8 + $0x328] sm:$0xff]
  %v1457 = vld [vmem:[%s8 + $0x330] sm:$0xff]
  %v1458 = vld [vmem:[%s8 + $0x338] sm:$0xff]
  %v1459 = vld [vmem:[%s8 + $0x340] sm:$0xff]
  %v1460 = vld [vmem:[%s8 + $0x348] sm:$0xff]
  %v1461 = vld [vmem:[%s8 + $0x350] sm:$0xff]
  %v1462 = vld [vmem:[%s8 + $0x358] sm:$0xff]
  %v1463 = vld [vmem:[%s8 + $0x360] sm:$0xff]
  %v1464 = vld [vmem:[%s8 + $0x368] sm:$0xff]
  %v1465 = vld [vmem:[%s8 + $0x370] sm:$0xff]
  %v1466 = vld [vmem:[%s8 + $0x378] sm:$0xff]
  %v1467 = vld [vmem:[%s8 + $0x380] sm:$0xff]
  %v1468 = vld [vmem:[%s8 + $0x388] sm:$0xff]
  %v1469 = vld [vmem:[%s8 + $0x390] sm:$0xff]
  %v1470 = vld [vmem:[%s8 + $0x398] sm:$0xff]
  %v1471 = vld [vmem:[%s8 + $0x3a0] sm:$0xff]
  %v1472 = vld [vmem:[%s8 + $0x3a8] sm:$0xff]
  %v1473 = vld [vmem:[%s8 + $0x3b0] sm:$0xff]
  %v1474 = vld [vmem:[%s8 + $0x3b8] sm:$0xff]
  %v1475 = vld [vmem:[%s8 + $0x3c0] sm:$0xff]
  %v1476 = vld [vmem:[%s8 + $0x3c8] sm:$0xff]
  %v1477 = vld [vmem:[%s8 + $0x3d0] sm:$0xff]
  %v1478 = vld [vmem:[%s8 + $0x3d8] sm:$0xff]
  %v1479 = vld [vmem:[%s8 + $0x3e0] sm:$0xff]
  %v1480 = vld [vmem:[%s8 + $0x3e8] sm:$0xff]
  %v1481 = vld [vmem:[%s8 + $0x3f0] sm:$0xff]
  %v1482 = vld [vmem:[%s8 + $0x3f8] sm:$0xff]
  %v1483 = vld [vmem:[%s8 + $0x400] sm:$0xff]
  %v1484 = vld [vmem:[%s8 + $0x408] sm:$0xff]
  %v1485 = vld [vmem:[%s8 + $0x410] sm:$0xff]
  %v1486 = vld [vmem:[%s8 + $0x418] sm:$0xff]
  %v1487 = vld [vmem:[%s8 + $0x420] sm:$0xff]
  %v1488 = vld [vmem:[%s8 + $0x428] sm:$0xff]
  %v1489 = vld [vmem:[%s8 + $0x430] sm:$0xff]
  %v1490 = vld [vmem:[%s8 + $0x438] sm:$0xff]
  %v1491 = vld [vmem:[%s8 + $0x440] sm:$0xff]
  %v1492 = vld [vmem:[%s8 + $0x448] sm:$0xff]
  %v1493 = vld [vmem:[%s8 + $0x450] sm:$0xff]
  %v1494 = vld [vmem:[%s8 + $0x458] sm:$0xff]
  %v1495 = vld [vmem:[%s8 + $0x460] sm:$0xff]
  %v1496 = vld [vmem:[%s8 + $0x468] sm:$0xff]
  %v1497 = vld [vmem:[%s8 + $0x470] sm:$0xff]
  %v1498 = vld [vmem:[%s8 + $0x478] sm:$0xff]
  %v1499 = vld [vmem:[%s8 + $0x480] sm:$0xff]
  %v1500 = vld [vmem:[%s8 + $0x488] sm:$0xff]
  %v1501 = vld [vmem:[%s8 + $0x490] sm:$0xff]
  %v1502 = vld [vmem:[%s8 + $0x498] sm:$0xff]
  %v1503 = vld [vmem:[%s8 + $0x4a0] sm:$0xff]
  %v1504 = vld [vmem:[%s8 + $0x4a8] sm:$0xff]
  %v1505 = vld [vmem:[%s8 + $0x4b0] sm:$0xff]
  %v1506 = vld [vmem:[%s8 + $0x4b8] sm:$0xff]
  %v1507 = vld [vmem:[%s8 + $0x4c0] sm:$0xff]
  %v1508 = vld [vmem:[%s8 + $0x4c8] sm:$0xff]
  %v1509 = vld [vmem:[%s8 + $0x4d0] sm:$0xff]
  %v1510 = vld [vmem:[%s8 + $0x4d8] sm:$0xff]
  %v1511 = vld [vmem:[%s8 + $0x4e0] sm:$0xff]
  %v1512 = vld [vmem:[%s8 + $0x4e8] sm:$0xff]
  %v1513 = vld [vmem:[%s8 + $0x4f0] sm:$0xff]
  %v1514 = vld [vmem:[%s8 + $0x4f8] sm:$0xff]
  %v1515 = vld [vmem:[%s8 + $0x500] sm:$0xff]
  %v1516 = vld [vmem:[%s8 + $0x508] sm:$0xff]
  %v1517 = vld [vmem:[%s8 + $0x510] sm:$0xff]
  %v1518 = vld [vmem:[%s8 + $0x518] sm:$0xff]
  %v1519 = vld [vmem:[%s8 + $0x520] sm:$0xff]
  %v1520 = vld [vmem:[%s8 + $0x528] sm:$0xff]
  %v1521 = vld [vmem:[%s8 + $0x530] sm:$0xff]
  %v1522 = vld [vmem:[%s8 + $0x538] sm:$0xff]
  %v1523 = vld [vmem:[%s8 + $0x540] sm:$0xff]
  %v1524 = vld [vmem:[%s8 + $0x548] sm:$0xff]
  %v1525 = vld [vmem:[%s8 + $0x550] sm:$0xff]
  %v1526 = vld [vmem:[%s8 + $0x558] sm:$0xff]
  %v1527 = vld [vmem:[%s8 + $0x560] sm:$0xff]
  %v1528 = vld [vmem:[%s8 + $0x568] sm:$0xff]
  %v1529 = vld [vmem:[%s8 + $0x570] sm:$0xff]
  %v1530 = vld [vmem:[%s8 + $0x578] sm:$0xff]
  %v1531 = vld [vmem:[%s8 + $0x580] sm:$0xff]
  %v1532 = vld [vmem:[%s8 + $0x588] sm:$0xff]
  %v1533 = vld [vmem:[%s8 + $0x590] sm:$0xff]
  %v1534 = vld [vmem:[%s8 + $0x598] sm:$0xff]
  %v1535 = vld [vmem:[%s8 + $0x5a0] sm:$0xff]
  %v1536 = vld [vmem:[%s8 + $0x5a8] sm:$0xff]
  %v1537 = vld [vmem:[%s8 + $0x5b0] sm:$0xff]
  %v1538 = vld [vmem:[%s8 + $0x5b8] sm:$0xff]
  %v1539 = vld [vmem:[%s8 + $0x5c0] sm:$0xff]
  %v1540 = vld [vmem:[%s8 + $0x5c8] sm:$0xff]
  %v1541 = vld [vmem:[%s8 + $0x5d0] sm:$0xff]
  %v1542 = vld [vmem:[%s8 + $0x5d8] sm:$0xff]
  %v1543 = vld [vmem:[%s8 + $0x5e0] sm:$0xff]
  %v1544 = vld [vmem:[%s8 + $0x5e8] sm:$0xff]
  %v1545 = vld [vmem:[%s8 + $0x5f0] sm:$0xff]
  %v1546 = vld [vmem:[%s8 + $0x5f8] sm:$0xff]
  %v1547 = vld [vmem:[%s8 + $0x600] sm:$0xff]
  %v1548 = vld [vmem:[%s8 + $0x608] sm:$0xff]
  %v1549 = vld [vmem:[%s8 + $0x610] sm:$0xff]
  %v1550 = vld [vmem:[%s8 + $0x618] sm:$0xff]
  %v1551 = vld [vmem:[%s8 + $0x620] sm:$0xff]
  %v1552 = vld [vmem:[%s8 + $0x628] sm:$0xff]
  %v1553 = vld [vmem:[%s8 + $0x630] sm:$0xff]
  %v1554 = vld [vmem:[%s8 + $0x638] sm:$0xff]
  %v1555 = vld [vmem:[%s8 + $0x640] sm:$0xff]
  %v1556 = vld [vmem:[%s8 + $0x648] sm:$0xff]
  %v1557 = vld [vmem:[%s8 + $0x650] sm:$0xff]
  %v1558 = vld [vmem:[%s8 + $0x658] sm:$0xff]
  %v1559 = vld [vmem:[%s8 + $0x660] sm:$0xff]
  %v1560 = vld [vmem:[%s8 + $0x668] sm:$0xff]
  %v1561 = vld [vmem:[%s8 + $0x670] sm:$0xff]
  %v1562 = vld [vmem:[%s8 + $0x678] sm:$0xff]
  %v1563 = vld [vmem:[%s8 + $0x680] sm:$0xff]
  %v1564 = vld [vmem:[%s8 + $0x688] sm:$0xff]
  %v1565 = vld [vmem:[%s8 + $0x690] sm:$0xff]
  %v1566 = vld [vmem:[%s8 + $0x698] sm:$0xff]
  %v1567 = vld [vmem:[%s8 + $0x6a0] sm:$0xff]
  %v1568 = vld [vmem:[%s8 + $0x6a8] sm:$0xff]
  %v1569 = vld [vmem:[%s8 + $0x6b0] sm:$0xff]
  %v1570 = vld [vmem:[%s8 + $0x6b8] sm:$0xff]
  %v1571 = vld [vmem:[%s8 + $0x6c0] sm:$0xff]
  %v1572 = vld [vmem:[%s8 + $0x6c8] sm:$0xff]
  %v1573 = vld [vmem:[%s8 + $0x6d0] sm:$0xff]
  %v1574 = vld [vmem:[%s8 + $0x6d8] sm:$0xff]
  %v1575 = vld [vmem:[%s8 + $0x6e0] sm:$0xff]
  %v1576 = vld [vmem:[%s8 + $0x6e8] sm:$0xff]
  %v1577 = vld [vmem:[%s8 + $0x6f0] sm:$0xff]
  %v1578 = vld [vmem:[%s8 + $0x6f8] sm:$0xff]
  %v1579 = vld [vmem:[%s8 + $0x700] sm:$0xff]
  %v1580 = vld [vmem:[%s8 + $0x708] sm:$0xff]
  %v1581 = vld [vmem:[%s8 + $0x710] sm:$0xff]
  %v1582 = vld [vmem:[%s8 + $0x718] sm:$0xff]
  %v1583 = vld [vmem:[%s8 + $0x720] sm:$0xff]
  %v1584 = vld [vmem:[%s8 + $0x728] sm:$0xff]
  %v1585 = vld [vmem:[%s8 + $0x730] sm:$0xff]
  %v1586 = vld [vmem:[%s8 + $0x738] sm:$0xff]
  %v1587 = vld [vmem:[%s8 + $0x740] sm:$0xff]
  %v1588 = vld [vmem:[%s8 + $0x748] sm:$0xff]
  %v1589 = vld [vmem:[%s8 + $0x750] sm:$0xff]
  %v1590 = vld [vmem:[%s8 + $0x758] sm:$0xff]
  %v1591 = vld [vmem:[%s8 + $0x760] sm:$0xff]
  %v1592 = vld [vmem:[%s8 + $0x768] sm:$0xff]
  %v1593 = vld [vmem:[%s8 + $0x770] sm:$0xff]
  %v1594 = vld [vmem:[%s8 + $0x778] sm:$0xff]
  %v1595 = vld [vmem:[%s8 + $0x780] sm:$0xff]
  %v1596 = vld [vmem:[%s8 + $0x788] sm:$0xff]
  %v1597 = vld [vmem:[%s8 + $0x790] sm:$0xff]
  %v1598 = vld [vmem:[%s8 + $0x798] sm:$0xff]
  %v1599 = vld [vmem:[%s8 + $0x7a0] sm:$0xff]
  %v1600 = vld [vmem:[%s8 + $0x7a8] sm:$0xff]
  %v1601 = vld [vmem:[%s8 + $0x7b0] sm:$0xff]
  %v1602 = vld [vmem:[%s8 + $0x7b8] sm:$0xff]
  %v1603 = vld [vmem:[%s8 + $0x7c0] sm:$0xff]
  %v1604 = vld [vmem:[%s8 + $0x7c8] sm:$0xff]
  %v1605 = vld [vmem:[%s8 + $0x7d0] sm:$0xff]
  %v1606 = vld [vmem:[%s8 + $0x7d8] sm:$0xff]
  %v1607 = vld [vmem:[%s8 + $0x7e0] sm:$0xff]
  %v1608 = vld [vmem:[%s8 + $0x7e8] sm:$0xff]
  %v1609 = vld [vmem:[%s8 + $0x7f0] sm:$0xff]
  %v1610 = vld [vmem:[%s8 + $0x7f8] sm:$0xff]
  %v1611 = vld [vmem:[%s8 + $0x800] sm:$0xff]
  %v1612 = vld [vmem:[%s8 + $0x808] sm:$0xff]
  %v1613 = vld [vmem:[%s8 + $0x810] sm:$0xff]
  %v1614 = vld [vmem:[%s8 + $0x818] sm:$0xff]
  %v1615 = vld [vmem:[%s8 + $0x820] sm:$0xff]
  %v1616 = vld [vmem:[%s8 + $0x828] sm:$0xff]
  %v1617 = vld [vmem:[%s8 + $0x830] sm:$0xff]
  %v1618 = vld [vmem:[%s8 + $0x838] sm:$0xff]
  %v1619 = vld [vmem:[%s8 + $0x840] sm:$0xff]
  %v1620 = vld [vmem:[%s8 + $0x848] sm:$0xff]
  %v1621 = vld [vmem:[%s8 + $0x850] sm:$0xff]
  %v1622 = vld [vmem:[%s8 + $0x858] sm:$0xff]
  %v1623 = vld [vmem:[%s8 + $0x860] sm:$0xff]
  %v1624 = vld [vmem:[%s8 + $0x868] sm:$0xff]
  %v1625 = vld [vmem:[%s8 + $0x870] sm:$0xff]
  %v1626 = vld [vmem:[%s8 + $0x878] sm:$0xff]
  %v1627 = vld [vmem:[%s8 + $0x880] sm:$0xff]
  %v1628 = vld [vmem:[%s8 + $0x888] sm:$0xff]
  %v1629 = vld [vmem:[%s8 + $0x890] sm:$0xff]
  %v1630 = vld [vmem:[%s8 + $0x898] sm:$0xff]
  %v1631 = vld [vmem:[%s8 + $0x8a0] sm:$0xff]
  %v1632 = vld [vmem:[%s8 + $0x8a8] sm:$0xff]
  %v1633 = vld [vmem:[%s8 + $0x8b0] sm:$0xff]
  %v1634 = vld [vmem:[%s8 + $0x8b8] sm:$0xff]
  %v1635 = vld [vmem:[%s8 + $0x8c0] sm:$0xff]
  %v1636 = vld [vmem:[%s8 + $0x8c8] sm:$0xff]
  %v1637 = vld [vmem:[%s8 + $0x8d0] sm:$0xff]
  %v1638 = vld [vmem:[%s8 + $0x8d8] sm:$0xff]
  %v1639 = vld [vmem:[%s8 + $0x8e0] sm:$0xff]
  %v1640 = vld [vmem:[%s8 + $0x8e8] sm:$0xff]
  %v1641 = vld [vmem:[%s8 + $0x8f0] sm:$0xff]
  %v1642 = vld [vmem:[%s8 + $0x8f8] sm:$0xff]
  %v1643 = vld [vmem:[%s8 + $0x900] sm:$0xff]
  %v1644 = vld [vmem:[%s8 + $0x908] sm:$0xff]
  %v1645 = vld [vmem:[%s8 + $0x910] sm:$0xff]
  %v1646 = vld [vmem:[%s8 + $0x918] sm:$0xff]
  %v1647 = vld [vmem:[%s8 + $0x920] sm:$0xff]
  %v1648 = vld [vmem:[%s8 + $0x928] sm:$0xff]
  %v1649 = vld [vmem:[%s8 + $0x930] sm:$0xff]
  %v1650 = vld [vmem:[%s8 + $0x938] sm:$0xff]
  %v1651 = vld [vmem:[%s8 + $0x940] sm:$0xff]
  %v1652 = vld [vmem:[%s8 + $0x948] sm:$0xff]
  %v1653 = vld [vmem:[%s8 + $0x950] sm:$0xff]
  %v1654 = vld [vmem:[%s8 + $0x958] sm:$0xff]
  %v1655 = vld [vmem:[%s8 + $0x960] sm:$0xff]
  %v1656 = vld [vmem:[%s8 + $0x968] sm:$0xff]
  %v1657 = vld [vmem:[%s8 + $0x970] sm:$0xff]
  %v1658 = vld [vmem:[%s8 + $0x978] sm:$0xff]
  %v1659 = vld [vmem:[%s8 + $0x980] sm:$0xff]
  %v1660 = vld [vmem:[%s8 + $0x988] sm:$0xff]
  %v1661 = vld [vmem:[%s8 + $0x990] sm:$0xff]
  %v1662 = vld [vmem:[%s8 + $0x998] sm:$0xff]
  %v1663 = vld [vmem:[%s8 + $0x9a0] sm:$0xff]
  %v1664 = vld [vmem:[%s8 + $0x9a8] sm:$0xff]
  %v1665 = vld [vmem:[%s8 + $0x9b0] sm:$0xff]
  %v1666 = vld [vmem:[%s8 + $0x9b8] sm:$0xff]
  %v1667 = vld [vmem:[%s8 + $0x9c0] sm:$0xff]
  %v1668 = vld [vmem:[%s8 + $0x9c8] sm:$0xff]
  %v1669 = vld [vmem:[%s8 + $0x9d0] sm:$0xff]
  %v1670 = vld [vmem:[%s8 + $0x9d8] sm:$0xff]
  %v1671 = vld [vmem:[%s8 + $0x9e0] sm:$0xff]
  %v1672 = vld [vmem:[%s8 + $0x9e8] sm:$0xff]
  %v1673 = vld [vmem:[%s8 + $0x9f0] sm:$0xff]
  %v1674 = vld [vmem:[%s8 + $0x9f8] sm:$0xff]
  %v1675 = vld [vmem:[%s8 + $0xa00] sm:$0xff]
  %v1676 = vld [vmem:[%s8 + $0xa08] sm:$0xff]
  %v1677 = vld [vmem:[%s8 + $0xa10] sm:$0xff]
  %v1678 = vld [vmem:[%s8 + $0xa18] sm:$0xff]
  %v1679 = vld [vmem:[%s8 + $0xa20] sm:$0xff]
  %v1680 = vld [vmem:[%s8 + $0xa28] sm:$0xff]
  %v1681 = vld [vmem:[%s8 + $0xa30] sm:$0xff]
  %v1682 = vld [vmem:[%s8 + $0xa38] sm:$0xff]
  %v1683 = vld [vmem:[%s8 + $0xa40] sm:$0xff]
  %v1684 = vld [vmem:[%s8 + $0xa48] sm:$0xff]
  %v1685 = vld [vmem:[%s8 + $0xa50] sm:$0xff]
  %v1686 = vld [vmem:[%s8 + $0xa58] sm:$0xff]
  %v1687 = vld [vmem:[%s8 + $0xa60] sm:$0xff]
  %v1688 = vld [vmem:[%s8 + $0xa68] sm:$0xff]
  %v1689 = vld [vmem:[%s8 + $0xa70] sm:$0xff]
  %v1690 = vld [vmem:[%s8 + $0xa78] sm:$0xff]
  %v1691 = vld [vmem:[%s8 + $0xa80] sm:$0xff]
  %v1692 = vld [vmem:[%s8 + $0xa88] sm:$0xff]
  %v1693 = vld [vmem:[%s8 + $0xa90] sm:$0xff]
  %v1694 = vld [vmem:[%s8 + $0xa98] sm:$0xff]
  %v1695 = vld [vmem:[%s8 + $0xaa0] sm:$0xff]
  %v1696 = vld [vmem:[%s8 + $0xaa8] sm:$0xff]
  %v1697 = vld [vmem:[%s8 + $0xab0] sm:$0xff]
  %v1698 = vld [vmem:[%s8 + $0xab8] sm:$0xff]
  %v1699 = vld [vmem:[%s8 + $0xac0] sm:$0xff]
  %v1700 = vld [vmem:[%s8 + $0xac8] sm:$0xff]
  %v1701 = vld [vmem:[%s8 + $0xad0] sm:$0xff]
  %v1702 = vld [vmem:[%s8 + $0xad8] sm:$0xff]
  %v1703 = vld [vmem:[%s8 + $0xae0] sm:$0xff]
  %v1704 = vld [vmem:[%s8 + $0xae8] sm:$0xff]
  %v1705 = vld [vmem:[%s8 + $0xaf0] sm:$0xff]
  %v1706 = vld [vmem:[%s8 + $0xaf8] sm:$0xff]
  %v1707 = vld [vmem:[%s8 + $0xb00] sm:$0xff]
  %v1708 = vld [vmem:[%s8 + $0xb08] sm:$0xff]
  %v1709 = vld [vmem:[%s8 + $0xb10] sm:$0xff]
  %v1710 = vld [vmem:[%s8 + $0xb18] sm:$0xff]
  %v1711 = vld [vmem:[%s8 + $0xb20] sm:$0xff]
  %v1712 = vld [vmem:[%s8 + $0xb28] sm:$0xff]
  %v1713 = vld [vmem:[%s8 + $0xb30] sm:$0xff]
  %v1714 = vld [vmem:[%s8 + $0xb38] sm:$0xff]
  %v1715 = vld [vmem:[%s8 + $0xb40] sm:$0xff]
  %v1716 = vld [vmem:[%s8 + $0xb48] sm:$0xff]
  %v1717 = vld [vmem:[%s8 + $0xb50] sm:$0xff]
  %v1718 = vld [vmem:[%s8 + $0xb58] sm:$0xff]
  %v1719 = vld [vmem:[%s8 + $0xb60] sm:$0xff]
  %v1720 = vld [vmem:[%s8 + $0xb68] sm:$0xff]
  %v1721 = vld [vmem:[%s8 + $0xb70] sm:$0xff]
  %v1722 = vld [vmem:[%s8 + $0xb78] sm:$0xff]
  %v1723 = vld [vmem:[%s8 + $0xb80] sm:$0xff]
  %v1724 = vld [vmem:[%s8 + $0xb88] sm:$0xff]
  %v1725 = vld [vmem:[%s8 + $0xb90] sm:$0xff]
  %v1726 = vld [vmem:[%s8 + $0xb98] sm:$0xff]
  %v1727 = vld [vmem:[%s8 + $0xba0] sm:$0xff]
  %v1728 = vld [vmem:[%s8 + $0xba8] sm:$0xff]
  %v1729 = vld [vmem:[%s8 + $0xbb0] sm:$0xff]
  %v1730 = vld [vmem:[%s8 + $0xbb8] sm:$0xff]
  %v1731 = vld [vmem:[%s8 + $0xbc0] sm:$0xff]
  %v1732 = vld [vmem:[%s8 + $0xbc8] sm:$0xff]
  %v1733 = vld [vmem:[%s8 + $0xbd0] sm:$0xff]
  %v1734 = vld [vmem:[%s8 + $0xbd8] sm:$0xff]
  %v1735 = vld [vmem:[%s8 + $0xbe0] sm:$0xff]
  %v1736 = vld [vmem:[%s8 + $0xbe8] sm:$0xff]
  %v1737 = vld [vmem:[%s8 + $0xbf0] sm:$0xff]
  %v1738 = vld [vmem:[%s8 + $0xbf8] sm:$0xff]
  %v1739 = vld [vmem:[%s8 + $0xc00] sm:$0xff]
  %v1740 = vld [vmem:[%s8 + $0xc08] sm:$0xff]
  %v1741 = vld [vmem:[%s8 + $0xc10] sm:$0xff]
  %v1742 = vld [vmem:[%s8 + $0xc18] sm:$0xff]
  %v1743 = vld [vmem:[%s8 + $0xc20] sm:$0xff]
  %v1744 = vld [vmem:[%s8 + $0xc28] sm:$0xff]
  %v1745 = vld [vmem:[%s8 + $0xc30] sm:$0xff]
  %v1746 = vld [vmem:[%s8 + $0xc38] sm:$0xff]
  %v1747 = vld [vmem:[%s8 + $0xc40] sm:$0xff]
  %v1748 = vld [vmem:[%s8 + $0xc48] sm:$0xff]
  %v1749 = vld [vmem:[%s8 + $0xc50] sm:$0xff]
  %v1750 = vld [vmem:[%s8 + $0xc58] sm:$0xff]
  %v1751 = vld [vmem:[%s8 + $0xc60] sm:$0xff]
  %v1752 = vld [vmem:[%s8 + $0xc68] sm:$0xff]
  %v1753 = vld [vmem:[%s8 + $0xc70] sm:$0xff]
  %v1754 = vld [vmem:[%s8 + $0xc78] sm:$0xff]
  %v1755 = vld [vmem:[%s8 + $0xc80] sm:$0xff]
  %v1756 = vld [vmem:[%s8 + $0xc88] sm:$0xff]
  %v1757 = vld [vmem:[%s8 + $0xc90] sm:$0xff]
  %v1758 = vld [vmem:[%s8 + $0xc98] sm:$0xff]
  %v1759 = vld [vmem:[%s8 + $0xca0] sm:$0xff]
  %v1760 = vld [vmem:[%s8 + $0xca8] sm:$0xff]
  %v1761 = vld [vmem:[%s8 + $0xcb0] sm:$0xff]
  %v1762 = vld [vmem:[%s8 + $0xcb8] sm:$0xff]
  %v1763 = vld [vmem:[%s8 + $0xcc0] sm:$0xff]
  %v1764 = vld [vmem:[%s8 + $0xcc8] sm:$0xff]
  %v1765 = vld [vmem:[%s8 + $0xcd0] sm:$0xff]
  %v1766 = vld [vmem:[%s8 + $0xcd8] sm:$0xff]
  %v1767 = vld [vmem:[%s8 + $0xce0] sm:$0xff]
  %v1768 = vld [vmem:[%s8 + $0xce8] sm:$0xff]
  %v1769 = vld [vmem:[%s8 + $0xcf0] sm:$0xff]
  %v1770 = vld [vmem:[%s8 + $0xcf8] sm:$0xff]
  %v1771 = vld [vmem:[%s8 + $0xd00] sm:$0xff]
  %v1772 = vld [vmem:[%s8 + $0xd08] sm:$0xff]
  %v1773 = vld [vmem:[%s8 + $0xd10] sm:$0xff]
  %v1774 = vld [vmem:[%s8 + $0xd18] sm:$0xff]
  %v1775 = vld [vmem:[%s8 + $0xd20] sm:$0xff]
  %v1776 = vld [vmem:[%s8 + $0xd28] sm:$0xff]
  %v1777 = vld [vmem:[%s8 + $0xd30] sm:$0xff]
  %v1778 = vld [vmem:[%s8 + $0xd38] sm:$0xff]
  %v1779 = vld [vmem:[%s8 + $0xd40] sm:$0xff]
  %v1780 = vld [vmem:[%s8 + $0xd48] sm:$0xff]
  %v1781 = vld [vmem:[%s8 + $0xd50] sm:$0xff]
  %v1782 = vld [vmem:[%s8 + $0xd58] sm:$0xff]
  %v1783 = vld [vmem:[%s8 + $0xd60] sm:$0xff]
  %v1784 = vld [vmem:[%s8 + $0xd68] sm:$0xff]
  %v1785 = vld [vmem:[%s8 + $0xd70] sm:$0xff]
  %v1786 = vld [vmem:[%s8 + $0xd78] sm:$0xff]
  %v1787 = vld [vmem:[%s8 + $0xd80] sm:$0xff]
  %v1788 = vld [vmem:[%s8 + $0xd88] sm:$0xff]
  %v1789 = vld [vmem:[%s8 + $0xd90] sm:$0xff]
  %v1790 = vld [vmem:[%s8 + $0xd98] sm:$0xff]
  %v1791 = vld [vmem:[%s8 + $0xda0] sm:$0xff]
  %v1792 = vld [vmem:[%s8 + $0xda8] sm:$0xff]
  %v1793 = vld [vmem:[%s8 + $0xdb0] sm:$0xff]
  %v1794 = vld [vmem:[%s8 + $0xdb8] sm:$0xff]
  %v1795 = vld [vmem:[%s8 + $0xdc0] sm:$0xff]
  %v1796 = vld [vmem:[%s8 + $0xdc8] sm:$0xff]
  %v1797 = vld [vmem:[%s8 + $0xdd0] sm:$0xff]
  %v1798 = vld [vmem:[%s8 + $0xdd8] sm:$0xff]
  %v1799 = vld [vmem:[%s8 + $0xde0] sm:$0xff]
  %v1800 = vld [vmem:[%s8 + $0xde8] sm:$0xff]
  %v1801 = vld [vmem:[%s8 + $0xdf0] sm:$0xff]
  %v1802 = vld [vmem:[%s8 + $0xdf8] sm:$0xff]
  %v1803 = vld [vmem:[%s8 + $0xe00] sm:$0xff]
  %v1804 = vld [vmem:[%s8 + $0xe08] sm:$0xff]
  %v1805 = vld [vmem:[%s8 + $0xe10] sm:$0xff]
  %v1806 = vld [vmem:[%s8 + $0xe18] sm:$0xff]
  %v1807 = vld [vmem:[%s8 + $0xe20] sm:$0xff]
  %v1808 = vld [vmem:[%s8 + $0xe28] sm:$0xff]
  %v1809 = vld [vmem:[%s8 + $0xe30] sm:$0xff]
  %v1810 = vld [vmem:[%s8 + $0xe38] sm:$0xff]
  %v1811 = vld [vmem:[%s8 + $0xe40] sm:$0xff]
  %v1812 = vld [vmem:[%s8 + $0xe48] sm:$0xff]
  %v1813 = vld [vmem:[%s8 + $0xe50] sm:$0xff]
  %v1814 = vld [vmem:[%s8 + $0xe58] sm:$0xff]
  %v1815 = vld [vmem:[%s8 + $0xe60] sm:$0xff]
  %v1816 = vld [vmem:[%s8 + $0xe68] sm:$0xff]
  %v1817 = vld [vmem:[%s8 + $0xe70] sm:$0xff]
  %v1818 = vld [vmem:[%s8 + $0xe78] sm:$0xff]
  %v1819 = vld [vmem:[%s8 + $0xe80] sm:$0xff]
  %v1820 = vld [vmem:[%s8 + $0xe88] sm:$0xff]
  %v1821 = vld [vmem:[%s8 + $0xe90] sm:$0xff]
  %v1822 = vld [vmem:[%s8 + $0xe98] sm:$0xff]
  %v1823 = vld [vmem:[%s8 + $0xea0] sm:$0xff]
  %v1824 = vld [vmem:[%s8 + $0xea8] sm:$0xff]
  %v1825 = vld [vmem:[%s8 + $0xeb0] sm:$0xff]
  %v1826 = vld [vmem:[%s8 + $0xeb8] sm:$0xff]
  %v1827 = vld [vmem:[%s8 + $0xec0] sm:$0xff]
  %v1828 = vld [vmem:[%s8 + $0xec8] sm:$0xff]
  %v1829 = vld [vmem:[%s8 + $0xed0] sm:$0xff]
  %v1830 = vld [vmem:[%s8 + $0xed8] sm:$0xff]
  %v1831 = vld [vmem:[%s8 + $0xee0] sm:$0xff]
  %v1832 = vld [vmem:[%s8 + $0xee8] sm:$0xff]
  %v1833 = vld [vmem:[%s8 + $0xef0] sm:$0xff]
  %v1834 = vld [vmem:[%s8 + $0xef8] sm:$0xff]
  %v1835 = vld [vmem:[%s8 + $0xf00] sm:$0xff]
  %v1836 = vld [vmem:[%s8 + $0xf08] sm:$0xff]
  %v1837 = vld [vmem:[%s8 + $0xf10] sm:$0xff]
  %v1838 = vld [vmem:[%s8 + $0xf18] sm:$0xff]
  %v1839 = vld [vmem:[%s8 + $0xf20] sm:$0xff]
  %v1840 = vld [vmem:[%s8 + $0xf28] sm:$0xff]
  %v1841 = vld [vmem:[%s8 + $0xf30] sm:$0xff]
  %v1842 = vld [vmem:[%s8 + $0xf38] sm:$0xff]
  %v1843 = vld [vmem:[%s8 + $0xf40] sm:$0xff]
  %v1844 = vld [vmem:[%s8 + $0xf48] sm:$0xff]
  %v1845 = vld [vmem:[%s8 + $0xf50] sm:$0xff]
  %v1846 = vld [vmem:[%s8 + $0xf58] sm:$0xff]
  %v1847 = vld [vmem:[%s8 + $0xf60] sm:$0xff]
  %v1848 = vld [vmem:[%s8 + $0xf68] sm:$0xff]
  %v1849 = vld [vmem:[%s8 + $0xf70] sm:$0xff]
  %v1850 = vld [vmem:[%s8 + $0xf78] sm:$0xff]
  %v1851 = vld [vmem:[%s8 + $0xf80] sm:$0xff]
  %v1852 = vld [vmem:[%s8 + $0xf88] sm:$0xff]
  %v1853 = vld [vmem:[%s8 + $0xf90] sm:$0xff]
  %v1854 = vld [vmem:[%s8 + $0xf98] sm:$0xff]
  %v1855 = vld [vmem:[%s8 + $0xfa0] sm:$0xff]
  %v1856 = vld [vmem:[%s8 + $0xfa8] sm:$0xff]
  %v1857 = vld [vmem:[%s8 + $0xfb0] sm:$0xff]
  %v1858 = vld [vmem:[%s8 + $0xfb8] sm:$0xff]
  %v1859 = vld [vmem:[%s8 + $0xfc0] sm:$0xff]
  %v1860 = vld [vmem:[%s8 + $0xfc8] sm:$0xff]
  %v1861 = vld [vmem:[%s8 + $0xfd0] sm:$0xff]
  %v1862 = vld [vmem:[%s8 + $0xfd8] sm:$0xff]
  %v1863 = vld [vmem:[%s8 + $0xfe0] sm:$0xff]
  %v1864 = vld [vmem:[%s8 + $0xfe8] sm:$0xff]
  %v1865 = vld [vmem:[%s8 + $0xff0] sm:$0xff]
  %v1866 = vld [vmem:[%s8 + $0xff8] sm:$0xff]
  %v1867 = vld [vmem:[%s8 + $0x1000] sm:$0xff]
  %v1868 = vld [vmem:[%s8 + $0x1008] sm:$0xff]
  %v1869 = vld [vmem:[%s8 + $0x1010] sm:$0xff]
  %v1870 = vld [vmem:[%s8 + $0x1018] sm:$0xff]
  %v1871 = vld [vmem:[%s8 + $0x1020] sm:$0xff]
  %v1872 = vld [vmem:[%s8 + $0x1028] sm:$0xff]
  %v1873 = vld [vmem:[%s8 + $0x1030] sm:$0xff]
  %v1874 = vld [vmem:[%s8 + $0x1038] sm:$0xff]
  %v1875 = vld [vmem:[%s8 + $0x1040] sm:$0xff]
  %v1876 = vld [vmem:[%s8 + $0x1048] sm:$0xff]
  %v1877 = vld [vmem:[%s8 + $0x1050] sm:$0xff]
  %v1878 = vld [vmem:[%s8 + $0x1058] sm:$0xff]
  %v1879 = vld [vmem:[%s8 + $0x1060] sm:$0xff]
  %v1880 = vld [vmem:[%s8 + $0x1068] sm:$0xff]
  %v1881 = vld [vmem:[%s8 + $0x1070] sm:$0xff]
  %v1882 = vld [vmem:[%s8 + $0x1078] sm:$0xff]
  %v1883 = vld [vmem:[%s8 + $0x1080] sm:$0xff]
  %v1884 = vld [vmem:[%s8 + $0x1088] sm:$0xff]
  %v1885 = vld [vmem:[%s8 + $0x1090] sm:$0xff]
  %v1886 = vld [vmem:[%s8 + $0x1098] sm:$0xff]
  %v1887 = vld [vmem:[%s8 + $0x10a0] sm:$0xff]
  %v1888 = vld [vmem:[%s8 + $0x10a8] sm:$0xff]
  %v1889 = vld [vmem:[%s8 + $0x10b0] sm:$0xff]
  %v1890 = vld [vmem:[%s8 + $0x10b8] sm:$0xff]
  %v1891 = vld [vmem:[%s8 + $0x10c0] sm:$0xff]
  %v1892 = vld [vmem:[%s8 + $0x10c8] sm:$0xff]
  %v1893 = vld [vmem:[%s8 + $0x10d0] sm:$0xff]
  %v1894 = vld [vmem:[%s8 + $0x10d8] sm:$0xff]
  %v1895 = vld [vmem:[%s8 + $0x10e0] sm:$0xff]
  %v1896 = vld [vmem:[%s8 + $0x10e8] sm:$0xff]
  %v1897 = vld [vmem:[%s8 + $0x10f0] sm:$0xff]
  %v1898 = vld [vmem:[%s8 + $0x10f8] sm:$0xff]
  %v1899 = vld [vmem:[%s8 + $0x1100] sm:$0xff]
  %v1900 = vld [vmem:[%s8 + $0x1108] sm:$0xff]
  %v1901 = vld [vmem:[%s8 + $0x1110] sm:$0xff]
  %v1902 = vld [vmem:[%s8 + $0x1118] sm:$0xff]
  %v1903 = vld [vmem:[%s8 + $0x1120] sm:$0xff]
  %v1904 = vld [vmem:[%s8 + $0x1128] sm:$0xff]
  %v1905 = vld [vmem:[%s8 + $0x1130] sm:$0xff]
  %v1906 = vld [vmem:[%s8 + $0x1138] sm:$0xff]
  %v1907 = vld [vmem:[%s8 + $0x1140] sm:$0xff]
  %v1908 = vld [vmem:[%s8 + $0x1148] sm:$0xff]
  %v1909 = vld [vmem:[%s8 + $0x1150] sm:$0xff]
  %v1910 = vld [vmem:[%s8 + $0x1158] sm:$0xff]
  %v1911 = vld [vmem:[%s8 + $0x1160] sm:$0xff]
  %v1912 = vld [vmem:[%s8 + $0x1168] sm:$0xff]
  %v1913 = vld [vmem:[%s8 + $0x1170] sm:$0xff]
  %v1914 = vld [vmem:[%s8 + $0x1178] sm:$0xff]
  %v1915 = vld [vmem:[%s8 + $0x1180] sm:$0xff]
  %v1916 = vld [vmem:[%s8 + $0x1188] sm:$0xff]
  %v1917 = vld [vmem:[%s8 + $0x1190] sm:$0xff]
  %v1918 = vld [vmem:[%s8 + $0x1198] sm:$0xff]
  %v1919 = vld [vmem:[%s8 + $0x11a0] sm:$0xff]
  %v1920 = vld [vmem:[%s8 + $0x11a8] sm:$0xff]
  %v1921 = vld [vmem:[%s8 + $0x11b0] sm:$0xff]
  %v1922 = vld [vmem:[%s8 + $0x11b8] sm:$0xff]
  %v1923 = vld [vmem:[%s8 + $0x11c0] sm:$0xff]
  %v1924 = vld [vmem:[%s8 + $0x11c8] sm:$0xff]
  %v1925 = vld [vmem:[%s8 + $0x11d0] sm:$0xff]
  %v1926 = vld [vmem:[%s8 + $0x11d8] sm:$0xff]
  %v1927 = vld [vmem:[%s8 + $0x11e0] sm:$0xff]
  %v1928 = vld [vmem:[%s8 + $0x11e8] sm:$0xff]
  %v1929 = vld [vmem:[%s8 + $0x11f0] sm:$0xff]
  %v1930 = vld [vmem:[%s8 + $0x11f8] sm:$0xff]
  %v1931 = vld [vmem:[%s8 + $0x1200] sm:$0xff]
  %v1932 = vld [vmem:[%s8 + $0x1208] sm:$0xff]
  %v1933 = vld [vmem:[%s8 + $0x1210] sm:$0xff]
  %v1934 = vld [vmem:[%s8 + $0x1218] sm:$0xff]
  %v1935 = vld [vmem:[%s8 + $0x1220] sm:$0xff]
  %v1936 = vld [vmem:[%s8 + $0x1228] sm:$0xff]
  %v1937 = vld [vmem:[%s8 + $0x1230] sm:$0xff]
  %v1938 = vld [vmem:[%s8 + $0x1238] sm:$0xff]
  %v1939 = vld [vmem:[%s8 + $0x1240] sm:$0xff]
  %v1940 = vld [vmem:[%s8 + $0x1248] sm:$0xff]
  %v1941 = vld [vmem:[%s8 + $0x1250] sm:$0xff]
  %v1942 = vld [vmem:[%s8 + $0x1258] sm:$0xff]
  %v1943 = vld [vmem:[%s8 + $0x1260] sm:$0xff]
  %v1944 = vld [vmem:[%s8 + $0x1268] sm:$0xff]
  %v1945 = vld [vmem:[%s8 + $0x1270] sm:$0xff]
  %v1946 = vld [vmem:[%s8 + $0x1278] sm:$0xff]
  %v1947 = vld [vmem:[%s8 + $0x1280] sm:$0xff]
  %v1948 = vld [vmem:[%s8 + $0x1288] sm:$0xff]
  %v1949 = vld [vmem:[%s8 + $0x1290] sm:$0xff]
  %v1950 = vld [vmem:[%s8 + $0x1298] sm:$0xff]
  %v1951 = vld [vmem:[%s8 + $0x12a0] sm:$0xff]
  %v1952 = vld [vmem:[%s8 + $0x12a8] sm:$0xff]
  %v1953 = vld [vmem:[%s8 + $0x12b0] sm:$0xff]
  %v1954 = vld [vmem:[%s8 + $0x12b8] sm:$0xff]
  %v1955 = vld [vmem:[%s8 + $0x12c0] sm:$0xff]
  %v1956 = vld [vmem:[%s8 + $0x12c8] sm:$0xff]
  %v1957 = vld [vmem:[%s8 + $0x12d0] sm:$0xff]
  %v1958 = vld [vmem:[%s8 + $0x12d8] sm:$0xff]
  %v1959 = vld [vmem:[%s8 + $0x12e0] sm:$0xff]
  %v1960 = vld [vmem:[%s8 + $0x12e8] sm:$0xff]
  %v1961 = vld [vmem:[%s8 + $0x12f0] sm:$0xff]
  %v1962 = vld [vmem:[%s8 + $0x12f8] sm:$0xff]
  %v1963 = vld [vmem:[%s8 + $0x1300] sm:$0xff]
  %v1964 = vld [vmem:[%s8 + $0x1308] sm:$0xff]
  %v1965 = vld [vmem:[%s8 + $0x1310] sm:$0xff]
  %v1966 = vld [vmem:[%s8 + $0x1318] sm:$0xff]
  %v1967 = vld [vmem:[%s8 + $0x1320] sm:$0xff]
  %v1968 = vld [vmem:[%s8 + $0x1328] sm:$0xff]
  %v1969 = vld [vmem:[%s8 + $0x1330] sm:$0xff]
  %v1970 = vld [vmem:[%s8 + $0x1338] sm:$0xff]
  %v1971 = vld [vmem:[%s8 + $0x1340] sm:$0xff]
  %v1972 = vld [vmem:[%s8 + $0x1348] sm:$0xff]
  %v1973 = vld [vmem:[%s8 + $0x1350] sm:$0xff]
  %v1974 = vld [vmem:[%s8 + $0x1358] sm:$0xff]
  %v1975 = vld [vmem:[%s8 + $0x1360] sm:$0xff]
  %v1976 = vld [vmem:[%s8 + $0x1368] sm:$0xff]
  %v1977 = vld [vmem:[%s8 + $0x1370] sm:$0xff]
  %v1978 = vld [vmem:[%s8 + $0x1378] sm:$0xff]
  %v1979 = vld [vmem:[%s8 + $0x1380] sm:$0xff]
  %v1980 = vld [vmem:[%s8 + $0x1388] sm:$0xff]
  %v1981 = vld [vmem:[%s8 + $0x1390] sm:$0xff]
  %v1982 = vld [vmem:[%s8 + $0x1398] sm:$0xff]
  %v1983 = vld [vmem:[%s8 + $0x13a0] sm:$0xff]
  %v1984 = vld [vmem:[%s8 + $0x13a8] sm:$0xff]
  %v1985 = vld [vmem:[%s8 + $0x13b0] sm:$0xff]
  %v1986 = vld [vmem:[%s8 + $0x13b8] sm:$0xff]
  %v1987 = vld [vmem:[%s8 + $0x13c0] sm:$0xff]
  %v1988 = vld [vmem:[%s8 + $0x13c8] sm:$0xff]
  %v1989 = vld [vmem:[%s8 + $0x13d0] sm:$0xff]
  %v1990 = vld [vmem:[%s8 + $0x13d8] sm:$0xff]
  %v1991 = vld [vmem:[%s8 + $0x13e0] sm:$0xff]
  %v1992 = vld [vmem:[%s8 + $0x13e8] sm:$0xff]
  %v1993 = vld [vmem:[%s8 + $0x13f0] sm:$0xff]
  %v1994 = vld [vmem:[%s8 + $0x13f8] sm:$0xff]
  %1995 = vmatpush.msra.mxu0 %v1955
  %1996 = vmatpush.msra.mxu0 %v1915
  %1997 = vmatpush.msra.mxu0 %v1875
  %1998 = vmatpush.msra.mxu0 %v1835
  %1999 = vmatpush.msra.mxu0 %v1795
  %2000 = vmatpush.msra.mxu0 %v1755
  %2001 = vmatpush.msra.mxu0 %v1715
  %2002 = vmatpush.msra.mxu0 %v1675
  %2003 = vmatpush.msra.mxu0 %v1635
  %2004 = vmatpush.msra.mxu0 %v1595
  %2005 = vmatpush.msra.mxu0 %v1555
  %2006 = vmatpush.msra.mxu0 %v1515
  %2007 = vmatpush.msra.mxu0 %v1475
  %2008 = vmatpush.msra.mxu0 %v1435
  %2009 = vmatpush.msra.mxu0 %v1395
  %2010 = vmatpush.msra.mxu0 %v1355
  %2011 = vmatmul.f32.gmra.mxu0 %v1317
  %v2012 = vpop.f32.mrf.mxu0
  %v2013 = vadd.f32 0.0, %v2012
  %2014 = vdwg.mxu0
  %2015 = vmatpush.msra.mxu0 %v1956
  %2016 = vmatpush.msra.mxu0 %v1916
  %2017 = vmatpush.msra.mxu0 %v1876
  %2018 = vmatpush.msra.mxu0 %v1836
  %2019 = vmatpush.msra.mxu0 %v1796
  %2020 = vmatpush.msra.mxu0 %v1756
  %2021 = vmatpush.msra.mxu0 %v1716
  %2022 = vmatpush.msra.mxu0 %v1676
  %2023 = vmatpush.msra.mxu0 %v1636
  %2024 = vmatpush.msra.mxu0 %v1596
  %2025 = vmatpush.msra.mxu0 %v1556
  %2026 = vmatpush.msra.mxu0 %v1516
  %2027 = vmatpush.msra.mxu0 %v1476
  %2028 = vmatpush.msra.mxu0 %v1436
  %2029 = vmatpush.msra.mxu0 %v1396
  %2030 = vmatpush.msra.mxu0 %v1356
  %2031 = vmatmul.f32.gmra.mxu0 %v1317
  %v2032 = vpop.f32.mrf.mxu0
  %v2033 = vadd.f32 0.0, %v2032
  %2034 = vdwg.mxu0
  %2035 = vmatpush.msra.mxu0 %v1957
  %2036 = vmatpush.msra.mxu0 %v1917
  %2037 = vmatpush.msra.mxu0 %v1877
  %2038 = vmatpush.msra.mxu0 %v1837
  %2039 = vmatpush.msra.mxu0 %v1797
  %2040 = vmatpush.msra.mxu0 %v1757
  %2041 = vmatpush.msra.mxu0 %v1717
  %2042 = vmatpush.msra.mxu0 %v1677
  %2043 = vmatpush.msra.mxu0 %v1637
  %2044 = vmatpush.msra.mxu0 %v1597
  %2045 = vmatpush.msra.mxu0 %v1557
  %2046 = vmatpush.msra.mxu0 %v1517
  %2047 = vmatpush.msra.mxu0 %v1477
  %2048 = vmatpush.msra.mxu0 %v1437
  %2049 = vmatpush.msra.mxu0 %v1397
  %2050 = vmatpush.msra.mxu0 %v1357
  %2051 = vmatmul.f32.gmra.mxu0 %v1317
  %v2052 = vpop.f32.mrf.mxu0
  %v2053 = vadd.f32 0.0, %v2052
  %2054 = vdwg.mxu0
  %2055 = vmatpush.msra.mxu0 %v1958
  %2056 = vmatpush.msra.mxu0 %v1918
  %2057 = vmatpush.msra.mxu0 %v1878
  %2058 = vmatpush.msra.mxu0 %v1838
  %2059 = vmatpush.msra.mxu0 %v1798
  %2060 = vmatpush.msra.mxu0 %v1758
  %2061 = vmatpush.msra.mxu0 %v1718
  %2062 = vmatpush.msra.mxu0 %v1678
  %2063 = vmatpush.msra.mxu0 %v1638
  %2064 = vmatpush.msra.mxu0 %v1598
  %2065 = vmatpush.msra.mxu0 %v1558
  %2066 = vmatpush.msra.mxu0 %v1518
  %2067 = vmatpush.msra.mxu0 %v1478
  %2068 = vmatpush.msra.mxu0 %v1438
  %2069 = vmatpush.msra.mxu0 %v1398
  %2070 = vmatpush.msra.mxu0 %v1358
  %2071 = vmatmul.f32.gmra.mxu0 %v1317
  %v2072 = vpop.f32.mrf.mxu0
  %v2073 = vadd.f32 0.0, %v2072
  %2074 = vdwg.mxu0
  %2075 = vmatpush.msra.mxu0 %v1959
  %2076 = vmatpush.msra.mxu0 %v1919
  %2077 = vmatpush.msra.mxu0 %v1879
  %2078 = vmatpush.msra.mxu0 %v1839
  %2079 = vmatpush.msra.mxu0 %v1799
  %2080 = vmatpush.msra.mxu0 %v1759
  %2081 = vmatpush.msra.mxu0 %v1719
  %2082 = vmatpush.msra.mxu0 %v1679
  %2083 = vmatpush.msra.mxu0 %v1639
  %2084 = vmatpush.msra.mxu0 %v1599
  %2085 = vmatpush.msra.mxu0 %v1559
  %2086 = vmatpush.msra.mxu0 %v1519
  %2087 = vmatpush.msra.mxu0 %v1479
  %2088 = vmatpush.msra.mxu0 %v1439
  %2089 = vmatpush.msra.mxu0 %v1399
  %2090 = vmatpush.msra.mxu0 %v1359
  %2091 = vmatmul.f32.gmra.mxu0 %v1317
  %v2092 = vpop.f32.mrf.mxu0
  %v2093 = vadd.f32 0.0, %v2092
  %2094 = vdwg.mxu0
  %2095 = vmatpush.msra.mxu0 %v1960
  %2096 = vmatpush.msra.mxu0 %v1920
  %2097 = vmatpush.msra.mxu0 %v1880
  %2098 = vmatpush.msra.mxu0 %v1840
  %2099 = vmatpush.msra.mxu0 %v1800
  %2100 = vmatpush.msra.mxu0 %v1760
  %2101 = vmatpush.msra.mxu0 %v1720
  %2102 = vmatpush.msra.mxu0 %v1680
  %2103 = vmatpush.msra.mxu0 %v1640
  %2104 = vmatpush.msra.mxu0 %v1600
  %2105 = vmatpush.msra.mxu0 %v1560
  %2106 = vmatpush.msra.mxu0 %v1520
  %2107 = vmatpush.msra.mxu0 %v1480
  %2108 = vmatpush.msra.mxu0 %v1440
  %2109 = vmatpush.msra.mxu0 %v1400
  %2110 = vmatpush.msra.mxu0 %v1360
  %2111 = vmatmul.f32.gmra.mxu0 %v1317
  %v2112 = vpop.f32.mrf.mxu0
  %v2113 = vadd.f32 0.0, %v2112
  %2114 = vdwg.mxu0
  %2115 = vmatpush.msra.mxu0 %v1961
  %2116 = vmatpush.msra.mxu0 %v1921
  %2117 = vmatpush.msra.mxu0 %v1881
  %2118 = vmatpush.msra.mxu0 %v1841
  %2119 = vmatpush.msra.mxu0 %v1801
  %2120 = vmatpush.msra.mxu0 %v1761
  %2121 = vmatpush.msra.mxu0 %v1721
  %2122 = vmatpush.msra.mxu0 %v1681
  %2123 = vmatpush.msra.mxu0 %v1641
  %2124 = vmatpush.msra.mxu0 %v1601
  %2125 = vmatpush.msra.mxu0 %v1561
  %2126 = vmatpush.msra.mxu0 %v1521
  %2127 = vmatpush.msra.mxu0 %v1481
  %2128 = vmatpush.msra.mxu0 %v1441
  %2129 = vmatpush.msra.mxu0 %v1401
  %2130 = vmatpush.msra.mxu0 %v1361
  %2131 = vmatmul.f32.gmra.mxu0 %v1317
  %v2132 = vpop.f32.mrf.mxu0
  %v2133 = vadd.f32 0.0, %v2132
  %2134 = vdwg.mxu0
  %2135 = vmatpush.msra.mxu0 %v1962
  %2136 = vmatpush.msra.mxu0 %v1922
  %2137 = vmatpush.msra.mxu0 %v1882
  %2138 = vmatpush.msra.mxu0 %v1842
  %2139 = vmatpush.msra.mxu0 %v1802
  %2140 = vmatpush.msra.mxu0 %v1762
  %2141 = vmatpush.msra.mxu0 %v1722
  %2142 = vmatpush.msra.mxu0 %v1682
  %2143 = vmatpush.msra.mxu0 %v1642
  %2144 = vmatpush.msra.mxu0 %v1602
  %2145 = vmatpush.msra.mxu0 %v1562
  %2146 = vmatpush.msra.mxu0 %v1522
  %2147 = vmatpush.msra.mxu0 %v1482
  %2148 = vmatpush.msra.mxu0 %v1442
  %2149 = vmatpush.msra.mxu0 %v1402
  %2150 = vmatpush.msra.mxu0 %v1362
  %2151 = vmatmul.f32.gmra.mxu0 %v1317
  %v2152 = vpop.f32.mrf.mxu0
  %v2153 = vadd.f32 0.0, %v2152
  %2154 = vdwg.mxu0
  %2155 = vmatpush.msra.mxu0 %v1963
  %2156 = vmatpush.msra.mxu0 %v1923
  %2157 = vmatpush.msra.mxu0 %v1883
  %2158 = vmatpush.msra.mxu0 %v1843
  %2159 = vmatpush.msra.mxu0 %v1803
  %2160 = vmatpush.msra.mxu0 %v1763
  %2161 = vmatpush.msra.mxu0 %v1723
  %2162 = vmatpush.msra.mxu0 %v1683
  %2163 = vmatpush.msra.mxu0 %v1643
  %2164 = vmatpush.msra.mxu0 %v1603
  %2165 = vmatpush.msra.mxu0 %v1563
  %2166 = vmatpush.msra.mxu0 %v1523
  %2167 = vmatpush.msra.mxu0 %v1483
  %2168 = vmatpush.msra.mxu0 %v1443
  %2169 = vmatpush.msra.mxu0 %v1403
  %2170 = vmatpush.msra.mxu0 %v1363
  %2171 = vmatmul.f32.gmra.mxu0 %v1317
  %v2172 = vpop.f32.mrf.mxu0
  %v2173 = vadd.f32 0.0, %v2172
  %2174 = vdwg.mxu0
  %2175 = vmatpush.msra.mxu0 %v1964
  %2176 = vmatpush.msra.mxu0 %v1924
  %2177 = vmatpush.msra.mxu0 %v1884
  %2178 = vmatpush.msra.mxu0 %v1844
  %2179 = vmatpush.msra.mxu0 %v1804
  %2180 = vmatpush.msra.mxu0 %v1764
  %2181 = vmatpush.msra.mxu0 %v1724
  %2182 = vmatpush.msra.mxu0 %v1684
  %2183 = vmatpush.msra.mxu0 %v1644
  %2184 = vmatpush.msra.mxu0 %v1604
  %2185 = vmatpush.msra.mxu0 %v1564
  %2186 = vmatpush.msra.mxu0 %v1524
  %2187 = vmatpush.msra.mxu0 %v1484
  %2188 = vmatpush.msra.mxu0 %v1444
  %2189 = vmatpush.msra.mxu0 %v1404
  %2190 = vmatpush.msra.mxu0 %v1364
  %2191 = vmatmul.f32.gmra.mxu0 %v1317
  %v2192 = vpop.f32.mrf.mxu0
  %v2193 = vadd.f32 0.0, %v2192
  %2194 = vdwg.mxu0
  %2195 = vmatpush.msra.mxu0 %v1965
  %2196 = vmatpush.msra.mxu0 %v1925
  %2197 = vmatpush.msra.mxu0 %v1885
  %2198 = vmatpush.msra.mxu0 %v1845
  %2199 = vmatpush.msra.mxu0 %v1805
  %2200 = vmatpush.msra.mxu0 %v1765
  %2201 = vmatpush.msra.mxu0 %v1725
  %2202 = vmatpush.msra.mxu0 %v1685
  %2203 = vmatpush.msra.mxu0 %v1645
  %2204 = vmatpush.msra.mxu0 %v1605
  %2205 = vmatpush.msra.mxu0 %v1565
  %2206 = vmatpush.msra.mxu0 %v1525
  %2207 = vmatpush.msra.mxu0 %v1485
  %2208 = vmatpush.msra.mxu0 %v1445
  %2209 = vmatpush.msra.mxu0 %v1405
  %2210 = vmatpush.msra.mxu0 %v1365
  %2211 = vmatmul.f32.gmra.mxu0 %v1317
  %v2212 = vpop.f32.mrf.mxu0
  %v2213 = vadd.f32 0.0, %v2212
  %2214 = vdwg.mxu0
  %2215 = vmatpush.msra.mxu0 %v1966
  %2216 = vmatpush.msra.mxu0 %v1926
  %2217 = vmatpush.msra.mxu0 %v1886
  %2218 = vmatpush.msra.mxu0 %v1846
  %2219 = vmatpush.msra.mxu0 %v1806
  %2220 = vmatpush.msra.mxu0 %v1766
  %2221 = vmatpush.msra.mxu0 %v1726
  %2222 = vmatpush.msra.mxu0 %v1686
  %2223 = vmatpush.msra.mxu0 %v1646
  %2224 = vmatpush.msra.mxu0 %v1606
  %2225 = vmatpush.msra.mxu0 %v1566
  %2226 = vmatpush.msra.mxu0 %v1526
  %2227 = vmatpush.msra.mxu0 %v1486
  %2228 = vmatpush.msra.mxu0 %v1446
  %2229 = vmatpush.msra.mxu0 %v1406
  %2230 = vmatpush.msra.mxu0 %v1366
  %2231 = vmatmul.f32.gmra.mxu0 %v1317
  %v2232 = vpop.f32.mrf.mxu0
  %v2233 = vadd.f32 0.0, %v2232
  %2234 = vdwg.mxu0
  %2235 = vmatpush.msra.mxu0 %v1967
  %2236 = vmatpush.msra.mxu0 %v1927
  %2237 = vmatpush.msra.mxu0 %v1887
  %2238 = vmatpush.msra.mxu0 %v1847
  %2239 = vmatpush.msra.mxu0 %v1807
  %2240 = vmatpush.msra.mxu0 %v1767
  %2241 = vmatpush.msra.mxu0 %v1727
  %2242 = vmatpush.msra.mxu0 %v1687
  %2243 = vmatpush.msra.mxu0 %v1647
  %2244 = vmatpush.msra.mxu0 %v1607
  %2245 = vmatpush.msra.mxu0 %v1567
  %2246 = vmatpush.msra.mxu0 %v1527
  %2247 = vmatpush.msra.mxu0 %v1487
  %2248 = vmatpush.msra.mxu0 %v1447
  %2249 = vmatpush.msra.mxu0 %v1407
  %2250 = vmatpush.msra.mxu0 %v1367
  %2251 = vmatmul.f32.gmra.mxu0 %v1317
  %v2252 = vpop.f32.mrf.mxu0
  %v2253 = vadd.f32 0.0, %v2252
  %2254 = vdwg.mxu0
  %2255 = vmatpush.msra.mxu0 %v1968
  %2256 = vmatpush.msra.mxu0 %v1928
  %2257 = vmatpush.msra.mxu0 %v1888
  %2258 = vmatpush.msra.mxu0 %v1848
  %2259 = vmatpush.msra.mxu0 %v1808
  %2260 = vmatpush.msra.mxu0 %v1768
  %2261 = vmatpush.msra.mxu0 %v1728
  %2262 = vmatpush.msra.mxu0 %v1688
  %2263 = vmatpush.msra.mxu0 %v1648
  %2264 = vmatpush.msra.mxu0 %v1608
  %2265 = vmatpush.msra.mxu0 %v1568
  %2266 = vmatpush.msra.mxu0 %v1528
  %2267 = vmatpush.msra.mxu0 %v1488
  %2268 = vmatpush.msra.mxu0 %v1448
  %2269 = vmatpush.msra.mxu0 %v1408
  %2270 = vmatpush.msra.mxu0 %v1368
  %2271 = vmatmul.f32.gmra.mxu0 %v1317
  %v2272 = vpop.f32.mrf.mxu0
  %v2273 = vadd.f32 0.0, %v2272
  %2274 = vdwg.mxu0
  %2275 = vmatpush.msra.mxu0 %v1969
  %2276 = vmatpush.msra.mxu0 %v1929
  %2277 = vmatpush.msra.mxu0 %v1889
  %2278 = vmatpush.msra.mxu0 %v1849
  %2279 = vmatpush.msra.mxu0 %v1809
  %2280 = vmatpush.msra.mxu0 %v1769
  %2281 = vmatpush.msra.mxu0 %v1729
  %2282 = vmatpush.msra.mxu0 %v1689
  %2283 = vmatpush.msra.mxu0 %v1649
  %2284 = vmatpush.msra.mxu0 %v1609
  %2285 = vmatpush.msra.mxu0 %v1569
  %2286 = vmatpush.msra.mxu0 %v1529
  %2287 = vmatpush.msra.mxu0 %v1489
  %2288 = vmatpush.msra.mxu0 %v1449
  %2289 = vmatpush.msra.mxu0 %v1409
  %2290 = vmatpush.msra.mxu0 %v1369
  %2291 = vmatmul.f32.gmra.mxu0 %v1317
  %v2292 = vpop.f32.mrf.mxu0
  %v2293 = vadd.f32 0.0, %v2292
  %2294 = vdwg.mxu0
  %2295 = vmatpush.msra.mxu0 %v1970
  %2296 = vmatpush.msra.mxu0 %v1930
  %2297 = vmatpush.msra.mxu0 %v1890
  %2298 = vmatpush.msra.mxu0 %v1850
  %2299 = vmatpush.msra.mxu0 %v1810
  %2300 = vmatpush.msra.mxu0 %v1770
  %2301 = vmatpush.msra.mxu0 %v1730
  %2302 = vmatpush.msra.mxu0 %v1690
  %2303 = vmatpush.msra.mxu0 %v1650
  %2304 = vmatpush.msra.mxu0 %v1610
  %2305 = vmatpush.msra.mxu0 %v1570
  %2306 = vmatpush.msra.mxu0 %v1530
  %2307 = vmatpush.msra.mxu0 %v1490
  %2308 = vmatpush.msra.mxu0 %v1450
  %2309 = vmatpush.msra.mxu0 %v1410
  %2310 = vmatpush.msra.mxu0 %v1370
  %2311 = vmatmul.f32.gmra.mxu0 %v1317
  %v2312 = vpop.f32.mrf.mxu0
  %v2313 = vadd.f32 0.0, %v2312
  %2314 = vdwg.mxu0
  %2315 = vmatpush.msra.mxu0 %v1971
  %2316 = vmatpush.msra.mxu0 %v1931
  %2317 = vmatpush.msra.mxu0 %v1891
  %2318 = vmatpush.msra.mxu0 %v1851
  %2319 = vmatpush.msra.mxu0 %v1811
  %2320 = vmatpush.msra.mxu0 %v1771
  %2321 = vmatpush.msra.mxu0 %v1731
  %2322 = vmatpush.msra.mxu0 %v1691
  %2323 = vmatpush.msra.mxu0 %v1651
  %2324 = vmatpush.msra.mxu0 %v1611
  %2325 = vmatpush.msra.mxu0 %v1571
  %2326 = vmatpush.msra.mxu0 %v1531
  %2327 = vmatpush.msra.mxu0 %v1491
  %2328 = vmatpush.msra.mxu0 %v1451
  %2329 = vmatpush.msra.mxu0 %v1411
  %2330 = vmatpush.msra.mxu0 %v1371
  %2331 = vmatmul.f32.gmra.mxu0 %v1317
  %v2332 = vpop.f32.mrf.mxu0
  %v2333 = vadd.f32 0.0, %v2332
  %2334 = vdwg.mxu0
  %2335 = vmatpush.msra.mxu0 %v1972
  %2336 = vmatpush.msra.mxu0 %v1932
  %2337 = vmatpush.msra.mxu0 %v1892
  %2338 = vmatpush.msra.mxu0 %v1852
  %2339 = vmatpush.msra.mxu0 %v1812
  %2340 = vmatpush.msra.mxu0 %v1772
  %2341 = vmatpush.msra.mxu0 %v1732
  %2342 = vmatpush.msra.mxu0 %v1692
  %2343 = vmatpush.msra.mxu0 %v1652
  %2344 = vmatpush.msra.mxu0 %v1612
  %2345 = vmatpush.msra.mxu0 %v1572
  %2346 = vmatpush.msra.mxu0 %v1532
  %2347 = vmatpush.msra.mxu0 %v1492
  %2348 = vmatpush.msra.mxu0 %v1452
  %2349 = vmatpush.msra.mxu0 %v1412
  %2350 = vmatpush.msra.mxu0 %v1372
  %2351 = vmatmul.f32.gmra.mxu0 %v1317
  %v2352 = vpop.f32.mrf.mxu0
  %v2353 = vadd.f32 0.0, %v2352
  %2354 = vdwg.mxu0
  %2355 = vmatpush.msra.mxu0 %v1973
  %2356 = vmatpush.msra.mxu0 %v1933
  %2357 = vmatpush.msra.mxu0 %v1893
  %2358 = vmatpush.msra.mxu0 %v1853
  %2359 = vmatpush.msra.mxu0 %v1813
  %2360 = vmatpush.msra.mxu0 %v1773
  %2361 = vmatpush.msra.mxu0 %v1733
  %2362 = vmatpush.msra.mxu0 %v1693
  %2363 = vmatpush.msra.mxu0 %v1653
  %2364 = vmatpush.msra.mxu0 %v1613
  %2365 = vmatpush.msra.mxu0 %v1573
  %2366 = vmatpush.msra.mxu0 %v1533
  %2367 = vmatpush.msra.mxu0 %v1493
  %2368 = vmatpush.msra.mxu0 %v1453
  %2369 = vmatpush.msra.mxu0 %v1413
  %2370 = vmatpush.msra.mxu0 %v1373
  %2371 = vmatmul.f32.gmra.mxu0 %v1317
  %v2372 = vpop.f32.mrf.mxu0
  %v2373 = vadd.f32 0.0, %v2372
  %2374 = vdwg.mxu0
  %2375 = vmatpush.msra.mxu0 %v1974
  %2376 = vmatpush.msra.mxu0 %v1934
  %2377 = vmatpush.msra.mxu0 %v1894
  %2378 = vmatpush.msra.mxu0 %v1854
  %2379 = vmatpush.msra.mxu0 %v1814
  %2380 = vmatpush.msra.mxu0 %v1774
  %2381 = vmatpush.msra.mxu0 %v1734
  %2382 = vmatpush.msra.mxu0 %v1694
  %2383 = vmatpush.msra.mxu0 %v1654
  %2384 = vmatpush.msra.mxu0 %v1614
  %2385 = vmatpush.msra.mxu0 %v1574
  %2386 = vmatpush.msra.mxu0 %v1534
  %2387 = vmatpush.msra.mxu0 %v1494
  %2388 = vmatpush.msra.mxu0 %v1454
  %2389 = vmatpush.msra.mxu0 %v1414
  %2390 = vmatpush.msra.mxu0 %v1374
  %2391 = vmatmul.f32.gmra.mxu0 %v1317
  %v2392 = vpop.f32.mrf.mxu0
  %v2393 = vadd.f32 0.0, %v2392
  %2394 = vdwg.mxu0
  %2395 = vmatpush.msra.mxu0 %v1975
  %2396 = vmatpush.msra.mxu0 %v1935
  %2397 = vmatpush.msra.mxu0 %v1895
  %2398 = vmatpush.msra.mxu0 %v1855
  %2399 = vmatpush.msra.mxu0 %v1815
  %2400 = vmatpush.msra.mxu0 %v1775
  %2401 = vmatpush.msra.mxu0 %v1735
  %2402 = vmatpush.msra.mxu0 %v1695
  %2403 = vmatpush.msra.mxu0 %v1655
  %2404 = vmatpush.msra.mxu0 %v1615
  %2405 = vmatpush.msra.mxu0 %v1575
  %2406 = vmatpush.msra.mxu0 %v1535
  %2407 = vmatpush.msra.mxu0 %v1495
  %2408 = vmatpush.msra.mxu0 %v1455
  %2409 = vmatpush.msra.mxu0 %v1415
  %2410 = vmatpush.msra.mxu0 %v1375
  %2411 = vmatmul.f32.gmra.mxu0 %v1317
  %v2412 = vpop.f32.mrf.mxu0
  %v2413 = vadd.f32 0.0, %v2412
  %2414 = vdwg.mxu0
  %2415 = vmatpush.msra.mxu0 %v1976
  %2416 = vmatpush.msra.mxu0 %v1936
  %2417 = vmatpush.msra.mxu0 %v1896
  %2418 = vmatpush.msra.mxu0 %v1856
  %2419 = vmatpush.msra.mxu0 %v1816
  %2420 = vmatpush.msra.mxu0 %v1776
  %2421 = vmatpush.msra.mxu0 %v1736
  %2422 = vmatpush.msra.mxu0 %v1696
  %2423 = vmatpush.msra.mxu0 %v1656
  %2424 = vmatpush.msra.mxu0 %v1616
  %2425 = vmatpush.msra.mxu0 %v1576
  %2426 = vmatpush.msra.mxu0 %v1536
  %2427 = vmatpush.msra.mxu0 %v1496
  %2428 = vmatpush.msra.mxu0 %v1456
  %2429 = vmatpush.msra.mxu0 %v1416
  %2430 = vmatpush.msra.mxu0 %v1376
  %2431 = vmatmul.f32.gmra.mxu0 %v1317
  %v2432 = vpop.f32.mrf.mxu0
  %v2433 = vadd.f32 0.0, %v2432
  %2434 = vdwg.mxu0
  %2435 = vmatpush.msra.mxu0 %v1977
  %2436 = vmatpush.msra.mxu0 %v1937
  %2437 = vmatpush.msra.mxu0 %v1897
  %2438 = vmatpush.msra.mxu0 %v1857
  %2439 = vmatpush.msra.mxu0 %v1817
  %2440 = vmatpush.msra.mxu0 %v1777
  %2441 = vmatpush.msra.mxu0 %v1737
  %2442 = vmatpush.msra.mxu0 %v1697
  %2443 = vmatpush.msra.mxu0 %v1657
  %2444 = vmatpush.msra.mxu0 %v1617
  %2445 = vmatpush.msra.mxu0 %v1577
  %2446 = vmatpush.msra.mxu0 %v1537
  %2447 = vmatpush.msra.mxu0 %v1497
  %2448 = vmatpush.msra.mxu0 %v1457
  %2449 = vmatpush.msra.mxu0 %v1417
  %2450 = vmatpush.msra.mxu0 %v1377
  %2451 = vmatmul.f32.gmra.mxu0 %v1317
  %v2452 = vpop.f32.mrf.mxu0
  %v2453 = vadd.f32 0.0, %v2452
  %2454 = vdwg.mxu0
  %2455 = vmatpush.msra.mxu0 %v1978
  %2456 = vmatpush.msra.mxu0 %v1938
  %2457 = vmatpush.msra.mxu0 %v1898
  %2458 = vmatpush.msra.mxu0 %v1858
  %2459 = vmatpush.msra.mxu0 %v1818
  %2460 = vmatpush.msra.mxu0 %v1778
  %2461 = vmatpush.msra.mxu0 %v1738
  %2462 = vmatpush.msra.mxu0 %v1698
  %2463 = vmatpush.msra.mxu0 %v1658
  %2464 = vmatpush.msra.mxu0 %v1618
  %2465 = vmatpush.msra.mxu0 %v1578
  %2466 = vmatpush.msra.mxu0 %v1538
  %2467 = vmatpush.msra.mxu0 %v1498
  %2468 = vmatpush.msra.mxu0 %v1458
  %2469 = vmatpush.msra.mxu0 %v1418
  %2470 = vmatpush.msra.mxu0 %v1378
  %2471 = vmatmul.f32.gmra.mxu0 %v1317
  %v2472 = vpop.f32.mrf.mxu0
  %v2473 = vadd.f32 0.0, %v2472
  %2474 = vdwg.mxu0
  %2475 = vmatpush.msra.mxu0 %v1979
  %2476 = vmatpush.msra.mxu0 %v1939
  %2477 = vmatpush.msra.mxu0 %v1899
  %2478 = vmatpush.msra.mxu0 %v1859
  %2479 = vmatpush.msra.mxu0 %v1819
  %2480 = vmatpush.msra.mxu0 %v1779
  %2481 = vmatpush.msra.mxu0 %v1739
  %2482 = vmatpush.msra.mxu0 %v1699
  %2483 = vmatpush.msra.mxu0 %v1659
  %2484 = vmatpush.msra.mxu0 %v1619
  %2485 = vmatpush.msra.mxu0 %v1579
  %2486 = vmatpush.msra.mxu0 %v1539
  %2487 = vmatpush.msra.mxu0 %v1499
  %2488 = vmatpush.msra.mxu0 %v1459
  %2489 = vmatpush.msra.mxu0 %v1419
  %2490 = vmatpush.msra.mxu0 %v1379
  %2491 = vmatmul.f32.gmra.mxu0 %v1317
  %v2492 = vpop.f32.mrf.mxu0
  %v2493 = vadd.f32 0.0, %v2492
  %2494 = vdwg.mxu0
  %2495 = vmatpush.msra.mxu0 %v1980
  %2496 = vmatpush.msra.mxu0 %v1940
  %2497 = vmatpush.msra.mxu0 %v1900
  %2498 = vmatpush.msra.mxu0 %v1860
  %2499 = vmatpush.msra.mxu0 %v1820
  %2500 = vmatpush.msra.mxu0 %v1780
  %2501 = vmatpush.msra.mxu0 %v1740
  %2502 = vmatpush.msra.mxu0 %v1700
  %2503 = vmatpush.msra.mxu0 %v1660
  %2504 = vmatpush.msra.mxu0 %v1620
  %2505 = vmatpush.msra.mxu0 %v1580
  %2506 = vmatpush.msra.mxu0 %v1540
  %2507 = vmatpush.msra.mxu0 %v1500
  %2508 = vmatpush.msra.mxu0 %v1460
  %2509 = vmatpush.msra.mxu0 %v1420
  %2510 = vmatpush.msra.mxu0 %v1380
  %2511 = vmatmul.f32.gmra.mxu0 %v1317
  %v2512 = vpop.f32.mrf.mxu0
  %v2513 = vadd.f32 0.0, %v2512
  %2514 = vdwg.mxu0
  %2515 = vmatpush.msra.mxu0 %v1981
  %2516 = vmatpush.msra.mxu0 %v1941
  %2517 = vmatpush.msra.mxu0 %v1901
  %2518 = vmatpush.msra.mxu0 %v1861
  %2519 = vmatpush.msra.mxu0 %v1821
  %2520 = vmatpush.msra.mxu0 %v1781
  %2521 = vmatpush.msra.mxu0 %v1741
  %2522 = vmatpush.msra.mxu0 %v1701
  %2523 = vmatpush.msra.mxu0 %v1661
  %2524 = vmatpush.msra.mxu0 %v1621
  %2525 = vmatpush.msra.mxu0 %v1581
  %2526 = vmatpush.msra.mxu0 %v1541
  %2527 = vmatpush.msra.mxu0 %v1501
  %2528 = vmatpush.msra.mxu0 %v1461
  %2529 = vmatpush.msra.mxu0 %v1421
  %2530 = vmatpush.msra.mxu0 %v1381
  %2531 = vmatmul.f32.gmra.mxu0 %v1317
  %v2532 = vpop.f32.mrf.mxu0
  %v2533 = vadd.f32 0.0, %v2532
  %2534 = vdwg.mxu0
  %2535 = vmatpush.msra.mxu0 %v1982
  %2536 = vmatpush.msra.mxu0 %v1942
  %2537 = vmatpush.msra.mxu0 %v1902
  %2538 = vmatpush.msra.mxu0 %v1862
  %2539 = vmatpush.msra.mxu0 %v1822
  %2540 = vmatpush.msra.mxu0 %v1782
  %2541 = vmatpush.msra.mxu0 %v1742
  %2542 = vmatpush.msra.mxu0 %v1702
  %2543 = vmatpush.msra.mxu0 %v1662
  %2544 = vmatpush.msra.mxu0 %v1622
  %2545 = vmatpush.msra.mxu0 %v1582
  %2546 = vmatpush.msra.mxu0 %v1542
  %2547 = vmatpush.msra.mxu0 %v1502
  %2548 = vmatpush.msra.mxu0 %v1462
  %2549 = vmatpush.msra.mxu0 %v1422
  %2550 = vmatpush.msra.mxu0 %v1382
  %2551 = vmatmul.f32.gmra.mxu0 %v1317
  %v2552 = vpop.f32.mrf.mxu0
  %v2553 = vadd.f32 0.0, %v2552
  %2554 = vdwg.mxu0
  %2555 = vmatpush.msra.mxu0 %v1983
  %2556 = vmatpush.msra.mxu0 %v1943
  %2557 = vmatpush.msra.mxu0 %v1903
  %2558 = vmatpush.msra.mxu0 %v1863
  %2559 = vmatpush.msra.mxu0 %v1823
  %2560 = vmatpush.msra.mxu0 %v1783
  %2561 = vmatpush.msra.mxu0 %v1743
  %2562 = vmatpush.msra.mxu0 %v1703
  %2563 = vmatpush.msra.mxu0 %v1663
  %2564 = vmatpush.msra.mxu0 %v1623
  %2565 = vmatpush.msra.mxu0 %v1583
  %2566 = vmatpush.msra.mxu0 %v1543
  %2567 = vmatpush.msra.mxu0 %v1503
  %2568 = vmatpush.msra.mxu0 %v1463
  %2569 = vmatpush.msra.mxu0 %v1423
  %2570 = vmatpush.msra.mxu0 %v1383
  %2571 = vmatmul.f32.gmra.mxu0 %v1317
  %v2572 = vpop.f32.mrf.mxu0
  %v2573 = vadd.f32 0.0, %v2572
  %2574 = vdwg.mxu0
  %2575 = vmatpush.msra.mxu0 %v1984
  %2576 = vmatpush.msra.mxu0 %v1944
  %2577 = vmatpush.msra.mxu0 %v1904
  %2578 = vmatpush.msra.mxu0 %v1864
  %2579 = vmatpush.msra.mxu0 %v1824
  %2580 = vmatpush.msra.mxu0 %v1784
  %2581 = vmatpush.msra.mxu0 %v1744
  %2582 = vmatpush.msra.mxu0 %v1704
  %2583 = vmatpush.msra.mxu0 %v1664
  %2584 = vmatpush.msra.mxu0 %v1624
  %2585 = vmatpush.msra.mxu0 %v1584
  %2586 = vmatpush.msra.mxu0 %v1544
  %2587 = vmatpush.msra.mxu0 %v1504
  %2588 = vmatpush.msra.mxu0 %v1464
  %2589 = vmatpush.msra.mxu0 %v1424
  %2590 = vmatpush.msra.mxu0 %v1384
  %2591 = vmatmul.f32.gmra.mxu0 %v1317
  %v2592 = vpop.f32.mrf.mxu0
  %v2593 = vadd.f32 0.0, %v2592
  %2594 = vdwg.mxu0
  %2595 = vmatpush.msra.mxu0 %v1985
  %2596 = vmatpush.msra.mxu0 %v1945
  %2597 = vmatpush.msra.mxu0 %v1905
  %2598 = vmatpush.msra.mxu0 %v1865
  %2599 = vmatpush.msra.mxu0 %v1825
  %2600 = vmatpush.msra.mxu0 %v1785
  %2601 = vmatpush.msra.mxu0 %v1745
  %2602 = vmatpush.msra.mxu0 %v1705
  %2603 = vmatpush.msra.mxu0 %v1665
  %2604 = vmatpush.msra.mxu0 %v1625
  %2605 = vmatpush.msra.mxu0 %v1585
  %2606 = vmatpush.msra.mxu0 %v1545
  %2607 = vmatpush.msra.mxu0 %v1505
  %2608 = vmatpush.msra.mxu0 %v1465
  %2609 = vmatpush.msra.mxu0 %v1425
  %2610 = vmatpush.msra.mxu0 %v1385
  %2611 = vmatmul.f32.gmra.mxu0 %v1317
  %v2612 = vpop.f32.mrf.mxu0
  %v2613 = vadd.f32 0.0, %v2612
  %2614 = vdwg.mxu0
  %2615 = vmatpush.msra.mxu0 %v1986
  %2616 = vmatpush.msra.mxu0 %v1946
  %2617 = vmatpush.msra.mxu0 %v1906
  %2618 = vmatpush.msra.mxu0 %v1866
  %2619 = vmatpush.msra.mxu0 %v1826
  %2620 = vmatpush.msra.mxu0 %v1786
  %2621 = vmatpush.msra.mxu0 %v1746
  %2622 = vmatpush.msra.mxu0 %v1706
  %2623 = vmatpush.msra.mxu0 %v1666
  %2624 = vmatpush.msra.mxu0 %v1626
  %2625 = vmatpush.msra.mxu0 %v1586
  %2626 = vmatpush.msra.mxu0 %v1546
  %2627 = vmatpush.msra.mxu0 %v1506
  %2628 = vmatpush.msra.mxu0 %v1466
  %2629 = vmatpush.msra.mxu0 %v1426
  %2630 = vmatpush.msra.mxu0 %v1386
  %2631 = vmatmul.f32.gmra.mxu0 %v1317
  %v2632 = vpop.f32.mrf.mxu0
  %v2633 = vadd.f32 0.0, %v2632
  %2634 = vdwg.mxu0
  %2635 = vmatpush.msra.mxu0 %v1987
  %2636 = vmatpush.msra.mxu0 %v1947
  %2637 = vmatpush.msra.mxu0 %v1907
  %2638 = vmatpush.msra.mxu0 %v1867
  %2639 = vmatpush.msra.mxu0 %v1827
  %2640 = vmatpush.msra.mxu0 %v1787
  %2641 = vmatpush.msra.mxu0 %v1747
  %2642 = vmatpush.msra.mxu0 %v1707
  %2643 = vmatpush.msra.mxu0 %v1667
  %2644 = vmatpush.msra.mxu0 %v1627
  %2645 = vmatpush.msra.mxu0 %v1587
  %2646 = vmatpush.msra.mxu0 %v1547
  %2647 = vmatpush.msra.mxu0 %v1507
  %2648 = vmatpush.msra.mxu0 %v1467
  %2649 = vmatpush.msra.mxu0 %v1427
  %2650 = vmatpush.msra.mxu0 %v1387
  %2651 = vmatmul.f32.gmra.mxu0 %v1317
  %v2652 = vpop.f32.mrf.mxu0
  %v2653 = vadd.f32 0.0, %v2652
  %2654 = vdwg.mxu0
  %2655 = vmatpush.msra.mxu0 %v1988
  %2656 = vmatpush.msra.mxu0 %v1948
  %2657 = vmatpush.msra.mxu0 %v1908
  %2658 = vmatpush.msra.mxu0 %v1868
  %2659 = vmatpush.msra.mxu0 %v1828
  %2660 = vmatpush.msra.mxu0 %v1788
  %2661 = vmatpush.msra.mxu0 %v1748
  %2662 = vmatpush.msra.mxu0 %v1708
  %2663 = vmatpush.msra.mxu0 %v1668
  %2664 = vmatpush.msra.mxu0 %v1628
  %2665 = vmatpush.msra.mxu0 %v1588
  %2666 = vmatpush.msra.mxu0 %v1548
  %2667 = vmatpush.msra.mxu0 %v1508
  %2668 = vmatpush.msra.mxu0 %v1468
  %2669 = vmatpush.msra.mxu0 %v1428
  %2670 = vmatpush.msra.mxu0 %v1388
  %2671 = vmatmul.f32.gmra.mxu0 %v1317
  %v2672 = vpop.f32.mrf.mxu0
  %v2673 = vadd.f32 0.0, %v2672
  %2674 = vdwg.mxu0
  %2675 = vmatpush.msra.mxu0 %v1989
  %2676 = vmatpush.msra.mxu0 %v1949
  %2677 = vmatpush.msra.mxu0 %v1909
  %2678 = vmatpush.msra.mxu0 %v1869
  %2679 = vmatpush.msra.mxu0 %v1829
  %2680 = vmatpush.msra.mxu0 %v1789
  %2681 = vmatpush.msra.mxu0 %v1749
  %2682 = vmatpush.msra.mxu0 %v1709
  %2683 = vmatpush.msra.mxu0 %v1669
  %2684 = vmatpush.msra.mxu0 %v1629
  %2685 = vmatpush.msra.mxu0 %v1589
  %2686 = vmatpush.msra.mxu0 %v1549
  %2687 = vmatpush.msra.mxu0 %v1509
  %2688 = vmatpush.msra.mxu0 %v1469
  %2689 = vmatpush.msra.mxu0 %v1429
  %2690 = vmatpush.msra.mxu0 %v1389
  %2691 = vmatmul.f32.gmra.mxu0 %v1317
  %v2692 = vpop.f32.mrf.mxu0
  %v2693 = vadd.f32 0.0, %v2692
  %2694 = vdwg.mxu0
  %2695 = vmatpush.msra.mxu0 %v1990
  %2696 = vmatpush.msra.mxu0 %v1950
  %2697 = vmatpush.msra.mxu0 %v1910
  %2698 = vmatpush.msra.mxu0 %v1870
  %2699 = vmatpush.msra.mxu0 %v1830
  %2700 = vmatpush.msra.mxu0 %v1790
  %2701 = vmatpush.msra.mxu0 %v1750
  %2702 = vmatpush.msra.mxu0 %v1710
  %2703 = vmatpush.msra.mxu0 %v1670
  %2704 = vmatpush.msra.mxu0 %v1630
  %2705 = vmatpush.msra.mxu0 %v1590
  %2706 = vmatpush.msra.mxu0 %v1550
  %2707 = vmatpush.msra.mxu0 %v1510
  %2708 = vmatpush.msra.mxu0 %v1470
  %2709 = vmatpush.msra.mxu0 %v1430
  %2710 = vmatpush.msra.mxu0 %v1390
  %2711 = vmatmul.f32.gmra.mxu0 %v1317
  %v2712 = vpop.f32.mrf.mxu0
  %v2713 = vadd.f32 0.0, %v2712
  %2714 = vdwg.mxu0
  %2715 = vmatpush.msra.mxu0 %v1991
  %2716 = vmatpush.msra.mxu0 %v1951
  %2717 = vmatpush.msra.mxu0 %v1911
  %2718 = vmatpush.msra.mxu0 %v1871
  %2719 = vmatpush.msra.mxu0 %v1831
  %2720 = vmatpush.msra.mxu0 %v1791
  %2721 = vmatpush.msra.mxu0 %v1751
  %2722 = vmatpush.msra.mxu0 %v1711
  %2723 = vmatpush.msra.mxu0 %v1671
  %2724 = vmatpush.msra.mxu0 %v1631
  %2725 = vmatpush.msra.mxu0 %v1591
  %2726 = vmatpush.msra.mxu0 %v1551
  %2727 = vmatpush.msra.mxu0 %v1511
  %2728 = vmatpush.msra.mxu0 %v1471
  %2729 = vmatpush.msra.mxu0 %v1431
  %2730 = vmatpush.msra.mxu0 %v1391
  %2731 = vmatmul.f32.gmra.mxu0 %v1317
  %v2732 = vpop.f32.mrf.mxu0
  %v2733 = vadd.f32 0.0, %v2732
  %2734 = vdwg.mxu0
  %2735 = vmatpush.msra.mxu0 %v1992
  %2736 = vmatpush.msra.mxu0 %v1952
  %2737 = vmatpush.msra.mxu0 %v1912
  %2738 = vmatpush.msra.mxu0 %v1872
  %2739 = vmatpush.msra.mxu0 %v1832
  %2740 = vmatpush.msra.mxu0 %v1792
  %2741 = vmatpush.msra.mxu0 %v1752
  %2742 = vmatpush.msra.mxu0 %v1712
  %2743 = vmatpush.msra.mxu0 %v1672
  %2744 = vmatpush.msra.mxu0 %v1632
  %2745 = vmatpush.msra.mxu0 %v1592
  %2746 = vmatpush.msra.mxu0 %v1552
  %2747 = vmatpush.msra.mxu0 %v1512
  %2748 = vmatpush.msra.mxu0 %v1472
  %2749 = vmatpush.msra.mxu0 %v1432
  %2750 = vmatpush.msra.mxu0 %v1392
  %2751 = vmatmul.f32.gmra.mxu0 %v1317
  %v2752 = vpop.f32.mrf.mxu0
  %v2753 = vadd.f32 0.0, %v2752
  %2754 = vdwg.mxu0
  %2755 = vmatpush.msra.mxu0 %v1993
  %2756 = vmatpush.msra.mxu0 %v1953
  %2757 = vmatpush.msra.mxu0 %v1913
  %2758 = vmatpush.msra.mxu0 %v1873
  %2759 = vmatpush.msra.mxu0 %v1833
  %2760 = vmatpush.msra.mxu0 %v1793
  %2761 = vmatpush.msra.mxu0 %v1753
  %2762 = vmatpush.msra.mxu0 %v1713
  %2763 = vmatpush.msra.mxu0 %v1673
  %2764 = vmatpush.msra.mxu0 %v1633
  %2765 = vmatpush.msra.mxu0 %v1593
  %2766 = vmatpush.msra.mxu0 %v1553
  %2767 = vmatpush.msra.mxu0 %v1513
  %2768 = vmatpush.msra.mxu0 %v1473
  %2769 = vmatpush.msra.mxu0 %v1433
  %2770 = vmatpush.msra.mxu0 %v1393
  %2771 = vmatmul.f32.gmra.mxu0 %v1317
  %v2772 = vpop.f32.mrf.mxu0
  %v2773 = vadd.f32 0.0, %v2772
  %2774 = vdwg.mxu0
  %2775 = vmatpush.msra.mxu0 %v1994
  %2776 = vmatpush.msra.mxu0 %v1954
  %2777 = vmatpush.msra.mxu0 %v1914
  %2778 = vmatpush.msra.mxu0 %v1874
  %2779 = vmatpush.msra.mxu0 %v1834
  %2780 = vmatpush.msra.mxu0 %v1794
  %2781 = vmatpush.msra.mxu0 %v1754
  %2782 = vmatpush.msra.mxu0 %v1714
  %2783 = vmatpush.msra.mxu0 %v1674
  %2784 = vmatpush.msra.mxu0 %v1634
  %2785 = vmatpush.msra.mxu0 %v1594
  %2786 = vmatpush.msra.mxu0 %v1554
  %2787 = vmatpush.msra.mxu0 %v1514
  %2788 = vmatpush.msra.mxu0 %v1474
  %2789 = vmatpush.msra.mxu0 %v1434
  %2790 = vmatpush.msra.mxu0 %v1394
  %2791 = vmatmul.f32.gmra.mxu0 %v1317
  %v2792 = vpop.f32.mrf.mxu0
  %v2793 = vadd.f32 0.0, %v2792
  %2794 = vdwg.mxu0
  %v2835 = vrot.slane %v2033, 6
  %v2836 = vrot.slane %v2053, 4
  %v2837 = vrot.slane %v2073, 2
  %v2838 = vrot.slane %v2113, 6
  %v2839 = vrot.slane %v2133, 4
  %v2840 = vrot.slane %v2153, 2
  %v2841 = vrot.slane %v2193, 6
  %v2842 = vrot.slane %v2213, 4
  %v2843 = vrot.slane %v2233, 2
  %v2844 = vrot.slane %v2273, 6
  %v2845 = vrot.slane %v2293, 4
  %v2846 = vrot.slane %v2313, 2
  %v2847 = vrot.slane %v2353, 6
  %v2848 = vrot.slane %v2373, 4
  %v2849 = vrot.slane %v2393, 2
  %v2850 = vrot.slane %v2433, 6
  %v2851 = vrot.slane %v2453, 4
  %v2852 = vrot.slane %v2473, 2
  %v2853 = vrot.slane %v2513, 6
  %v2854 = vrot.slane %v2533, 4
  %v2855 = vrot.slane %v2553, 2
  %v2856 = vrot.slane %v2593, 6
  %v2857 = vrot.slane %v2613, 4
  %v2858 = vrot.slane %v2633, 2
  %v2859 = vrot.slane %v2673, 6
  %v2860 = vrot.slane %v2693, 4
  %v2861 = vrot.slane %v2713, 2
  %v2862 = vrot.slane %v2753, 6
  %v2863 = vrot.slane %v2773, 4
  %v2864 = vrot.slane %v2793, 2
  %vm2865 = vcmask 1041408
  %v2866 = vsel %vm2865, %v2013, %v2835
  %vm2867 = vcmask 1045508
  %v2868 = vsel %vm2867, %v2836, %v2837
  %vm2869 = vcmask 1043456
  %v2870 = vsel %vm2869, %v2866, %v2868
  %v2871 = vsel %vm2865, %v2093, %v2838
  %v2872 = vsel %vm2867, %v2839, %v2840
  %v2873 = vsel %vm2869, %v2871, %v2872
  %v2874 = vsel %vm2865, %v2173, %v2841
  %v2875 = vsel %vm2867, %v2842, %v2843
  %v2876 = vsel %vm2869, %v2874, %v2875
  %v2877 = vsel %vm2865, %v2253, %v2844
  %v2878 = vsel %vm2867, %v2845, %v2846
  %v2879 = vsel %vm2869, %v2877, %v2878
  %v2880 = vsel %vm2865, %v2333, %v2847
  %v2881 = vsel %vm2867, %v2848, %v2849
  %v2882 = vsel %vm2869, %v2880, %v2881
  %v2883 = vsel %vm2865, %v2413, %v2850
  %v2884 = vsel %vm2867, %v2851, %v2852
  %v2885 = vsel %vm2869, %v2883, %v2884
  %v2886 = vsel %vm2865, %v2493, %v2853
  %v2887 = vsel %vm2867, %v2854, %v2855
  %v2888 = vsel %vm2869, %v2886, %v2887
  %v2889 = vsel %vm2865, %v2573, %v2856
  %v2890 = vsel %vm2867, %v2857, %v2858
  %v2891 = vsel %vm2869, %v2889, %v2890
  %v2892 = vsel %vm2865, %v2653, %v2859
  %v2893 = vsel %vm2867, %v2860, %v2861
  %v2894 = vsel %vm2869, %v2892, %v2893
  %v2895 = vsel %vm2865, %v2733, %v2862
  %v2896 = vsel %vm2867, %v2863, %v2864
  %v2897 = vsel %vm2869, %v2895, %v2896
  %2908 = vst [vmem:[%s10] sm:$0xff] %v2870
  %2909 = vst [vmem:[%s10 + $0x8] sm:$0xff] %v2873
  %2910 = vst [vmem:[%s10 + $0x10] sm:$0xff] %v2876
  %2911 = vst [vmem:[%s10 + $0x18] sm:$0xff] %v2879
  %2912 = vst [vmem:[%s10 + $0x20] sm:$0xff] %v2882
  %2913 = vst [vmem:[%s10 + $0x28] sm:$0xff] %v2885
  %2914 = vst [vmem:[%s10 + $0x30] sm:$0xff] %v2888
  %2915 = vst [vmem:[%s10 + $0x38] sm:$0xff] %v2891
  %2916 = vst [vmem:[%s10 + $0x40] sm:$0xff] %v2894
  %2917 = vst [vmem:[%s10 + $0x48] sm:$0xff] %v2897
  // Predicated region
  $region38: #{discriminator_forward.1} parent=0 // pred_check
    _
  $region39: #{discriminator_forward.1} parent=0 // pred_check_branch
    %2919 = sbr.rel (0) target = $region41
  $region40: #{discriminator_forward.1} parent=0 // pred_region
    _
  $region41: #{discriminator_forward.1} parent=0 // pred_fallthru
    _
  // Predicated region
  $region42: #{discriminator_forward.1} parent=0 // pred_check
    _
  $region43: #{discriminator_forward.1} parent=0 // pred_check_branch
    %2921 = sbr.rel (0) target = $region45
  $region44: #{discriminator_forward.1} parent=0 // pred_region
    _
  $region45: #{discriminator_forward.1} parent=0 // pred_fallthru
    _
  // Predicated region
  $region46: #{discriminator_forward.1} parent=0 // pred_check
    _
  $region47: #{discriminator_forward.1} parent=0 // pred_check_branch
    %2923 = sbr.rel (0) target = $region49
  $region48: #{discriminator_forward.1} parent=0 // pred_region
    _
  $region49: #{discriminator_forward.1} parent=0 // pred_fallthru
    _
  // Predicated region
  $region50: #{discriminator_forward.1} parent=0 // pred_check
    _
  $region51: #{discriminator_forward.1} parent=0 // pred_check_branch
    %2925 = sbr.rel (0) target = $region53
  $region52: #{discriminator_forward.1} parent=0 // pred_region
    _
  $region53: #{discriminator_forward.1} parent=0 // pred_fallthru
    _

</llo_original>
